<compile_context>
chip_gen: v7x
topology: tpu7x:2x2x1
jax: 0.10.0
libtpu: 0.0.40
codegen_flags: <defaults>
</compile_context>

<pallas_src>
import functools

import jax
import jax.numpy as jnp
from jax.experimental import pallas as pl
from jax.experimental.pallas import tpu as pltpu


def _round_up(x, m):
    return (x + m - 1) // m * m


def _pick_tk(K):
    if K <= 512:
        return K
    for d in (512, 256, 128):
        if K % d == 0:
            return d
    return K


# ----------------------------------------------------------------------------
# Kernel 1: tiled im2col-GEMM conv.  grid = (M tiles, K tiles), K innermost.
#   use_bn=True : emit raw conv output (fp32) + per-tile (sum, sumsq) partials
#   use_bn=False: fuse bias (+ LeakyReLU) into the epilogue, emit bf16
# ----------------------------------------------------------------------------
def _conv_gemm_kernel(p_ref, w_ref, *rest, use_bn: bool, use_act: bool):
    if use_bn:
        o_ref, stats_ref, acc_ref = rest
    else:
        b_ref, o_ref, acc_ref = rest

    k = pl.program_id(1)

    @pl.when(k == 0)
    def _():
        acc_ref[...] = jnp.zeros_like(acc_ref)

    acc_ref[...] += jnp.dot(p_ref[...], w_ref[...],
                            preferred_element_type=jnp.float32)

    @pl.when(k == pl.num_programs(1) - 1)
    def _():
        acc = acc_ref[...]
        if use_bn:
            o_ref[...] = acc.astype(o_ref.dtype)
            # Per-M-tile channel partial sums from the fp32 accumulator.
            stats_ref[0, 0:1, :] = jnp.sum(acc, axis=0, keepdims=True)
            stats_ref[0, 1:2, :] = jnp.sum(acc * acc, axis=0, keepdims=True)
        else:
            acc = acc + b_ref[...]
            if use_act:
                acc = jnp.where(acc > 0, acc, 0.2 * acc)  # LeakyReLU(0.2)
            o_ref[...] = acc.astype(o_ref.dtype)


def _conv_gemm(patches, w_t, bias, *, use_bn, use_act):
    """patches [M, K] bf16 @ w_t [K, Cout] bf16 -> [M_pad, Cout] (+ stats)."""
    M, K = patches.shape
    Cout = w_t.shape[1]

    tm = min(1024, _round_up(M, 16))
    M_pad = _round_up(M, tm)
    if M_pad != M:
        patches = jnp.pad(patches, ((0, M_pad - M), (0, 0)))
    tk = _pick_tk(K)
    nmt, nkt = M_pad // tm, K // tk

    kernel = functools.partial(_conv_gemm_kernel, use_bn=use_bn, use_act=use_act)

    in_specs = [
        pl.BlockSpec((tm, tk), lambda i, k: (i, k)),       # patches
        pl.BlockSpec((tk, Cout), lambda i, k: (k, 0)),     # weights
    ]
    inputs = [patches, w_t]
    if not use_bn:
        in_specs.append(pl.BlockSpec((1, Cout), lambda i, k: (0, 0)))
        inputs.append(bias.reshape(1, Cout).astype(jnp.float32))

    if use_bn:
        # Raw conv output kept fp32: it is re-read once by the BN-apply kernel
        # and the normalization math benefits from the extra mantissa.
        out_shape = (jax.ShapeDtypeStruct((M_pad, Cout), jnp.float32),
                     jax.ShapeDtypeStruct((nmt, 2, Cout), jnp.float32))
        out_specs = (pl.BlockSpec((tm, Cout), lambda i, k: (i, 0)),
                     pl.BlockSpec((1, 2, Cout), lambda i, k: (i, 0, 0)))
        out_bytes = M_pad * Cout * 4
    else:
        # No BN: the next layer consumes bf16 anyway -> write bf16 directly.
        out_shape = jax.ShapeDtypeStruct((M_pad, Cout), jnp.bfloat16)
        out_specs = pl.BlockSpec((tm, Cout), lambda i, k: (i, 0))
        out_bytes = M_pad * Cout * 2

    cost = pl.CostEstimate(
        flops=2 * M_pad * K * Cout,
        transcendentals=0,
        bytes_accessed=(M_pad * K + K * Cout) * 2 + out_bytes)

    out = pl.pallas_call(
        kernel,
        out_shape=out_shape,
        grid_spec=pltpu.PrefetchScalarGridSpec(
            num_scalar_prefetch=0,
            grid=(nmt, nkt),
            in_specs=in_specs,
            out_specs=out_specs,
            scratch_shapes=[pltpu.VMEM((tm, Cout), jnp.float32)]),
        compiler_params=pltpu.CompilerParams(
            dimension_semantics=("parallel", "arbitrary"),
            vmem_limit_bytes=32 * 1024 * 1024),
        cost_estimate=cost,
    )(*inputs)

    if use_bn:
        conv, stats = out
        return conv, stats
    return out, None


# ----------------------------------------------------------------------------
# Kernel 2: BatchNorm affine (precomputed per-channel scale/shift) + LeakyReLU
# ----------------------------------------------------------------------------
def _scale_shift_act_kernel(x_ref, scale_ref, shift_ref, o_ref, *, use_act):
    x = x_ref[...] * scale_ref[...] + shift_ref[...]
    if use_act:
        x = jnp.where(x > 0, x, 0.2 * x)
    o_ref[...] = x.astype(o_ref.dtype)


def _scale_shift_act(x, scale, shift, *, use_act):
    M_pad, Cout = x.shape
    tm = min(1024, M_pad)
    kernel = functools.partial(_scale_shift_act_kernel, use_act=use_act)
    return pl.pallas_call(
        kernel,
        out_shape=jax.ShapeDtypeStruct((M_pad, Cout), jnp.bfloat16),
        grid_spec=pltpu.PrefetchScalarGridSpec(
            num_scalar_prefetch=0,
            grid=(M_pad // tm,),
            in_specs=[pl.BlockSpec((tm, Cout), lambda i: (i, 0)),
                      pl.BlockSpec((1, Cout), lambda i: (0, 0)),
                      pl.BlockSpec((1, Cout), lambda i: (0, 0))],
            out_specs=pl.BlockSpec((tm, Cout), lambda i: (i, 0))),
        compiler_params=pltpu.CompilerParams(
            dimension_semantics=("parallel",),
            vmem_limit_bytes=32 * 1024 * 1024),
    )(x, scale.reshape(1, Cout).astype(jnp.float32),
      shift.reshape(1, Cout).astype(jnp.float32))


# ----------------------------------------------------------------------------
# Kernel 3: final 1x1 conv, computed transposed so the output is lane-dense
# ----------------------------------------------------------------------------
def _conv1x1_kernel(w_ref, x_ref, b_ref, o_ref):
    o_ref[...] = (jnp.dot(w_ref[...], x_ref[...],
                          preferred_element_type=jnp.float32) + b_ref[...])


def _final_conv1x1(x_nhwc, params):
    w, b, _, _ = params
    N, H, W, Cin = x_nhwc.shape
    M = N * H * W

    x_t = x_nhwc.astype(jnp.bfloat16).reshape(M, Cin).T      # [Cin, M]
    tm = min(512, _round_up(M, 128))
    M_pad = _round_up(M, tm)
    if M_pad != M:
        x_t = jnp.pad(x_t, ((0, 0), (0, M_pad - M)))
    w_row = w.reshape(1, Cin).astype(jnp.bfloat16)
    b_arr = b.reshape(1, 1).astype(jnp.float32)

    out_t = pl.pallas_call(
        _conv1x1_kernel,
        out_shape=jax.ShapeDtypeStruct((1, M_pad), jnp.float32),
        grid_spec=pltpu.PrefetchScalarGridSpec(
            num_scalar_prefetch=0,
            grid=(M_pad // tm,),
            in_specs=[pl.BlockSpec((1, Cin), lambda i: (0, 0)),
                      pl.BlockSpec((Cin, tm), lambda i: (0, i)),
                      pl.BlockSpec((1, 1), lambda i: (0, 0))],
            out_specs=pl.BlockSpec((1, tm), lambda i: (0, i))),
        compiler_params=pltpu.CompilerParams(
            dimension_semantics=("parallel",)),
    )(w_row, x_t, b_arr)

    return out_t[0, :M].reshape(N, H, W)[:, None, :, :]      # NCHW [N, 1, H, W]


# ----------------------------------------------------------------------------
# JAX glue: im2col on NHWC input (K-order = (kh, kw, c)), layer drivers
# ----------------------------------------------------------------------------
def _im2col_nhwc(x, kernel=4, stride=2, pad=1):
    N, H, W, C = x.shape
    xp = jnp.pad(x, ((0, 0), (pad, pad), (pad, pad), (0, 0)))
    Ho = (H + 2 * pad - kernel) // stride + 1
    Wo = (W + 2 * pad - kernel) // stride + 1
    cols = []
    for kh in range(kernel):
        for kw in range(kernel):
            cols.append(xp[:, kh:kh + stride * Ho:stride,
                           kw:kw + stride * Wo:stride, :])    # [N, Ho, Wo, C]
    patches = jnp.concatenate(cols, axis=-1)                  # [N, Ho, Wo, k*k*C]
    return patches.reshape(N * Ho * Wo, kernel * kernel * C), Ho, Wo


def _downsample_conv(x_nhwc, params, *, use_bn, use_act):
    """[N, H, W, Cin] -> [N, H//2, W//2, Cout] (conv4x4/s2 + BN + LeakyReLU)."""
    w, b, gamma, beta = params
    Cout = w.shape[0]
    N = x_nhwc.shape[0]

    patches, Ho, Wo = _im2col_nhwc(x_nhwc.astype(jnp.bfloat16))
    M, K = patches.shape
    # torch weight (Cout, Cin, kh, kw) -> K-order (kh, kw, Cin), columns = Cout
    w_t = w.transpose(2, 3, 1, 0).reshape(K, Cout).astype(jnp.bfloat16)

    conv, stats = _conv_gemm(patches, w_t, b, use_bn=use_bn, use_act=use_act)

    if use_bn:
        tot = jnp.sum(stats, axis=0)                          # [2, Cout]
        mean = tot[0] / M
        var = jnp.maximum(tot[1] / M - mean * mean, 0.0)      # biased batch var
        rstd = jax.lax.rsqrt(var + 1e-5)
        scale = gamma * rstd
        shift = beta - mean * scale        # conv bias cancels under batch norm
        conv = _scale_shift_act(conv, scale, shift, use_act=use_act)

    return conv[:M].reshape(N, Ho, Wo, Cout)                  # bf16 NHWC


# ----------------------------------------------------------------------------
# Parameters + forward
# ----------------------------------------------------------------------------
def init_patchgan_params(key, input_channels):
    def conv_params(key, cin, cout, k):
        k_w, k_b = jax.random.split(key)
        w = 0.02 * jax.random.normal(k_w, (cout, cin, k, k), jnp.float32)
        b = 0.02 * jax.random.normal(k_b, (cout,), jnp.float32)
        gamma = jnp.ones((cout,), jnp.float32)   # BN affine init
        beta = jnp.zeros((cout,), jnp.float32)
        return (w, b, gamma, beta)

    keys = jax.random.split(key, 5)
    return {
        "d1": conv_params(keys[0], input_channels, 64, 4),
        "d2": conv_params(keys[1], 64, 128, 4),
        "d3": conv_params(keys[2], 128, 256, 4),
        "d4": conv_params(keys[3], 256, 512, 4),
        "final": conv_params(keys[4], 512, 1, 1),
    }


def patchgan_forward(params, x, y):
    # PatchGAN.forward: channel concat, 4 downsample convs, final 1x1 conv.
    h = jnp.concatenate([x, y], axis=1)            # NCHW
    h = h.transpose(0, 2, 3, 1)                    # -> NHWC once at the boundary
    h = _downsample_conv(h, params["d1"], use_bn=False, use_act=True)   # C64
    h = _downsample_conv(h, params["d2"], use_bn=True, use_act=True)    # C128
    h = _downsample_conv(h, params["d3"], use_bn=True, use_act=True)    # C256
    h = _downsample_conv(h, params["d4"], use_bn=True, use_act=True)    # C512
    return _final_conv1x1(h, params["final"])                           # NCHW out


if __name__ == "__main__":
    key = jax.random.PRNGKey(0)
    kx, ky, kp = jax.random.split(key, 3)

    N, Cx, Cy, H, W = 2, 2, 2, 16, 16      # input_channels = Cx + Cy = 4
    x = jax.random.normal(kx, (N, Cx, H, W), jnp.float32)
    y = jax.random.normal(ky, (N, Cy, H, W), jnp.float32)
    params = init_patchgan_params(kp, Cx + Cy)

    out = jax.jit(patchgan_forward)(params, x, y)
    out = jax.block_until_ready(out)

    assert out.shape == (N, 1, 1, 1), out.shape
    assert bool(jnp.all(jnp.isfinite(out)))
    print("KERNEL_OK")
</pallas_src>

<mosaic_0001>
module attributes {stable_mosaic.version = 11 : i64} {
  func.func @_conv_gemm_kernel(%arg0: i32, %arg1: i32, %arg2: memref<128x64xbf16, #tpu.memory_space<vmem>>, %arg3: memref<64x64xbf16, #tpu.memory_space<vmem>>, %arg4: memref<1x64xf32, #tpu.memory_space<vmem>>, %arg5: memref<128x64xbf16, #tpu.memory_space<vmem>>, %arg6: memref<128x64xf32, #tpu.memory_space<vmem>>) attributes {dimension_semantics = [#tpu.dimension_semantics<parallel>, #tpu.dimension_semantics<arbitrary>], iteration_bounds = array<i64: 1, 1>, scalar_prefetch = 0 : i64, scratch_operands = 1 : i64, tpu.core_type = #tpu.core_type<tc>, window_params = [{transform_indices = @transform_0, window_bounds = array<i64: 128, 64>}, {transform_indices = @transform_1, window_bounds = array<i64: 64, 64>}, {pipeline_mode = #tpu.pipeline_mode<synchronous>, transform_indices = @transform_2, window_bounds = array<i64: 1, 64>}, {transform_indices = @transform_3, window_bounds = array<i64: 128, 64>}]} {
    %c0_i32 = arith.constant 0 : i32
    %0 = arith.cmpi eq, %arg1, %c0_i32 : i32
    %1 = arith.extui %0 : i1 to i32
    %c0_i32_0 = arith.constant 0 : i32
    %2 = arith.cmpi ne, %1, %c0_i32_0 : i32
    scf.if %2 {
      %cst_10 = arith.constant 0.000000e+00 : f32
      %12 = vector.broadcast %cst_10 : f32 to vector<128x64xf32>
      %c0_11 = arith.constant 0 : index
      %c0_12 = arith.constant 0 : index
      %13 = vector.load %arg6[%c0_11, %c0_12] : memref<128x64xf32, #tpu.memory_space<vmem>>, vector<128x64xf32>
      tpu.vector_store %arg6[%c0_11, %c0_12], %12 {strides = array<i32>} : memref<128x64xf32, #tpu.memory_space<vmem>>, vector<128x64xf32>,
    } else {
    }
    %c0 = arith.constant 0 : index
    %c0_1 = arith.constant 0 : index
    %3 = vector.load %arg6[%c0, %c0_1] : memref<128x64xf32, #tpu.memory_space<vmem>>, vector<128x64xf32>
    %c0_2 = arith.constant 0 : index
    %c0_3 = arith.constant 0 : index
    %4 = vector.load %arg2[%c0_2, %c0_3] : memref<128x64xbf16, #tpu.memory_space<vmem>>, vector<128x64xbf16>
    %c0_4 = arith.constant 0 : index
    %c0_5 = arith.constant 0 : index
    %5 = vector.load %arg3[%c0_4, %c0_5] : memref<64x64xbf16, #tpu.memory_space<vmem>>, vector<64x64xbf16>
    %cst = arith.constant dense<0.000000e+00> : vector<128x64xf32>
    %6 = tpu.matmul %4, %5, %cst {dimension_numbers = #tpu.dot_dimension_numbers<[1], [0], [0], [1], [0, 0, 1, 1], [], []>} : vector<128x64xbf16>, vector<64x64xbf16>, vector<128x64xf32> -> vector<128x64xf32>
    %7 = arith.addf %3, %6 : vector<128x64xf32>
    %c0_6 = arith.constant 0 : index
    %c0_7 = arith.constant 0 : index
    %8 = vector.load %arg6[%c0_6, %c0_7] : memref<128x64xf32, #tpu.memory_space<vmem>>, vector<128x64xf32>
    tpu.vector_store %arg6[%c0_6, %c0_7], %7 {strides = array<i32>} : memref<128x64xf32, #tpu.memory_space<vmem>>, vector<128x64xf32>,
    %c0_i32_8 = arith.constant 0 : i32
    %9 = arith.cmpi eq, %arg1, %c0_i32_8 : i32
    %10 = arith.extui %9 : i1 to i32
    %c0_i32_9 = arith.constant 0 : i32
    %11 = arith.cmpi ne, %10, %c0_i32_9 : i32
    scf.if %11 {
      %c0_10 = arith.constant 0 : index
      %c0_11 = arith.constant 0 : index
      %12 = vector.load %arg6[%c0_10, %c0_11] : memref<128x64xf32, #tpu.memory_space<vmem>>, vector<128x64xf32>
      %c0_12 = arith.constant 0 : index
      %c0_13 = arith.constant 0 : index
      %13 = vector.load %arg4[%c0_12, %c0_13] : memref<1x64xf32, #tpu.memory_space<vmem>>, vector<1x64xf32>
      %14 = vector.broadcast %13 : vector<1x64xf32> to vector<128x64xf32>
      %15 = arith.addf %12, %14 : vector<128x64xf32>
      %cst_14 = arith.constant 0.000000e+00 : f32
      %16 = vector.broadcast %cst_14 : f32 to vector<128x64xf32>
      %17 = arith.cmpf ogt, %15, %16 : vector<128x64xf32>
      %cst_15 = arith.constant 2.000000e-01 : f32
      %18 = vector.broadcast %cst_15 : f32 to vector<128x64xf32>
      %19 = arith.mulf %18, %15 : vector<128x64xf32>
      %20 = arith.select %17, %15, %19 : vector<128x64xi1>, vector<128x64xf32>
      %21 = arith.truncf %20 : vector<128x64xf32> to vector<128x64xbf16>
      %c0_16 = arith.constant 0 : index
      %c0_17 = arith.constant 0 : index
      %22 = vector.load %arg5[%c0_16, %c0_17] : memref<128x64xbf16, #tpu.memory_space<vmem>>, vector<128x64xbf16>
      tpu.vector_store %arg5[%c0_16, %c0_17], %21 {strides = array<i32>} : memref<128x64xbf16, #tpu.memory_space<vmem>>, vector<128x64xbf16>,
    } else {
    }
    return
  }
  func.func @transform_0(%arg0: i32, %arg1: i32) -> (i32, i32) {
    %c0_i32 = arith.constant 0 : i32
    return %arg0, %arg1 : i32, i32
  }
  func.func @transform_1(%arg0: i32, %arg1: i32) -> (i32, i32) {
    %c0_i32 = arith.constant 0 : i32
    %c0_i32_0 = arith.constant 0 : i32
    return %arg1, %c0_i32 : i32, i32
  }
  func.func @transform_2(%arg0: i32, %arg1: i32) -> (i32, i32) {
    %c0_i32 = arith.constant 0 : i32
    %c0_i32_0 = arith.constant 0 : i32
    %c0_i32_1 = arith.constant 0 : i32
    return %c0_i32, %c0_i32_0 : i32, i32
  }
  func.func @transform_3(%arg0: i32, %arg1: i32) -> (i32, i32) {
    %c0_i32 = arith.constant 0 : i32
    %c0_i32_0 = arith.constant 0 : i32
    return %arg0, %c0_i32 : i32, i32
  }
}

module attributes {stable_mosaic.version = 11 : i64} {
  func.func @_conv_gemm_kernel(%arg0: i32, %arg1: i32, %arg2: memref<32x512xbf16, #tpu.memory_space<vmem>>, %arg3: memref<512x128xbf16, #tpu.memory_space<vmem>>, %arg4: memref<32x128xf32, #tpu.memory_space<vmem>>, %arg5: memref<1x2x128xf32, #tpu.memory_space<vmem>>, %arg6: memref<32x128xf32, #tpu.memory_space<vmem>>) attributes {dimension_semantics = [#tpu.dimension_semantics<parallel>, #tpu.dimension_semantics<arbitrary>], iteration_bounds = array<i64: 1, 2>, scalar_prefetch = 0 : i64, scratch_operands = 1 : i64, tpu.core_type = #tpu.core_type<tc>, window_params = [{transform_indices = @transform_0, window_bounds = array<i64: 32, 512>}, {transform_indices = @transform_1, window_bounds = array<i64: 512, 128>}, {transform_indices = @transform_2, window_bounds = array<i64: 32, 128>}, {transform_indices = @transform_3, window_bounds = array<i64: 1, 2, 128>}]} {
    %c0_i32 = arith.constant 0 : i32
    %0 = arith.cmpi eq, %arg1, %c0_i32 : i32
    %1 = arith.extui %0 : i1 to i32
    %c0_i32_0 = arith.constant 0 : i32
    %2 = arith.cmpi ne, %1, %c0_i32_0 : i32
    scf.if %2 {
      %cst_9 = arith.constant 0.000000e+00 : f32
      %12 = vector.broadcast %cst_9 : f32 to vector<32x128xf32>
      %c0_10 = arith.constant 0 : index
      %c0_11 = arith.constant 0 : index
      %13 = vector.load %arg6[%c0_10, %c0_11] : memref<32x128xf32, #tpu.memory_space<vmem>>, vector<32x128xf32>
      tpu.vector_store %arg6[%c0_10, %c0_11], %12 {strides = array<i32>} : memref<32x128xf32, #tpu.memory_space<vmem>>, vector<32x128xf32>,
    } else {
    }
    %c0 = arith.constant 0 : index
    %c0_1 = arith.constant 0 : index
    %3 = vector.load %arg6[%c0, %c0_1] : memref<32x128xf32, #tpu.memory_space<vmem>>, vector<32x128xf32>
    %c0_2 = arith.constant 0 : index
    %c0_3 = arith.constant 0 : index
    %4 = vector.load %arg2[%c0_2, %c0_3] : memref<32x512xbf16, #tpu.memory_space<vmem>>, vector<32x512xbf16>
    %c0_4 = arith.constant 0 : index
    %c0_5 = arith.constant 0 : index
    %5 = vector.load %arg3[%c0_4, %c0_5] : memref<512x128xbf16, #tpu.memory_space<vmem>>, vector<512x128xbf16>
    %cst = arith.constant dense<0.000000e+00> : vector<32x128xf32>
    %6 = tpu.matmul %4, %5, %cst {dimension_numbers = #tpu.dot_dimension_numbers<[1], [0], [0], [1], [0, 0, 1, 1], [], []>} : vector<32x512xbf16>, vector<512x128xbf16>, vector<32x128xf32> -> vector<32x128xf32>
    %7 = arith.addf %3, %6 : vector<32x128xf32>
    %c0_6 = arith.constant 0 : index
    %c0_7 = arith.constant 0 : index
    %8 = vector.load %arg6[%c0_6, %c0_7] : memref<32x128xf32, #tpu.memory_space<vmem>>, vector<32x128xf32>
    tpu.vector_store %arg6[%c0_6, %c0_7], %7 {strides = array<i32>} : memref<32x128xf32, #tpu.memory_space<vmem>>, vector<32x128xf32>,
    %c1_i32 = arith.constant 1 : i32
    %9 = arith.cmpi eq, %arg1, %c1_i32 : i32
    %10 = arith.extui %9 : i1 to i32
    %c0_i32_8 = arith.constant 0 : i32
    %11 = arith.cmpi ne, %10, %c0_i32_8 : i32
    scf.if %11 {
      %c0_9 = arith.constant 0 : index
      %c0_10 = arith.constant 0 : index
      %12 = vector.load %arg6[%c0_9, %c0_10] : memref<32x128xf32, #tpu.memory_space<vmem>>, vector<32x128xf32>
      %c0_11 = arith.constant 0 : index
      %c0_12 = arith.constant 0 : index
      %13 = vector.load %arg4[%c0_11, %c0_12] : memref<32x128xf32, #tpu.memory_space<vmem>>, vector<32x128xf32>
      tpu.vector_store %arg4[%c0_11, %c0_12], %12 {strides = array<i32>} : memref<32x128xf32, #tpu.memory_space<vmem>>, vector<32x128xf32>,
      %cst_13 = arith.constant dense<0.000000e+00> : vector<128xf32>
      %14 = vector.multi_reduction <add>, %12, %cst_13 [0] : vector<32x128xf32> to vector<128xf32>
      %15 = vector.shape_cast %14 : vector<128xf32> to vector<1x128xf32>
      %c0_14 = arith.constant 0 : index
      %c0_15 = arith.constant 0 : index
      %c0_16 = arith.constant 0 : index
      %16 = vector.load %arg5[%c0_14, %c0_15, %c0_16] : memref<1x2x128xf32, #tpu.memory_space<vmem>>, vector<1x1x128xf32>
      %17 = vector.shape_cast %16 : vector<1x1x128xf32> to vector<1x128xf32>
      %18 = vector.shape_cast %15 : vector<1x128xf32> to vector<1x1x128xf32>
      tpu.vector_store %arg5[%c0_14, %c0_15, %c0_16], %18 {strides = array<i32>} : memref<1x2x128xf32, #tpu.memory_space<vmem>>, vector<1x1x128xf32>,
      %19 = arith.mulf %12, %12 : vector<32x128xf32>
      %cst_17 = arith.constant dense<0.000000e+00> : vector<128xf32>
      %20 = vector.multi_reduction <add>, %19, %cst_17 [0] : vector<32x128xf32> to vector<128xf32>
      %21 = vector.shape_cast %20 : vector<128xf32> to vector<1x128xf32>
      %c0_18 = arith.constant 0 : index
      %c1 = arith.constant 1 : index
      %c0_19 = arith.constant 0 : index
      %22 = vector.load %arg5[%c0_18, %c1, %c0_19] : memref<1x2x128xf32, #tpu.memory_space<vmem>>, vector<1x1x128xf32>
      %23 = vector.shape_cast %22 : vector<1x1x128xf32> to vector<1x128xf32>
      %24 = vector.shape_cast %21 : vector<1x128xf32> to vector<1x1x128xf32>
      tpu.vector_store %arg5[%c0_18, %c1, %c0_19], %24 {strides = array<i32>} : memref<1x2x128xf32, #tpu.memory_space<vmem>>, vector<1x1x128xf32>,
    } else {
    }
    return
  }
  func.func @transform_0(%arg0: i32, %arg1: i32) -> (i32, i32) {
    %c0_i32 = arith.constant 0 : i32
    return %arg0, %arg1 : i32, i32
  }
  func.func @transform_1(%arg0: i32, %arg1: i32) -> (i32, i32) {
    %c0_i32 = arith.constant 0 : i32
    %c0_i32_0 = arith.constant 0 : i32
    return %arg1, %c0_i32 : i32, i32
  }
  func.func @transform_2(%arg0: i32, %arg1: i32) -> (i32, i32) {
    %c0_i32 = arith.constant 0 : i32
    %c0_i32_0 = arith.constant 0 : i32
    return %arg0, %c0_i32 : i32, i32
  }
  func.func @transform_3(%arg0: i32, %arg1: i32) -> (i32, i32, i32) {
    %c0_i32 = arith.constant 0 : i32
    %c0_i32_0 = arith.constant 0 : i32
    %c0_i32_1 = arith.constant 0 : i32
    return %arg0, %c0_i32, %c0_i32_0 : i32, i32, i32
  }
}

module attributes {stable_mosaic.version = 11 : i64} {
  func.func @_scale_shift_act_kernel(%arg0: i32, %arg1: memref<32x128xf32, #tpu.memory_space<vmem>>, %arg2: memref<1x128xf32, #tpu.memory_space<vmem>>, %arg3: memref<1x128xf32, #tpu.memory_space<vmem>>, %arg4: memref<32x128xbf16, #tpu.memory_space<vmem>>) attributes {dimension_semantics = [#tpu.dimension_semantics<parallel>], iteration_bounds = array<i64: 1>, scalar_prefetch = 0 : i64, scratch_operands = 0 : i64, tpu.core_type = #tpu.core_type<tc>, window_params = [{transform_indices = @transform_0, window_bounds = array<i64: 32, 128>}, {pipeline_mode = #tpu.pipeline_mode<synchronous>, transform_indices = @transform_1, window_bounds = array<i64: 1, 128>}, {pipeline_mode = #tpu.pipeline_mode<synchronous>, transform_indices = @transform_2, window_bounds = array<i64: 1, 128>}, {transform_indices = @transform_3, window_bounds = array<i64: 32, 128>}]} {
    %c0 = arith.constant 0 : index
    %c0_0 = arith.constant 0 : index
    %0 = vector.load %arg1[%c0, %c0_0] : memref<32x128xf32, #tpu.memory_space<vmem>>, vector<32x128xf32>
    %c0_1 = arith.constant 0 : index
    %c0_2 = arith.constant 0 : index
    %1 = vector.load %arg2[%c0_1, %c0_2] : memref<1x128xf32, #tpu.memory_space<vmem>>, vector<1x128xf32>
    %2 = vector.broadcast %1 : vector<1x128xf32> to vector<32x128xf32>
    %3 = arith.mulf %0, %2 : vector<32x128xf32>
    %c0_3 = arith.constant 0 : index
    %c0_4 = arith.constant 0 : index
    %4 = vector.load %arg3[%c0_3, %c0_4] : memref<1x128xf32, #tpu.memory_space<vmem>>, vector<1x128xf32>
    %5 = vector.broadcast %4 : vector<1x128xf32> to vector<32x128xf32>
    %6 = arith.addf %3, %5 : vector<32x128xf32>
    %cst = arith.constant 0.000000e+00 : f32
    %7 = vector.broadcast %cst : f32 to vector<32x128xf32>
    %8 = arith.cmpf ogt, %6, %7 : vector<32x128xf32>
    %cst_5 = arith.constant 2.000000e-01 : f32
    %9 = vector.broadcast %cst_5 : f32 to vector<32x128xf32>
    %10 = arith.mulf %9, %6 : vector<32x128xf32>
    %11 = arith.select %8, %6, %10 : vector<32x128xi1>, vector<32x128xf32>
    %12 = arith.truncf %11 : vector<32x128xf32> to vector<32x128xbf16>
    %c0_6 = arith.constant 0 : index
    %c0_7 = arith.constant 0 : index
    %13 = vector.load %arg4[%c0_6, %c0_7] : memref<32x128xbf16, #tpu.memory_space<vmem>>, vector<32x128xbf16>
    tpu.vector_store %arg4[%c0_6, %c0_7], %12 {strides = array<i32>} : memref<32x128xbf16, #tpu.memory_space<vmem>>, vector<32x128xbf16>,
    return
  }
  func.func @transform_0(%arg0: i32) -> (i32, i32) {
    %c0_i32 = arith.constant 0 : i32
    %c0_i32_0 = arith.constant 0 : i32
    return %arg0, %c0_i32 : i32, i32
  }
  func.func @transform_1(%arg0: i32) -> (i32, i32) {
    %c0_i32 = arith.constant 0 : i32
    %c0_i32_0 = arith.constant 0 : i32
    %c0_i32_1 = arith.constant 0 : i32
    return %c0_i32, %c0_i32_0 : i32, i32
  }
  func.func @transform_2(%arg0: i32) -> (i32, i32) {
    %c0_i32 = arith.constant 0 : i32
    %c0_i32_0 = arith.constant 0 : i32
    %c0_i32_1 = arith.constant 0 : i32
    return %c0_i32, %c0_i32_0 : i32, i32
  }
  func.func @transform_3(%arg0: i32) -> (i32, i32) {
    %c0_i32 = arith.constant 0 : i32
    %c0_i32_0 = arith.constant 0 : i32
    return %arg0, %c0_i32 : i32, i32
  }
}

module attributes {stable_mosaic.version = 11 : i64} {
  func.func @_conv_gemm_kernel(%arg0: i32, %arg1: i32, %arg2: memref<16x512xbf16, #tpu.memory_space<vmem>>, %arg3: memref<512x256xbf16, #tpu.memory_space<vmem>>, %arg4: memref<16x256xf32, #tpu.memory_space<vmem>>, %arg5: memref<1x2x256xf32, #tpu.memory_space<vmem>>, %arg6: memref<16x256xf32, #tpu.memory_space<vmem>>) attributes {dimension_semantics = [#tpu.dimension_semantics<parallel>, #tpu.dimension_semantics<arbitrary>], iteration_bounds = array<i64: 1, 4>, scalar_prefetch = 0 : i64, scratch_operands = 1 : i64, tpu.core_type = #tpu.core_type<tc>, window_params = [{transform_indices = @transform_0, window_bounds = array<i64: 16, 512>}, {transform_indices = @transform_1, window_bounds = array<i64: 512, 256>}, {transform_indices = @transform_2, window_bounds = array<i64: 16, 256>}, {transform_indices = @transform_3, window_bounds = array<i64: 1, 2, 256>}]} {
    %c0_i32 = arith.constant 0 : i32
    %0 = arith.cmpi eq, %arg1, %c0_i32 : i32
    %1 = arith.extui %0 : i1 to i32
    %c0_i32_0 = arith.constant 0 : i32
    %2 = arith.cmpi ne, %1, %c0_i32_0 : i32
    scf.if %2 {
      %cst_9 = arith.constant 0.000000e+00 : f32
      %12 = vector.broadcast %cst_9 : f32 to vector<16x256xf32>
      %c0_10 = arith.constant 0 : index
      %c0_11 = arith.constant 0 : index
      %13 = vector.load %arg6[%c0_10, %c0_11] : memref<16x256xf32, #tpu.memory_space<vmem>>, vector<16x256xf32>
      tpu.vector_store %arg6[%c0_10, %c0_11], %12 {strides = array<i32>} : memref<16x256xf32, #tpu.memory_space<vmem>>, vector<16x256xf32>,
    } else {
    }
    %c0 = arith.constant 0 : index
    %c0_1 = arith.constant 0 : index
    %3 = vector.load %arg6[%c0, %c0_1] : memref<16x256xf32, #tpu.memory_space<vmem>>, vector<16x256xf32>
    %c0_2 = arith.constant 0 : index
    %c0_3 = arith.constant 0 : index
    %4 = vector.load %arg2[%c0_2, %c0_3] : memref<16x512xbf16, #tpu.memory_space<vmem>>, vector<16x512xbf16>
    %c0_4 = arith.constant 0 : index
    %c0_5 = arith.constant 0 : index
    %5 = vector.load %arg3[%c0_4, %c0_5] : memref<512x256xbf16, #tpu.memory_space<vmem>>, vector<512x256xbf16>
    %cst = arith.constant dense<0.000000e+00> : vector<16x256xf32>
    %6 = tpu.matmul %4, %5, %cst {dimension_numbers = #tpu.dot_dimension_numbers<[1], [0], [0], [1], [0, 0, 1, 1], [], []>} : vector<16x512xbf16>, vector<512x256xbf16>, vector<16x256xf32> -> vector<16x256xf32>
    %7 = arith.addf %3, %6 : vector<16x256xf32>
    %c0_6 = arith.constant 0 : index
    %c0_7 = arith.constant 0 : index
    %8 = vector.load %arg6[%c0_6, %c0_7] : memref<16x256xf32, #tpu.memory_space<vmem>>, vector<16x256xf32>
    tpu.vector_store %arg6[%c0_6, %c0_7], %7 {strides = array<i32>} : memref<16x256xf32, #tpu.memory_space<vmem>>, vector<16x256xf32>,
    %c3_i32 = arith.constant 3 : i32
    %9 = arith.cmpi eq, %arg1, %c3_i32 : i32
    %10 = arith.extui %9 : i1 to i32
    %c0_i32_8 = arith.constant 0 : i32
    %11 = arith.cmpi ne, %10, %c0_i32_8 : i32
    scf.if %11 {
      %c0_9 = arith.constant 0 : index
      %c0_10 = arith.constant 0 : index
      %12 = vector.load %arg6[%c0_9, %c0_10] : memref<16x256xf32, #tpu.memory_space<vmem>>, vector<16x256xf32>
      %c0_11 = arith.constant 0 : index
      %c0_12 = arith.constant 0 : index
      %13 = vector.load %arg4[%c0_11, %c0_12] : memref<16x256xf32, #tpu.memory_space<vmem>>, vector<16x256xf32>
      tpu.vector_store %arg4[%c0_11, %c0_12], %12 {strides = array<i32>} : memref<16x256xf32, #tpu.memory_space<vmem>>, vector<16x256xf32>,
      %cst_13 = arith.constant dense<0.000000e+00> : vector<256xf32>
      %14 = vector.multi_reduction <add>, %12, %cst_13 [0] : vector<16x256xf32> to vector<256xf32>
      %15 = vector.shape_cast %14 : vector<256xf32> to vector<1x256xf32>
      %c0_14 = arith.constant 0 : index
      %c0_15 = arith.constant 0 : index
      %c0_16 = arith.constant 0 : index
      %16 = vector.load %arg5[%c0_14, %c0_15, %c0_16] : memref<1x2x256xf32, #tpu.memory_space<vmem>>, vector<1x1x256xf32>
      %17 = vector.shape_cast %16 : vector<1x1x256xf32> to vector<1x256xf32>
      %18 = vector.shape_cast %15 : vector<1x256xf32> to vector<1x1x256xf32>
      tpu.vector_store %arg5[%c0_14, %c0_15, %c0_16], %18 {strides = array<i32>} : memref<1x2x256xf32, #tpu.memory_space<vmem>>, vector<1x1x256xf32>,
      %19 = arith.mulf %12, %12 : vector<16x256xf32>
      %cst_17 = arith.constant dense<0.000000e+00> : vector<256xf32>
      %20 = vector.multi_reduction <add>, %19, %cst_17 [0] : vector<16x256xf32> to vector<256xf32>
      %21 = vector.shape_cast %20 : vector<256xf32> to vector<1x256xf32>
      %c0_18 = arith.constant 0 : index
      %c1 = arith.constant 1 : index
      %c0_19 = arith.constant 0 : index
      %22 = vector.load %arg5[%c0_18, %c1, %c0_19] : memref<1x2x256xf32, #tpu.memory_space<vmem>>, vector<1x1x256xf32>
      %23 = vector.shape_cast %22 : vector<1x1x256xf32> to vector<1x256xf32>
      %24 = vector.shape_cast %21 : vector<1x256xf32> to vector<1x1x256xf32>
      tpu.vector_store %arg5[%c0_18, %c1, %c0_19], %24 {strides = array<i32>} : memref<1x2x256xf32, #tpu.memory_space<vmem>>, vector<1x1x256xf32>,
    } else {
    }
    return
  }
  func.func @transform_0(%arg0: i32, %arg1: i32) -> (i32, i32) {
    %c0_i32 = arith.constant 0 : i32
    return %arg0, %arg1 : i32, i32
  }
  func.func @transform_1(%arg0: i32, %arg1: i32) -> (i32, i32) {
    %c0_i32 = arith.constant 0 : i32
    %c0_i32_0 = arith.constant 0 : i32
    return %arg1, %c0_i32 : i32, i32
  }
  func.func @transform_2(%arg0: i32, %arg1: i32) -> (i32, i32) {
    %c0_i32 = arith.constant 0 : i32
    %c0_i32_0 = arith.constant 0 : i32
    return %arg0, %c0_i32 : i32, i32
  }
  func.func @transform_3(%arg0: i32, %arg1: i32) -> (i32, i32, i32) {
    %c0_i32 = arith.constant 0 : i32
    %c0_i32_0 = arith.constant 0 : i32
    %c0_i32_1 = arith.constant 0 : i32
    return %arg0, %c0_i32, %c0_i32_0 : i32, i32, i32
  }
}

module attributes {stable_mosaic.version = 11 : i64} {
  func.func @_scale_shift_act_kernel(%arg0: i32, %arg1: memref<16x256xf32, #tpu.memory_space<vmem>>, %arg2: memref<1x256xf32, #tpu.memory_space<vmem>>, %arg3: memref<1x256xf32, #tpu.memory_space<vmem>>, %arg4: memref<16x256xbf16, #tpu.memory_space<vmem>>) attributes {dimension_semantics = [#tpu.dimension_semantics<parallel>], iteration_bounds = array<i64: 1>, scalar_prefetch = 0 : i64, scratch_operands = 0 : i64, tpu.core_type = #tpu.core_type<tc>, window_params = [{transform_indices = @transform_0, window_bounds = array<i64: 16, 256>}, {pipeline_mode = #tpu.pipeline_mode<synchronous>, transform_indices = @transform_1, window_bounds = array<i64: 1, 256>}, {pipeline_mode = #tpu.pipeline_mode<synchronous>, transform_indices = @transform_2, window_bounds = array<i64: 1, 256>}, {transform_indices = @transform_3, window_bounds = array<i64: 16, 256>}]} {
    %c0 = arith.constant 0 : index
    %c0_0 = arith.constant 0 : index
    %0 = vector.load %arg1[%c0, %c0_0] : memref<16x256xf32, #tpu.memory_space<vmem>>, vector<16x256xf32>
    %c0_1 = arith.constant 0 : index
    %c0_2 = arith.constant 0 : index
    %1 = vector.load %arg2[%c0_1, %c0_2] : memref<1x256xf32, #tpu.memory_space<vmem>>, vector<1x256xf32>
    %2 = vector.broadcast %1 : vector<1x256xf32> to vector<16x256xf32>
    %3 = arith.mulf %0, %2 : vector<16x256xf32>
    %c0_3 = arith.constant 0 : index
    %c0_4 = arith.constant 0 : index
    %4 = vector.load %arg3[%c0_3, %c0_4] : memref<1x256xf32, #tpu.memory_space<vmem>>, vector<1x256xf32>
    %5 = vector.broadcast %4 : vector<1x256xf32> to vector<16x256xf32>
    %6 = arith.addf %3, %5 : vector<16x256xf32>
    %cst = arith.constant 0.000000e+00 : f32
    %7 = vector.broadcast %cst : f32 to vector<16x256xf32>
    %8 = arith.cmpf ogt, %6, %7 : vector<16x256xf32>
    %cst_5 = arith.constant 2.000000e-01 : f32
    %9 = vector.broadcast %cst_5 : f32 to vector<16x256xf32>
    %10 = arith.mulf %9, %6 : vector<16x256xf32>
    %11 = arith.select %8, %6, %10 : vector<16x256xi1>, vector<16x256xf32>
    %12 = arith.truncf %11 : vector<16x256xf32> to vector<16x256xbf16>
    %c0_6 = arith.constant 0 : index
    %c0_7 = arith.constant 0 : index
    %13 = vector.load %arg4[%c0_6, %c0_7] : memref<16x256xbf16, #tpu.memory_space<vmem>>, vector<16x256xbf16>
    tpu.vector_store %arg4[%c0_6, %c0_7], %12 {strides = array<i32>} : memref<16x256xbf16, #tpu.memory_space<vmem>>, vector<16x256xbf16>,
    return
  }
  func.func @transform_0(%arg0: i32) -> (i32, i32) {
    %c0_i32 = arith.constant 0 : i32
    %c0_i32_0 = arith.constant 0 : i32
    return %arg0, %c0_i32 : i32, i32
  }
  func.func @transform_1(%arg0: i32) -> (i32, i32) {
    %c0_i32 = arith.constant 0 : i32
    %c0_i32_0 = arith.constant 0 : i32
    %c0_i32_1 = arith.constant 0 : i32
    return %c0_i32, %c0_i32_0 : i32, i32
  }
  func.func @transform_2(%arg0: i32) -> (i32, i32) {
    %c0_i32 = arith.constant 0 : i32
    %c0_i32_0 = arith.constant 0 : i32
    %c0_i32_1 = arith.constant 0 : i32
    return %c0_i32, %c0_i32_0 : i32, i32
  }
  func.func @transform_3(%arg0: i32) -> (i32, i32) {
    %c0_i32 = arith.constant 0 : i32
    %c0_i32_0 = arith.constant 0 : i32
    return %arg0, %c0_i32 : i32, i32
  }
}

module attributes {stable_mosaic.version = 11 : i64} {
  func.func @_conv_gemm_kernel(%arg0: i32, %arg1: i32, %arg2: memref<16x512xbf16, #tpu.memory_space<vmem>>, %arg3: memref<512x512xbf16, #tpu.memory_space<vmem>>, %arg4: memref<16x512xf32, #tpu.memory_space<vmem>>, %arg5: memref<1x2x512xf32, #tpu.memory_space<vmem>>, %arg6: memref<16x512xf32, #tpu.memory_space<vmem>>) attributes {dimension_semantics = [#tpu.dimension_semantics<parallel>, #tpu.dimension_semantics<arbitrary>], iteration_bounds = array<i64: 1, 8>, scalar_prefetch = 0 : i64, scratch_operands = 1 : i64, tpu.core_type = #tpu.core_type<tc>, window_params = [{transform_indices = @transform_0, window_bounds = array<i64: 16, 512>}, {transform_indices = @transform_1, window_bounds = array<i64: 512, 512>}, {transform_indices = @transform_2, window_bounds = array<i64: 16, 512>}, {transform_indices = @transform_3, window_bounds = array<i64: 1, 2, 512>}]} {
    %c0_i32 = arith.constant 0 : i32
    %0 = arith.cmpi eq, %arg1, %c0_i32 : i32
    %1 = arith.extui %0 : i1 to i32
    %c0_i32_0 = arith.constant 0 : i32
    %2 = arith.cmpi ne, %1, %c0_i32_0 : i32
    scf.if %2 {
      %cst_9 = arith.constant 0.000000e+00 : f32
      %12 = vector.broadcast %cst_9 : f32 to vector<16x512xf32>
      %c0_10 = arith.constant 0 : index
      %c0_11 = arith.constant 0 : index
      %13 = vector.load %arg6[%c0_10, %c0_11] : memref<16x512xf32, #tpu.memory_space<vmem>>, vector<16x512xf32>
      tpu.vector_store %arg6[%c0_10, %c0_11], %12 {strides = array<i32>} : memref<16x512xf32, #tpu.memory_space<vmem>>, vector<16x512xf32>,
    } else {
    }
    %c0 = arith.constant 0 : index
    %c0_1 = arith.constant 0 : index
    %3 = vector.load %arg6[%c0, %c0_1] : memref<16x512xf32, #tpu.memory_space<vmem>>, vector<16x512xf32>
    %c0_2 = arith.constant 0 : index
    %c0_3 = arith.constant 0 : index
    %4 = vector.load %arg2[%c0_2, %c0_3] : memref<16x512xbf16, #tpu.memory_space<vmem>>, vector<16x512xbf16>
    %c0_4 = arith.constant 0 : index
    %c0_5 = arith.constant 0 : index
    %5 = vector.load %arg3[%c0_4, %c0_5] : memref<512x512xbf16, #tpu.memory_space<vmem>>, vector<512x512xbf16>
    %cst = arith.constant dense<0.000000e+00> : vector<16x512xf32>
    %6 = tpu.matmul %4, %5, %cst {dimension_numbers = #tpu.dot_dimension_numbers<[1], [0], [0], [1], [0, 0, 1, 1], [], []>} : vector<16x512xbf16>, vector<512x512xbf16>, vector<16x512xf32> -> vector<16x512xf32>
    %7 = arith.addf %3, %6 : vector<16x512xf32>
    %c0_6 = arith.constant 0 : index
    %c0_7 = arith.constant 0 : index
    %8 = vector.load %arg6[%c0_6, %c0_7] : memref<16x512xf32, #tpu.memory_space<vmem>>, vector<16x512xf32>
    tpu.vector_store %arg6[%c0_6, %c0_7], %7 {strides = array<i32>} : memref<16x512xf32, #tpu.memory_space<vmem>>, vector<16x512xf32>,
    %c7_i32 = arith.constant 7 : i32
    %9 = arith.cmpi eq, %arg1, %c7_i32 : i32
    %10 = arith.extui %9 : i1 to i32
    %c0_i32_8 = arith.constant 0 : i32
    %11 = arith.cmpi ne, %10, %c0_i32_8 : i32
    scf.if %11 {
      %c0_9 = arith.constant 0 : index
      %c0_10 = arith.constant 0 : index
      %12 = vector.load %arg6[%c0_9, %c0_10] : memref<16x512xf32, #tpu.memory_space<vmem>>, vector<16x512xf32>
      %c0_11 = arith.constant 0 : index
      %c0_12 = arith.constant 0 : index
      %13 = vector.load %arg4[%c0_11, %c0_12] : memref<16x512xf32, #tpu.memory_space<vmem>>, vector<16x512xf32>
      tpu.vector_store %arg4[%c0_11, %c0_12], %12 {strides = array<i32>} : memref<16x512xf32, #tpu.memory_space<vmem>>, vector<16x512xf32>,
      %cst_13 = arith.constant dense<0.000000e+00> : vector<512xf32>
      %14 = vector.multi_reduction <add>, %12, %cst_13 [0] : vector<16x512xf32> to vector<512xf32>
      %15 = vector.shape_cast %14 : vector<512xf32> to vector<1x512xf32>
      %c0_14 = arith.constant 0 : index
      %c0_15 = arith.constant 0 : index
      %c0_16 = arith.constant 0 : index
      %16 = vector.load %arg5[%c0_14, %c0_15, %c0_16] : memref<1x2x512xf32, #tpu.memory_space<vmem>>, vector<1x1x512xf32>
      %17 = vector.shape_cast %16 : vector<1x1x512xf32> to vector<1x512xf32>
      %18 = vector.shape_cast %15 : vector<1x512xf32> to vector<1x1x512xf32>
      tpu.vector_store %arg5[%c0_14, %c0_15, %c0_16], %18 {strides = array<i32>} : memref<1x2x512xf32, #tpu.memory_space<vmem>>, vector<1x1x512xf32>,
      %19 = arith.mulf %12, %12 : vector<16x512xf32>
      %cst_17 = arith.constant dense<0.000000e+00> : vector<512xf32>
      %20 = vector.multi_reduction <add>, %19, %cst_17 [0] : vector<16x512xf32> to vector<512xf32>
      %21 = vector.shape_cast %20 : vector<512xf32> to vector<1x512xf32>
      %c0_18 = arith.constant 0 : index
      %c1 = arith.constant 1 : index
      %c0_19 = arith.constant 0 : index
      %22 = vector.load %arg5[%c0_18, %c1, %c0_19] : memref<1x2x512xf32, #tpu.memory_space<vmem>>, vector<1x1x512xf32>
      %23 = vector.shape_cast %22 : vector<1x1x512xf32> to vector<1x512xf32>
      %24 = vector.shape_cast %21 : vector<1x512xf32> to vector<1x1x512xf32>
      tpu.vector_store %arg5[%c0_18, %c1, %c0_19], %24 {strides = array<i32>} : memref<1x2x512xf32, #tpu.memory_space<vmem>>, vector<1x1x512xf32>,
    } else {
    }
    return
  }
  func.func @transform_0(%arg0: i32, %arg1: i32) -> (i32, i32) {
    %c0_i32 = arith.constant 0 : i32
    return %arg0, %arg1 : i32, i32
  }
  func.func @transform_1(%arg0: i32, %arg1: i32) -> (i32, i32) {
    %c0_i32 = arith.constant 0 : i32
    %c0_i32_0 = arith.constant 0 : i32
    return %arg1, %c0_i32 : i32, i32
  }
  func.func @transform_2(%arg0: i32, %arg1: i32) -> (i32, i32) {
    %c0_i32 = arith.constant 0 : i32
    %c0_i32_0 = arith.constant 0 : i32
    return %arg0, %c0_i32 : i32, i32
  }
  func.func @transform_3(%arg0: i32, %arg1: i32) -> (i32, i32, i32) {
    %c0_i32 = arith.constant 0 : i32
    %c0_i32_0 = arith.constant 0 : i32
    %c0_i32_1 = arith.constant 0 : i32
    return %arg0, %c0_i32, %c0_i32_0 : i32, i32, i32
  }
}

module attributes {stable_mosaic.version = 11 : i64} {
  func.func @_scale_shift_act_kernel(%arg0: i32, %arg1: memref<16x512xf32, #tpu.memory_space<vmem>>, %arg2: memref<1x512xf32, #tpu.memory_space<vmem>>, %arg3: memref<1x512xf32, #tpu.memory_space<vmem>>, %arg4: memref<16x512xbf16, #tpu.memory_space<vmem>>) attributes {dimension_semantics = [#tpu.dimension_semantics<parallel>], iteration_bounds = array<i64: 1>, scalar_prefetch = 0 : i64, scratch_operands = 0 : i64, tpu.core_type = #tpu.core_type<tc>, window_params = [{transform_indices = @transform_0, window_bounds = array<i64: 16, 512>}, {pipeline_mode = #tpu.pipeline_mode<synchronous>, transform_indices = @transform_1, window_bounds = array<i64: 1, 512>}, {pipeline_mode = #tpu.pipeline_mode<synchronous>, transform_indices = @transform_2, window_bounds = array<i64: 1, 512>}, {transform_indices = @transform_3, window_bounds = array<i64: 16, 512>}]} {
    %c0 = arith.constant 0 : index
    %c0_0 = arith.constant 0 : index
    %0 = vector.load %arg1[%c0, %c0_0] : memref<16x512xf32, #tpu.memory_space<vmem>>, vector<16x512xf32>
    %c0_1 = arith.constant 0 : index
    %c0_2 = arith.constant 0 : index
    %1 = vector.load %arg2[%c0_1, %c0_2] : memref<1x512xf32, #tpu.memory_space<vmem>>, vector<1x512xf32>
    %2 = vector.broadcast %1 : vector<1x512xf32> to vector<16x512xf32>
    %3 = arith.mulf %0, %2 : vector<16x512xf32>
    %c0_3 = arith.constant 0 : index
    %c0_4 = arith.constant 0 : index
    %4 = vector.load %arg3[%c0_3, %c0_4] : memref<1x512xf32, #tpu.memory_space<vmem>>, vector<1x512xf32>
    %5 = vector.broadcast %4 : vector<1x512xf32> to vector<16x512xf32>
    %6 = arith.addf %3, %5 : vector<16x512xf32>
    %cst = arith.constant 0.000000e+00 : f32
    %7 = vector.broadcast %cst : f32 to vector<16x512xf32>
    %8 = arith.cmpf ogt, %6, %7 : vector<16x512xf32>
    %cst_5 = arith.constant 2.000000e-01 : f32
    %9 = vector.broadcast %cst_5 : f32 to vector<16x512xf32>
    %10 = arith.mulf %9, %6 : vector<16x512xf32>
    %11 = arith.select %8, %6, %10 : vector<16x512xi1>, vector<16x512xf32>
    %12 = arith.truncf %11 : vector<16x512xf32> to vector<16x512xbf16>
    %c0_6 = arith.constant 0 : index
    %c0_7 = arith.constant 0 : index
    %13 = vector.load %arg4[%c0_6, %c0_7] : memref<16x512xbf16, #tpu.memory_space<vmem>>, vector<16x512xbf16>
    tpu.vector_store %arg4[%c0_6, %c0_7], %12 {strides = array<i32>} : memref<16x512xbf16, #tpu.memory_space<vmem>>, vector<16x512xbf16>,
    return
  }
  func.func @transform_0(%arg0: i32) -> (i32, i32) {
    %c0_i32 = arith.constant 0 : i32
    %c0_i32_0 = arith.constant 0 : i32
    return %arg0, %c0_i32 : i32, i32
  }
  func.func @transform_1(%arg0: i32) -> (i32, i32) {
    %c0_i32 = arith.constant 0 : i32
    %c0_i32_0 = arith.constant 0 : i32
    %c0_i32_1 = arith.constant 0 : i32
    return %c0_i32, %c0_i32_0 : i32, i32
  }
  func.func @transform_2(%arg0: i32) -> (i32, i32) {
    %c0_i32 = arith.constant 0 : i32
    %c0_i32_0 = arith.constant 0 : i32
    %c0_i32_1 = arith.constant 0 : i32
    return %c0_i32, %c0_i32_0 : i32, i32
  }
  func.func @transform_3(%arg0: i32) -> (i32, i32) {
    %c0_i32 = arith.constant 0 : i32
    %c0_i32_0 = arith.constant 0 : i32
    return %arg0, %c0_i32 : i32, i32
  }
}

module attributes {stable_mosaic.version = 11 : i64} {
  func.func @_conv1x1_kernel(%arg0: i32, %arg1: memref<1x512xbf16, #tpu.memory_space<vmem>>, %arg2: memref<512x128xbf16, #tpu.memory_space<vmem>>, %arg3: memref<1x1xf32, #tpu.memory_space<vmem>>, %arg4: memref<1x128xf32, #tpu.memory_space<vmem>>) attributes {dimension_semantics = [#tpu.dimension_semantics<parallel>], iteration_bounds = array<i64: 1>, scalar_prefetch = 0 : i64, scratch_operands = 0 : i64, tpu.core_type = #tpu.core_type<tc>, window_params = [{pipeline_mode = #tpu.pipeline_mode<synchronous>, transform_indices = @transform_0, window_bounds = array<i64: 1, 512>}, {transform_indices = @transform_1, window_bounds = array<i64: 512, 128>}, {pipeline_mode = #tpu.pipeline_mode<synchronous>, transform_indices = @transform_2, window_bounds = array<i64: 1, 1>}, {transform_indices = @transform_3, window_bounds = array<i64: 1, 128>}]} {
    %c0 = arith.constant 0 : index
    %c0_0 = arith.constant 0 : index
    %0 = vector.load %arg1[%c0, %c0_0] : memref<1x512xbf16, #tpu.memory_space<vmem>>, vector<1x512xbf16>
    %c0_1 = arith.constant 0 : index
    %c0_2 = arith.constant 0 : index
    %1 = vector.load %arg2[%c0_1, %c0_2] : memref<512x128xbf16, #tpu.memory_space<vmem>>, vector<512x128xbf16>
    %cst = arith.constant dense<0.000000e+00> : vector<1x128xf32>
    %2 = tpu.matmul %0, %1, %cst {dimension_numbers = #tpu.dot_dimension_numbers<[1], [0], [0], [1], [0, 0, 1, 1], [], []>} : vector<1x512xbf16>, vector<512x128xbf16>, vector<1x128xf32> -> vector<1x128xf32>
    %c0_3 = arith.constant 0 : index
    %c0_4 = arith.constant 0 : index
    %3 = vector.load %arg3[%c0_3, %c0_4] : memref<1x1xf32, #tpu.memory_space<vmem>>, vector<1x1xf32>
    %4 = vector.broadcast %3 : vector<1x1xf32> to vector<1x128xf32>
    %5 = arith.addf %2, %4 : vector<1x128xf32>
    %c0_5 = arith.constant 0 : index
    %c0_6 = arith.constant 0 : index
    %6 = vector.load %arg4[%c0_5, %c0_6] : memref<1x128xf32, #tpu.memory_space<vmem>>, vector<1x128xf32>
    tpu.vector_store %arg4[%c0_5, %c0_6], %5 {strides = array<i32>} : memref<1x128xf32, #tpu.memory_space<vmem>>, vector<1x128xf32>,
    return
  }
  func.func @transform_0(%arg0: i32) -> (i32, i32) {
    %c0_i32 = arith.constant 0 : i32
    %c0_i32_0 = arith.constant 0 : i32
    %c0_i32_1 = arith.constant 0 : i32
    return %c0_i32, %c0_i32_0 : i32, i32
  }
  func.func @transform_1(%arg0: i32) -> (i32, i32) {
    %c0_i32 = arith.constant 0 : i32
    %c0_i32_0 = arith.constant 0 : i32
    return %c0_i32, %arg0 : i32, i32
  }
  func.func @transform_2(%arg0: i32) -> (i32, i32) {
    %c0_i32 = arith.constant 0 : i32
    %c0_i32_0 = arith.constant 0 : i32
    %c0_i32_1 = arith.constant 0 : i32
    return %c0_i32, %c0_i32_0 : i32, i32
  }
  func.func @transform_3(%arg0: i32) -> (i32, i32) {
    %c0_i32 = arith.constant 0 : i32
    %c0_i32_0 = arith.constant 0 : i32
    return %c0_i32, %arg0 : i32, i32
  }
}

</mosaic_0001>

<llo_original>
// kernel: patchgan_forward.8
$region0: #{patchgan_forward.8}
  #allocation0 [shape = 'u32[]', space=smem, size = 0x4, offset = 0x4, fixed_abs, tag = 'smem constant byte address 0x4 - core index']
  #allocation1 [shape = 'u32[144,128]{1,0:T(1,128)}', space=vmem, size = 0x12000, scoped, tag = 'internal scratch']
  #allocation2 [shape = 'f32[128,64]{1,0:T(8,128)}', space=vmem, size = 0x10000, scoped, tag = 'scratch operand']
  %s0 = inlined_call_operand.vmem [shape: bf16[128,64], index: 0, kind: input, shape index: {}]
  %s1 = inlined_call_operand.vmem [shape: bf16[64,64], index: 1, kind: input, shape index: {}]
  %s2 = inlined_call_operand.hbm [shape: f32[1,64], index: 2, kind: input, shape index: {}]
  %s3 = inlined_call_operand.vmem [shape: bf16[128,64], index: 3, kind: output, shape index: {}]
  %s4 = sld [smem:[#allocation0]]
  $region34: #{patchgan_forward.8} parent=0
    _
  %s6 = ssub.s32 1, %s4
  %s7 = scalar_select 0, %s6, %s4
  $region1: #{patchgan_forward.8} parent=0
    #allocation3 [shape = 'u8[512]{0}', space=vmem, size = 0x400, scoped, tag = 'input window, operand 2, single buffered']
    #allocation4 [shape = 's32[1]{0}', space=sflag, size = 0x4, scoped, tag = 'scoped memory for patchgan_forward.8']
    %8 = vsyncpa [#allocation4], 0
    // Predicated region
    $region2: #{patchgan_forward.8} parent=1 // pred_check
      _
    $region3: #{patchgan_forward.8} parent=1 // pred_check_branch
      %10 = sbr.rel (0) target = $region5
    $region4: #{patchgan_forward.8} parent=1 // pred_region
      _
    $region5: #{patchgan_forward.8} parent=1 // pred_fallthru
      _
    // Predicated region
    $region6: #{patchgan_forward.8} parent=1 // pred_check
      _
    $region7: #{patchgan_forward.8} parent=1 // pred_check_branch
      %12 = sbr.rel (0) target = $region9
    $region8: #{patchgan_forward.8} parent=1 // pred_region
      _
    $region9: #{patchgan_forward.8} parent=1 // pred_fallthru
      _
    // Predicated region
    $region10: #{patchgan_forward.8} parent=1 // pred_check
      _
    $region11: #{patchgan_forward.8} parent=1 // pred_check_branch
      %14 = sbr.rel (0) target = $region13
    $region12: #{patchgan_forward.8} parent=1 // pred_region
      %s16 = ssub.s32 16, 16
      %17 = vsyncadd [#allocation4], %s16
      %s19 = sshll.u32 [#allocation3], 4
      %s20 = int_to_ptr.vmem [resolvable:$true] %s19
      %22 = dma.hbm_to_vmem [thread:$0]  %s2, 16, %s20, [#allocation4]
    $region13: #{patchgan_forward.8} parent=1 // pred_fallthru
      _
    // Predicated region
    $region14: #{patchgan_forward.8} parent=1 // pred_check
      _
    $region15: #{patchgan_forward.8} parent=1 // pred_check_branch
      %24 = sbr.rel (0) target = $region17
    $region16: #{patchgan_forward.8} parent=1 // pred_region
      %25 = dma.done [#allocation4], 16
    $region17: #{patchgan_forward.8} parent=1 // pred_fallthru
      _
    %p27 = scmp.eq.s32.totalorder 0, 0
    // Predicated region
    $region18: #{patchgan_forward.8} parent=1 // pred_check
      %p28 = pneg %p27
    $region19: #{patchgan_forward.8} parent=1 // pred_check_branch
      %30 = sbr.rel (%p28) target = $region21
    $region20: #{patchgan_forward.8} parent=1 // pred_region
      %vm31 = vcmask 523264
      %32 = vst.msk [vmem:[#allocation2] sm:$0xff] %vm31, 0.0
      %33 = vst.msk [vmem:[#allocation2 + $0x8] sm:$0xff] %vm31, 0.0
      %34 = vst.msk [vmem:[#allocation2 + $0x10] sm:$0xff] %vm31, 0.0
      %35 = vst.msk [vmem:[#allocation2 + $0x18] sm:$0xff] %vm31, 0.0
      %36 = vst.msk [vmem:[#allocation2 + $0x20] sm:$0xff] %vm31, 0.0
      %37 = vst.msk [vmem:[#allocation2 + $0x28] sm:$0xff] %vm31, 0.0
      %38 = vst.msk [vmem:[#allocation2 + $0x30] sm:$0xff] %vm31, 0.0
      %39 = vst.msk [vmem:[#allocation2 + $0x38] sm:$0xff] %vm31, 0.0
      %40 = vst.msk [vmem:[#allocation2 + $0x40] sm:$0xff] %vm31, 0.0
      %41 = vst.msk [vmem:[#allocation2 + $0x48] sm:$0xff] %vm31, 0.0
      %42 = vst.msk [vmem:[#allocation2 + $0x50] sm:$0xff] %vm31, 0.0
      %43 = vst.msk [vmem:[#allocation2 + $0x58] sm:$0xff] %vm31, 0.0
      %44 = vst.msk [vmem:[#allocation2 + $0x60] sm:$0xff] %vm31, 0.0
      %45 = vst.msk [vmem:[#allocation2 + $0x68] sm:$0xff] %vm31, 0.0
      %46 = vst.msk [vmem:[#allocation2 + $0x70] sm:$0xff] %vm31, 0.0
      %47 = vst.msk [vmem:[#allocation2 + $0x78] sm:$0xff] %vm31, 0.0
    $region21: #{patchgan_forward.8} parent=1 // pred_fallthru
      _
    %v48 = vld [vmem:[#allocation2] sm:$0xff]
    %v49 = vld [vmem:[#allocation2 + $0x8] sm:$0xff]
    %v50 = vld [vmem:[#allocation2 + $0x10] sm:$0xff]
    %v51 = vld [vmem:[#allocation2 + $0x18] sm:$0xff]
    %v52 = vld [vmem:[#allocation2 + $0x20] sm:$0xff]
    %v53 = vld [vmem:[#allocation2 + $0x28] sm:$0xff]
    %v54 = vld [vmem:[#allocation2 + $0x30] sm:$0xff]
    %v55 = vld [vmem:[#allocation2 + $0x38] sm:$0xff]
    %v56 = vld [vmem:[#allocation2 + $0x40] sm:$0xff]
    %v57 = vld [vmem:[#allocation2 + $0x48] sm:$0xff]
    %v58 = vld [vmem:[#allocation2 + $0x50] sm:$0xff]
    %v59 = vld [vmem:[#allocation2 + $0x58] sm:$0xff]
    %v60 = vld [vmem:[#allocation2 + $0x60] sm:$0xff]
    %v61 = vld [vmem:[#allocation2 + $0x68] sm:$0xff]
    %v62 = vld [vmem:[#allocation2 + $0x70] sm:$0xff]
    %v63 = vld [vmem:[#allocation2 + $0x78] sm:$0xff]
    %v64 = vld [vmem:[%s0] sm:$0xf]
    %v65 = vld [vmem:[%s0 + $0x4] sm:$0xf]
    %v66 = vld [vmem:[%s0 + $0x8] sm:$0xf]
    %v67 = vld [vmem:[%s0 + $0xc] sm:$0xf]
    %v68 = vld [vmem:[%s0 + $0x10] sm:$0xf]
    %v69 = vld [vmem:[%s0 + $0x14] sm:$0xf]
    %v70 = vld [vmem:[%s0 + $0x18] sm:$0xf]
    %v71 = vld [vmem:[%s0 + $0x1c] sm:$0xf]
    %v72 = vld [vmem:[%s0 + $0x20] sm:$0xf]
    %v73 = vld [vmem:[%s0 + $0x24] sm:$0xf]
    %v74 = vld [vmem:[%s0 + $0x28] sm:$0xf]
    %v75 = vld [vmem:[%s0 + $0x2c] sm:$0xf]
    %v76 = vld [vmem:[%s0 + $0x30] sm:$0xf]
    %v77 = vld [vmem:[%s0 + $0x34] sm:$0xf]
    %v78 = vld [vmem:[%s0 + $0x38] sm:$0xf]
    %v79 = vld [vmem:[%s0 + $0x3c] sm:$0xf]
    %v80 = vld [vmem:[%s1] sm:$0xf]
    %v81 = vld [vmem:[%s1 + $0x4] sm:$0xf]
    %v82 = vld [vmem:[%s1 + $0x8] sm:$0xf]
    %v83 = vld [vmem:[%s1 + $0xc] sm:$0xf]
    %v84 = vld [vmem:[%s1 + $0x10] sm:$0xf]
    %v85 = vld [vmem:[%s1 + $0x14] sm:$0xf]
    %v86 = vld [vmem:[%s1 + $0x18] sm:$0xf]
    %v87 = vld [vmem:[%s1 + $0x1c] sm:$0xf]
    %v104 = vunpack.c.l.b16 %v64
    %v105 = vunpack.c.l.b16 %v65
    %v106 = vunpack.c.l.b16 %v66
    %v107 = vunpack.c.l.b16 %v67
    %v108 = vunpack.c.l.b16 %v68
    %v109 = vunpack.c.l.b16 %v69
    %v110 = vunpack.c.l.b16 %v70
    %v111 = vunpack.c.l.b16 %v71
    %v112 = vunpack.c.l.b16 %v72
    %v113 = vunpack.c.l.b16 %v73
    %v114 = vunpack.c.l.b16 %v74
    %v115 = vunpack.c.l.b16 %v75
    %v116 = vunpack.c.l.b16 %v76
    %v117 = vunpack.c.l.b16 %v77
    %v118 = vunpack.c.l.b16 %v78
    %v119 = vunpack.c.l.b16 %v79
    %v120 = vpack.c.b16 %v105, %v104
    %v121 = vpack.c.b16 %v107, %v106
    %v122 = vpack.c.b16 %v109, %v108
    %v123 = vpack.c.b16 %v111, %v110
    %v124 = vpack.c.b16 %v113, %v112
    %v125 = vpack.c.b16 %v115, %v114
    %v126 = vpack.c.b16 %v117, %v116
    %v127 = vpack.c.b16 %v119, %v118
    %v136 = vunpack.c.l.b16 %v80
    %v137 = vunpack.c.l.b16 %v81
    %v138 = vunpack.c.l.b16 %v82
    %v139 = vunpack.c.l.b16 %v83
    %v140 = vunpack.c.l.b16 %v84
    %v141 = vunpack.c.l.b16 %v85
    %v142 = vunpack.c.l.b16 %v86
    %v143 = vunpack.c.l.b16 %v87
    %v144 = vpack.c.b16 %v137, %v136
    %v145 = vpack.c.b16 %v139, %v138
    %v146 = vpack.c.b16 %v141, %v140
    %v147 = vpack.c.b16 %v143, %v142
    %vm152 = vcmask 523264
    %v154 = vsel %vm152, %v120, 0
    %v157 = vsel %vm152, %v121, 0
    %v160 = vsel %vm152, %v122, 0
    %v163 = vsel %vm152, %v123, 0
    %v166 = vsel %vm152, %v124, 0
    %v169 = vsel %vm152, %v125, 0
    %v172 = vsel %vm152, %v126, 0
    %v175 = vsel %vm152, %v127, 0
    %177 = vmatprep.subr.bf16.mxu0 0
    %178 = vmatpush1.bf16.msra.mxu0 %v144
    %179 = vmatprep.subr.bf16.mxu0 0
    %180 = vmatpush1.bf16.msra.mxu0 %v145
    %181 = vmatprep.subr.bf16.mxu0 0
    %182 = vmatpush1.bf16.msra.mxu0 %v146
    %183 = vmatprep.subr.bf16.mxu0 0
    %184 = vmatpush1.bf16.msra.mxu0 %v147
    %185 = vmatprep.subr.bf16.mxu0 0
    %186 = vmatpush1.bf16.msra.mxu0 0
    %187 = vmatprep.subr.bf16.mxu0 0
    %188 = vmatpush1.bf16.msra.mxu0 0
    %189 = vmatprep.subr.bf16.mxu0 0
    %190 = vmatpush1.bf16.msra.mxu0 0
    %191 = vmatprep.subr.bf16.mxu0 0
    %192 = vmatpush1.bf16.msra.mxu0 0
    %193 = vmatprep.subr.bf16.mxu0 0
    %194 = vmatpush1.bf16.msra.mxu0 0
    %195 = vmatprep.subr.bf16.mxu0 0
    %196 = vmatpush1.bf16.msra.mxu0 0
    %197 = vmatprep.subr.bf16.mxu0 0
    %198 = vmatpush1.bf16.msra.mxu0 0
    %199 = vmatprep.subr.bf16.mxu0 0
    %200 = vmatpush1.bf16.msra.mxu0 0
    %201 = vmatprep.subr.bf16.mxu0 0
    %202 = vmatpush1.bf16.msra.mxu0 0
    %203 = vmatprep.subr.bf16.mxu0 0
    %204 = vmatpush1.bf16.msra.mxu0 0
    %205 = vmatprep.subr.bf16.mxu0 0
    %206 = vmatpush1.bf16.msra.mxu0 0
    %207 = vmatprep.subr.bf16.mxu0 0
    %208 = vmatpush1.bf16.msra.mxu0 0
    %209 = vmatprep.mubr.bf16.mxu0 0
    %210 = vmatmul.mubr.bf16.gmra.mrb[0].mxu0 %v154
    %v211 = vpop.f32.mrb[0].mxu0
    %v212 = vadd.f32 0.0, %v211
    %v213 = vpop.f32.mrb[0].mxu0
    %v214 = vpop.f32.mrb[0].mxu0
    %v215 = vadd.f32 0.0, %v214
    %v216 = vpop.f32.mrb[0].mxu0
    %217 = vmatprep.mubr.bf16.mxu0 0
    %218 = vmatmul.mubr.bf16.gmra.mrb[0].mxu0 %v157
    %v219 = vpop.f32.mrb[0].mxu0
    %v220 = vadd.f32 0.0, %v219
    %v221 = vpop.f32.mrb[0].mxu0
    %v222 = vpop.f32.mrb[0].mxu0
    %v223 = vadd.f32 0.0, %v222
    %v224 = vpop.f32.mrb[0].mxu0
    %225 = vmatprep.mubr.bf16.mxu0 0
    %226 = vmatmul.mubr.bf16.gmra.mrb[0].mxu0 %v160
    %v227 = vpop.f32.mrb[0].mxu0
    %v228 = vadd.f32 0.0, %v227
    %v229 = vpop.f32.mrb[0].mxu0
    %v230 = vpop.f32.mrb[0].mxu0
    %v231 = vadd.f32 0.0, %v230
    %v232 = vpop.f32.mrb[0].mxu0
    %233 = vmatprep.mubr.bf16.mxu0 0
    %234 = vmatmul.mubr.bf16.gmra.mrb[0].mxu0 %v163
    %v235 = vpop.f32.mrb[0].mxu0
    %v236 = vadd.f32 0.0, %v235
    %v237 = vpop.f32.mrb[0].mxu0
    %v238 = vpop.f32.mrb[0].mxu0
    %v239 = vadd.f32 0.0, %v238
    %v240 = vpop.f32.mrb[0].mxu0
    %241 = vmatprep.mubr.bf16.mxu0 0
    %242 = vmatmul.mubr.bf16.gmra.mrb[0].mxu0 %v166
    %v243 = vpop.f32.mrb[0].mxu0
    %v244 = vadd.f32 0.0, %v243
    %v245 = vpop.f32.mrb[0].mxu0
    %v246 = vpop.f32.mrb[0].mxu0
    %v247 = vadd.f32 0.0, %v246
    %v248 = vpop.f32.mrb[0].mxu0
    %249 = vmatprep.mubr.bf16.mxu0 0
    %250 = vmatmul.mubr.bf16.gmra.mrb[0].mxu0 %v169
    %v251 = vpop.f32.mrb[0].mxu0
    %v252 = vadd.f32 0.0, %v251
    %v253 = vpop.f32.mrb[0].mxu0
    %v254 = vpop.f32.mrb[0].mxu0
    %v255 = vadd.f32 0.0, %v254
    %v256 = vpop.f32.mrb[0].mxu0
    %257 = vmatprep.mubr.bf16.mxu0 0
    %258 = vmatmul.mubr.bf16.gmra.mrb[0].mxu0 %v172
    %v259 = vpop.f32.mrb[0].mxu0
    %v260 = vadd.f32 0.0, %v259
    %v261 = vpop.f32.mrb[0].mxu0
    %v262 = vpop.f32.mrb[0].mxu0
    %v263 = vadd.f32 0.0, %v262
    %v264 = vpop.f32.mrb[0].mxu0
    %265 = vmatprep.mubr.bf16.mxu0 0
    %266 = vmatmul.mubr.bf16.gmra.mrb[0].mxu0 %v175
    %v267 = vpop.f32.mrb[0].mxu0
    %v268 = vadd.f32 0.0, %v267
    %v269 = vpop.f32.mrb[0].mxu0
    %v270 = vpop.f32.mrb[0].mxu0
    %v271 = vadd.f32 0.0, %v270
    %v272 = vpop.f32.mrb[0].mxu0
    %273 = vdwg.mxu0
    %v274 = vadd.f32 %v48, %v212
    %v275 = vadd.f32 %v49, %v215
    %v276 = vadd.f32 %v50, %v220
    %v277 = vadd.f32 %v51, %v223
    %v278 = vadd.f32 %v52, %v228
    %v279 = vadd.f32 %v53, %v231
    %v280 = vadd.f32 %v54, %v236
    %v281 = vadd.f32 %v55, %v239
    %v282 = vadd.f32 %v56, %v244
    %v283 = vadd.f32 %v57, %v247
    %v284 = vadd.f32 %v58, %v252
    %v285 = vadd.f32 %v59, %v255
    %v286 = vadd.f32 %v60, %v260
    %v287 = vadd.f32 %v61, %v263
    %v288 = vadd.f32 %v62, %v268
    %v289 = vadd.f32 %v63, %v271
    %290 = vst.msk [vmem:[#allocation2] sm:$0xff] %vm152, %v274
    %291 = vst.msk [vmem:[#allocation2 + $0x8] sm:$0xff] %vm152, %v275
    %292 = vst.msk [vmem:[#allocation2 + $0x10] sm:$0xff] %vm152, %v276
    %293 = vst.msk [vmem:[#allocation2 + $0x18] sm:$0xff] %vm152, %v277
    %294 = vst.msk [vmem:[#allocation2 + $0x20] sm:$0xff] %vm152, %v278
    %295 = vst.msk [vmem:[#allocation2 + $0x28] sm:$0xff] %vm152, %v279
    %296 = vst.msk [vmem:[#allocation2 + $0x30] sm:$0xff] %vm152, %v280
    %297 = vst.msk [vmem:[#allocation2 + $0x38] sm:$0xff] %vm152, %v281
    %298 = vst.msk [vmem:[#allocation2 + $0x40] sm:$0xff] %vm152, %v282
    %299 = vst.msk [vmem:[#allocation2 + $0x48] sm:$0xff] %vm152, %v283
    %300 = vst.msk [vmem:[#allocation2 + $0x50] sm:$0xff] %vm152, %v284
    %301 = vst.msk [vmem:[#allocation2 + $0x58] sm:$0xff] %vm152, %v285
    %302 = vst.msk [vmem:[#allocation2 + $0x60] sm:$0xff] %vm152, %v286
    %303 = vst.msk [vmem:[#allocation2 + $0x68] sm:$0xff] %vm152, %v287
    %304 = vst.msk [vmem:[#allocation2 + $0x70] sm:$0xff] %vm152, %v288
    %305 = vst.msk [vmem:[#allocation2 + $0x78] sm:$0xff] %vm152, %v289
    // Predicated region
    $region22: #{patchgan_forward.8} parent=1 // pred_check
      %p306 = pneg %p27
    $region23: #{patchgan_forward.8} parent=1 // pred_check_branch
      %308 = sbr.rel (%p306) target = $region25
    $region24: #{patchgan_forward.8} parent=1 // pred_region
      %v309 = vld [vmem:[#allocation2] sm:$0xff]
      %v310 = vld [vmem:[#allocation2 + $0x8] sm:$0xff]
      %v311 = vld [vmem:[#allocation2 + $0x10] sm:$0xff]
      %v312 = vld [vmem:[#allocation2 + $0x18] sm:$0xff]
      %v313 = vld [vmem:[#allocation2 + $0x20] sm:$0xff]
      %v314 = vld [vmem:[#allocation2 + $0x28] sm:$0xff]
      %v315 = vld [vmem:[#allocation2 + $0x30] sm:$0xff]
      %v316 = vld [vmem:[#allocation2 + $0x38] sm:$0xff]
      %v317 = vld [vmem:[#allocation2 + $0x40] sm:$0xff]
      %v318 = vld [vmem:[#allocation2 + $0x48] sm:$0xff]
      %v319 = vld [vmem:[#allocation2 + $0x50] sm:$0xff]
      %v320 = vld [vmem:[#allocation2 + $0x58] sm:$0xff]
      %v321 = vld [vmem:[#allocation2 + $0x60] sm:$0xff]
      %v322 = vld [vmem:[#allocation2 + $0x68] sm:$0xff]
      %v323 = vld [vmem:[#allocation2 + $0x70] sm:$0xff]
      %v324 = vld [vmem:[#allocation2 + $0x78] sm:$0xff]
      %v325 = vld [vmem:[#allocation3] sm:$0x1]
      %v327 = vlaneseq
      %v328 = vshrl.u32 %v327, 7
      %v329 = vsub.s32 0, %v328
      %v330 = vrot.slane %v325, %v329
      %v332 = vadd.f32 %v309, %v330
      %v333 = vadd.f32 %v310, %v330
      %v334 = vadd.f32 %v311, %v330
      %v335 = vadd.f32 %v312, %v330
      %v336 = vadd.f32 %v313, %v330
      %v337 = vadd.f32 %v314, %v330
      %v338 = vadd.f32 %v315, %v330
      %v339 = vadd.f32 %v316, %v330
      %v340 = vadd.f32 %v317, %v330
      %v341 = vadd.f32 %v318, %v330
      %v342 = vadd.f32 %v319, %v330
      %v343 = vadd.f32 %v320, %v330
      %v344 = vadd.f32 %v321, %v330
      %v345 = vadd.f32 %v322, %v330
      %v346 = vadd.f32 %v323, %v330
      %v347 = vadd.f32 %v324, %v330
      %vm348 = vcmp.gt.f32.partialorder %v332, 0.0
      %vm349 = vcmp.gt.f32.partialorder %v333, 0.0
      %vm350 = vcmp.gt.f32.partialorder %v334, 0.0
      %vm351 = vcmp.gt.f32.partialorder %v335, 0.0
      %vm352 = vcmp.gt.f32.partialorder %v336, 0.0
      %vm353 = vcmp.gt.f32.partialorder %v337, 0.0
      %vm354 = vcmp.gt.f32.partialorder %v338, 0.0
      %vm355 = vcmp.gt.f32.partialorder %v339, 0.0
      %vm356 = vcmp.gt.f32.partialorder %v340, 0.0
      %vm357 = vcmp.gt.f32.partialorder %v341, 0.0
      %vm358 = vcmp.gt.f32.partialorder %v342, 0.0
      %vm359 = vcmp.gt.f32.partialorder %v343, 0.0
      %vm360 = vcmp.gt.f32.partialorder %v344, 0.0
      %vm361 = vcmp.gt.f32.partialorder %v345, 0.0
      %vm362 = vcmp.gt.f32.partialorder %v346, 0.0
      %vm363 = vcmp.gt.f32.partialorder %v347, 0.0
      %v364 = vmul.f32 %v332, 0.2
      %v365 = vmul.f32 %v333, 0.2
      %v366 = vmul.f32 %v334, 0.2
      %v367 = vmul.f32 %v335, 0.2
      %v368 = vmul.f32 %v336, 0.2
      %v369 = vmul.f32 %v337, 0.2
      %v370 = vmul.f32 %v338, 0.2
      %v371 = vmul.f32 %v339, 0.2
      %v372 = vmul.f32 %v340, 0.2
      %v373 = vmul.f32 %v341, 0.2
      %v374 = vmul.f32 %v342, 0.2
      %v375 = vmul.f32 %v343, 0.2
      %v376 = vmul.f32 %v344, 0.2
      %v377 = vmul.f32 %v345, 0.2
      %v378 = vmul.f32 %v346, 0.2
      %v379 = vmul.f32 %v347, 0.2
      %v380 = vsel %vm348, %v332, %v364
      %v381 = vsel %vm349, %v333, %v365
      %v382 = vsel %vm350, %v334, %v366
      %v383 = vsel %vm351, %v335, %v367
      %v384 = vsel %vm352, %v336, %v368
      %v385 = vsel %vm353, %v337, %v369
      %v386 = vsel %vm354, %v338, %v370
      %v387 = vsel %vm355, %v339, %v371
      %v388 = vsel %vm356, %v340, %v372
      %v389 = vsel %vm357, %v341, %v373
      %v390 = vsel %vm358, %v342, %v374
      %v391 = vsel %vm359, %v343, %v375
      %v392 = vsel %vm360, %v344, %v376
      %v393 = vsel %vm361, %v345, %v377
      %v394 = vsel %vm362, %v346, %v378
      %v395 = vsel %vm363, %v347, %v379
      %v396 = vpack.c.bf16 %v381, %v380
      %v397 = vpack.c.bf16 %v383, %v382
      %v398 = vpack.c.bf16 %v385, %v384
      %v399 = vpack.c.bf16 %v387, %v386
      %v400 = vpack.c.bf16 %v389, %v388
      %v401 = vpack.c.bf16 %v391, %v390
      %v402 = vpack.c.bf16 %v393, %v392
      %v403 = vpack.c.bf16 %v395, %v394
      %v412 = vunpack.c.l.b16 %v396
      %v413 = vunpack.c.h.b16 %v396
      %v414 = vunpack.c.l.b16 %v397
      %v415 = vunpack.c.h.b16 %v397
      %v416 = vunpack.c.l.b16 %v398
      %v417 = vunpack.c.h.b16 %v398
      %v418 = vunpack.c.l.b16 %v399
      %v419 = vunpack.c.h.b16 %v399
      %v420 = vunpack.c.l.b16 %v400
      %v421 = vunpack.c.h.b16 %v400
      %v422 = vunpack.c.l.b16 %v401
      %v423 = vunpack.c.h.b16 %v401
      %v424 = vunpack.c.l.b16 %v402
      %v425 = vunpack.c.h.b16 %v402
      %v426 = vunpack.c.l.b16 %v403
      %v427 = vunpack.c.h.b16 %v403
      %v428 = vpack.c.b16 %v412, %v412
      %v429 = vpack.c.b16 %v413, %v413
      %v430 = vpack.c.b16 %v414, %v414
      %v431 = vpack.c.b16 %v415, %v415
      %v432 = vpack.c.b16 %v416, %v416
      %v433 = vpack.c.b16 %v417, %v417
      %v434 = vpack.c.b16 %v418, %v418
      %v435 = vpack.c.b16 %v419, %v419
      %v436 = vpack.c.b16 %v420, %v420
      %v437 = vpack.c.b16 %v421, %v421
      %v438 = vpack.c.b16 %v422, %v422
      %v439 = vpack.c.b16 %v423, %v423
      %v440 = vpack.c.b16 %v424, %v424
      %v441 = vpack.c.b16 %v425, %v425
      %v442 = vpack.c.b16 %v426, %v426
      %v443 = vpack.c.b16 %v427, %v427
      %vm460 = vcmask 519168
      %461 = vst.msk [vmem:[%s3] sm:$0xf] %vm460, %v428
      %462 = vst.msk [vmem:[%s3 + $0x4] sm:$0xf] %vm460, %v429
      %463 = vst.msk [vmem:[%s3 + $0x8] sm:$0xf] %vm460, %v430
      %464 = vst.msk [vmem:[%s3 + $0xc] sm:$0xf] %vm460, %v431
      %465 = vst.msk [vmem:[%s3 + $0x10] sm:$0xf] %vm460, %v432
      %466 = vst.msk [vmem:[%s3 + $0x14] sm:$0xf] %vm460, %v433
      %467 = vst.msk [vmem:[%s3 + $0x18] sm:$0xf] %vm460, %v434
      %468 = vst.msk [vmem:[%s3 + $0x1c] sm:$0xf] %vm460, %v435
      %469 = vst.msk [vmem:[%s3 + $0x20] sm:$0xf] %vm460, %v436
      %470 = vst.msk [vmem:[%s3 + $0x24] sm:$0xf] %vm460, %v437
      %471 = vst.msk [vmem:[%s3 + $0x28] sm:$0xf] %vm460, %v438
      %472 = vst.msk [vmem:[%s3 + $0x2c] sm:$0xf] %vm460, %v439
      %473 = vst.msk [vmem:[%s3 + $0x30] sm:$0xf] %vm460, %v440
      %474 = vst.msk [vmem:[%s3 + $0x34] sm:$0xf] %vm460, %v441
      %475 = vst.msk [vmem:[%s3 + $0x38] sm:$0xf] %vm460, %v442
      %476 = vst.msk [vmem:[%s3 + $0x3c] sm:$0xf] %vm460, %v443
    $region25: #{patchgan_forward.8} parent=1 // pred_fallthru
      _
    // Predicated region
    $region26: #{patchgan_forward.8} parent=1 // pred_check
      _
    $region27: #{patchgan_forward.8} parent=1 // pred_check_branch
      %478 = sbr.rel (0) target = $region29
    $region28: #{patchgan_forward.8} parent=1 // pred_region
      _
    $region29: #{patchgan_forward.8} parent=1 // pred_fallthru
      _
    // Predicated region
    $region30: #{patchgan_forward.8} parent=1 // pred_check
      _
    $region31: #{patchgan_forward.8} parent=1 // pred_check_branch
      %480 = sbr.rel (0) target = $region33
    $region32: #{patchgan_forward.8} parent=1 // pred_region
      _
    $region33: #{patchgan_forward.8} parent=1 // pred_fallthru
      _
    %481 = vsyncpa [#allocation4], 1

// kernel: patchgan_forward.9
$region0: #{patchgan_forward.9}
  #allocation0 [shape = 'u32[]', space=smem, size = 0x4, offset = 0x4, fixed_abs, tag = 'smem constant byte address 0x4 - core index']
  #allocation1 [shape = 'u32[144,128]{1,0:T(1,128)}', space=vmem, size = 0x12000, scoped, tag = 'internal scratch']
  #allocation2 [shape = 'f32[32,128]{1,0:T(8,128)}', space=vmem, size = 0x4000, scoped, tag = 'scratch operand']
  %s0 = inlined_call_operand.vmem [shape: bf16[32,1024], index: 0, kind: input, shape index: {}]
  %s1 = inlined_call_operand.vmem [shape: bf16[1024,128], index: 1, kind: input, shape index: {}]
  %s2 = inlined_call_operand.vmem [shape: f32[32,128], index: 2, kind: output, shape index: {0}]
  %s3 = inlined_call_operand.vmem [shape: f32[1,2,128], index: 3, kind: output, shape index: {1}]
  %4 = xla_tuple %s2, %s3
  %s5 = sld [smem:[#allocation0]]
  $region80: #{patchgan_forward.9} parent=0
    _
  %s7 = ssub.s32 1, %s5
  %s8 = scalar_select 0, %s7, %s5
  $region1: #{patchgan_forward.9} parent=0
    #allocation3 [shape = 'u8[65536]{0}', space=vmem, size = 0x10000, scoped, tag = 'input window, operand 0']
    loop: start=0, step=1, limit=4
    $region2: #{patchgan_forward.9} parent=1 // loop_pre_header
      _
    $region3: #{patchgan_forward.9} parent=1 // loop_header
      %s10 = sphi 0, %s14
      %p11 = scmp.ge.s32.totalorder %s10, 4
      %s17 = sphi 0, %s29
      %s18 = sphi 0, %s25
      %s19 = sphi 0, %s17
      %s20 = sphi 0, %s18
      %s21 = sphi 0, %s19
      %s22 = sphi 0, %s20
      %s34 = sphi 0, %s36
      %s37 = sphi 0, %s34
      %s38 = sphi 0, %s37
      %s54 = sphi 0, %s38
      %s60 = sphi 0, %s62
      %s63 = sphi 0, %s60
      %s64 = sphi 0, %s63
      %s80 = sphi 0, %s64
      %s86 = sphi 0, %s88
      %s89 = sphi 0, %s86
      %s90 = sphi 0, %s89
      %s106 = sphi 0, %s90
      %s112 = sphi 0, %s114
      %s115 = sphi 0, %s112
      %s116 = sphi 0, %s115
      %s132 = sphi 0, %s116
    $region4: #{patchgan_forward.9} parent=1 // loop_header_branch
      %13 = sbr.rel (%p11) target = $region8
    $region5: #{patchgan_forward.9} parent=1 // loop_body
      %s15 = ssub.s32 %s10, 1
      %s16 = ssub.s32 %s10, 2
      %s23 = sadd.s32 1, %s18
      %p24 = scmp.ge.s32.totalorder %s23, 2
      %s25 = scalar_select %p24, 0, %s23
      %s26 = sadd.s32 1, %s17
      %s27 = scalar_select %p24, %s26, %s17
      %p28 = scmp.ge.s32.totalorder %s27, 1
      %s29 = scalar_select %p28, 0, %s27
      %s30 = ssub.s32 %s17, %s29
      %s31 = ssub.s32 %s18, %s25
      %s32 = sor.u32 %s30, %s31
      %p33 = scmp.eq.s32.totalorder %s32, 0
      %s35 = sadd.s32 %s34, 1
      %s36 = scalar_select %p33, %s34, %s35
      %p39 = pneg %p33
      %p40 = scmp.eq.s32.totalorder %s10, 1
      %p41 = por %p39, %p40
      %p42 = scmp.ne.s32.totalorder %s34, %s37
      %p43 = scmp.eq.s32.totalorder %s10, 0
      %p44 = por %p42, %p43
      %p45 = scmp.ne.s32.totalorder %s34, %s37
      %p46 = scmp.eq.s32.totalorder %s15, 1
      %p47 = por %p45, %p46
      %p48 = scmp.ne.s32.totalorder %s37, %s38
      %p49 = scmp.eq.s32.totalorder %s15, 0
      %p50 = por %p48, %p49
      %p51 = scmp.ne.s32.totalorder %s37, %s38
      %p52 = scmp.eq.s32.totalorder %s16, 1
      %p53 = por %p51, %p52
      %p55 = scmp.ne.s32.totalorder %s38, %s54
      %p56 = scmp.eq.s32.totalorder %s16, 0
      %p57 = por %p55, %p56
      %s58 = ssub.s32 %s18, %s25
      %p59 = scmp.eq.s32.totalorder %s58, 0
      %s61 = sadd.s32 %s60, 1
      %s62 = scalar_select %p59, %s60, %s61
      %p65 = pneg %p59
      %p66 = scmp.eq.s32.totalorder %s10, 1
      %p67 = por %p65, %p66
      %p68 = scmp.ne.s32.totalorder %s60, %s63
      %p69 = scmp.eq.s32.totalorder %s10, 0
      %p70 = por %p68, %p69
      %p71 = scmp.ne.s32.totalorder %s60, %s63
      %p72 = scmp.eq.s32.totalorder %s15, 1
      %p73 = por %p71, %p72
      %p74 = scmp.ne.s32.totalorder %s63, %s64
      %p75 = scmp.eq.s32.totalorder %s15, 0
      %p76 = por %p74, %p75
      %p77 = scmp.ne.s32.totalorder %s63, %s64
      %p78 = scmp.eq.s32.totalorder %s16, 1
      %p79 = por %p77, %p78
      %p81 = scmp.ne.s32.totalorder %s64, %s80
      %p82 = scmp.eq.s32.totalorder %s16, 0
      %p83 = por %p81, %p82
      %s84 = ssub.s32 %s17, %s29
      %p85 = scmp.eq.s32.totalorder %s84, 0
      %s87 = sadd.s32 %s86, 1
      %s88 = scalar_select %p85, %s86, %s87
      %p91 = pneg %p85
      %p92 = scmp.eq.s32.totalorder %s10, 1
      %p93 = por %p91, %p92
      %p94 = scmp.ne.s32.totalorder %s86, %s89
      %p95 = scmp.eq.s32.totalorder %s10, 0
      %p96 = por %p94, %p95
      %p97 = scmp.ne.s32.totalorder %s86, %s89
      %p98 = scmp.eq.s32.totalorder %s15, 1
      %p99 = por %p97, %p98
      %p100 = scmp.ne.s32.totalorder %s89, %s90
      %p101 = scmp.eq.s32.totalorder %s15, 0
      %p102 = por %p100, %p101
      %p103 = scmp.ne.s32.totalorder %s89, %s90
      %p104 = scmp.eq.s32.totalorder %s16, 1
      %p105 = por %p103, %p104
      %p107 = scmp.ne.s32.totalorder %s90, %s106
      %p108 = scmp.eq.s32.totalorder %s16, 0
      %p109 = por %p107, %p108
      %s110 = ssub.s32 %s17, %s29
      %p111 = scmp.eq.s32.totalorder %s110, 0
      %s113 = sadd.s32 %s112, 1
      %s114 = scalar_select %p111, %s112, %s113
      %p117 = pneg %p111
      %p118 = scmp.eq.s32.totalorder %s10, 1
      %p119 = por %p117, %p118
      %p120 = scmp.ne.s32.totalorder %s112, %s115
      %p121 = scmp.eq.s32.totalorder %s10, 0
      %p122 = por %p120, %p121
      %p123 = scmp.ne.s32.totalorder %s112, %s115
      %p124 = scmp.eq.s32.totalorder %s15, 1
      %p125 = por %p123, %p124
      %p126 = scmp.ne.s32.totalorder %s115, %s116
      %p127 = scmp.eq.s32.totalorder %s15, 0
      %p128 = por %p126, %p127
      %p129 = scmp.ne.s32.totalorder %s115, %s116
      %p130 = scmp.eq.s32.totalorder %s16, 1
      %p131 = por %p129, %p130
      %p133 = scmp.ne.s32.totalorder %s116, %s132
      %p134 = scmp.eq.s32.totalorder %s16, 0
      %p135 = por %p133, %p134
      %p136 = scmp.le.s32.totalorder 1, %s10
      %p137 = scmp.lt.s32.totalorder %s10, 3
      %p138 = pnand %p136, %p137
      %p139 = pneg %p138
      // Predicated region
      $region9: #{patchgan_forward.9} parent=5 // pred_check
        _
      $region10: #{patchgan_forward.9} parent=5 // pred_check_branch
        %141 = sbr.rel (%p138) target = $region12
      $region11: #{patchgan_forward.9} parent=5 // pred_region
        %s142 = ssub.s32 %s10, 1
      $region12: #{patchgan_forward.9} parent=5 // pred_fallthru
        _
      %p143 = scmp.lt.s32.totalorder %s10, 2
      // Predicated region
      $region13: #{patchgan_forward.9} parent=5 // pred_check
        %p144 = pneg %p143
      $region14: #{patchgan_forward.9} parent=5 // pred_check_branch
        %146 = sbr.rel (%p144) target = $region16
      $region15: #{patchgan_forward.9} parent=5 // pred_region
        // Predicated region
        $region17: #{patchgan_forward.9} parent=15 // pred_check
          %p147 = pneg %p44
        $region18: #{patchgan_forward.9} parent=15 // pred_check_branch
          %149 = sbr.rel (%p147) target = $region20
        $region19: #{patchgan_forward.9} parent=15 // pred_region
          %s150 = sand.u32 %s34, 1
          %s151 = sand.u32 %s34, 1
          %s152 = smul.addr %s151, 64
          %s153 = scalar_lea.vmem [#allocation3], %s152
          %s154 = smul.u32 4, %s17
          %s155 = smul.u32 4, %s18
          %s156 = smul.addr %s154, 8
          %s157 = sadd.s32 %s155, %s156
          %s158 = smul.addr %s157, 4
          %s159 = scalar_lea.vmem %s0, %s158
          // Predicated region
          $region21: #{patchgan_forward.9} parent=19 // pred_check
            _
          $region22: #{patchgan_forward.9} parent=19 // pred_check_branch
            %161 = sbr.rel (0) target = $region24
          $region23: #{patchgan_forward.9} parent=19 // pred_region
            // Predicated region
            $region25: #{patchgan_forward.9} parent=23 // pred_check
              _
            $region26: #{patchgan_forward.9} parent=23 // pred_check_branch
              %163 = sbr.rel (0) target = $region28
            $region27: #{patchgan_forward.9} parent=23 // pred_region
              loop: start=0, step=1, limit=1
              $region29: #{patchgan_forward.9} parent=27 // loop_pre_header
                _
              $region30: #{patchgan_forward.9} parent=27 // loop_header
                %s165 = sphi 0, %s169
                %p166 = scmp.ge.s32.totalorder %s165, 1
                %s170 = sphi %s159, %s159
                %s171 = sphi %s153, %s153
              $region31: #{patchgan_forward.9} parent=27 // loop_header_branch
                %168 = sbr.rel (%p166) target = $region35
              $region32: #{patchgan_forward.9} parent=27 // loop_body
                %v172 = vld [vmem:[%s170] sm:$0xff]
                %173 = vst [vmem:[%s171] sm:$0xff] %v172
                %v174 = vld [vmem:[%s170 + $0x8] sm:$0xff]
                %175 = vst [vmem:[%s171 + $0x8] sm:$0xff] %v174
                %v176 = vld [vmem:[%s170 + $0x20] sm:$0xff]
                %177 = vst [vmem:[%s171 + $0x10] sm:$0xff] %v176
                %v178 = vld [vmem:[%s170 + $0x28] sm:$0xff]
                %179 = vst [vmem:[%s171 + $0x18] sm:$0xff] %v178
                %v180 = vld [vmem:[%s170 + $0x40] sm:$0xff]
                %181 = vst [vmem:[%s171 + $0x20] sm:$0xff] %v180
                %v182 = vld [vmem:[%s170 + $0x48] sm:$0xff]
                %183 = vst [vmem:[%s171 + $0x28] sm:$0xff] %v182
                %v184 = vld [vmem:[%s170 + $0x60] sm:$0xff]
                %185 = vst [vmem:[%s171 + $0x30] sm:$0xff] %v184
                %v186 = vld [vmem:[%s170 + $0x68] sm:$0xff]
                %187 = vst [vmem:[%s171 + $0x38] sm:$0xff] %v186
              $region33: #{patchgan_forward.9} parent=27 // loop_footer
                %s169 = sadd.s32 1, %s165
              $region34: #{patchgan_forward.9} parent=27 // loop_footer_branch
                %164 = sbr.rel target = $region30
              $region35: #{patchgan_forward.9} parent=27 // loop_exit
                _
            $region28: #{patchgan_forward.9} parent=23 // pred_fallthru
              _
            // Predicated region
            $region36: #{patchgan_forward.9} parent=23 // pred_check
              _
            $region37: #{patchgan_forward.9} parent=23 // pred_check_branch
              %189 = sbr.rel target = $region39
            $region38: #{patchgan_forward.9} parent=23 // pred_region
              _
            $region39: #{patchgan_forward.9} parent=23 // pred_fallthru
              _
          $region24: #{patchgan_forward.9} parent=19 // pred_fallthru
            _
          %190 = vnop
        $region20: #{patchgan_forward.9} parent=15 // pred_fallthru
          _
        // Predicated region
        $region40: #{patchgan_forward.9} parent=15 // pred_check
          %p191 = pneg %p70
        $region41: #{patchgan_forward.9} parent=15 // pred_check_branch
          %193 = sbr.rel (%p191) target = $region43
        $region42: #{patchgan_forward.9} parent=15 // pred_region
          %s194 = smul.u32 64, %s18
          %p195 = scmp.lt.s32.totalorder %s194, 127
          %s196 = scalar_select %p195, %s194, 127
          %s197 = smul.addr %s196, 4
          %s198 = scalar_lea.vmem %s1, %s197
          %s199 = smul.u32 64, %s18
        $region43: #{patchgan_forward.9} parent=15 // pred_fallthru
          _
      $region16: #{patchgan_forward.9} parent=5 // pred_fallthru
        _
      %p200 = scmp.le.s32.totalorder 1, %s10
      %p201 = scmp.lt.s32.totalorder %s10, 3
      %p202 = pnand %p200, %p201
      %p203 = pneg %p202
      // Predicated region
      $region44: #{patchgan_forward.9} parent=5 // pred_check
        _
      $region45: #{patchgan_forward.9} parent=5 // pred_check_branch
        %205 = sbr.rel (%p202) target = $region47
      $region46: #{patchgan_forward.9} parent=5 // pred_region
        %s206 = ssub.s32 %s10, 1
        %s207 = sand.u32 %s37, 1
        %s208 = sand.u32 %s37, 1
        %s209 = smul.addr %s208, 64
        %s210 = scalar_lea.vmem [#allocation3], %s209
        // Predicated region
        $region48: #{patchgan_forward.9} parent=46 // pred_check
          %p211 = pneg %p50
        $region49: #{patchgan_forward.9} parent=46 // pred_check_branch
          %213 = sbr.rel (%p211) target = $region51
        $region50: #{patchgan_forward.9} parent=46 // pred_region
          _
        $region51: #{patchgan_forward.9} parent=46 // pred_fallthru
          _
        %s214 = sand.u32 %s37, 1
        %s215 = sand.u32 %s37, 1
        %s216 = smul.addr %s215, 64
        %s217 = scalar_lea.vmem [#allocation3], %s216
        %p218 = pneg %p50
        %p219 = pneg %p47
        %s220 = smul.u32 64, %s20
        %p221 = scmp.lt.s32.totalorder %s220, 127
        %s222 = scalar_select %p221, %s220, 127
        %s223 = smul.addr %s222, 4
        %s224 = scalar_lea.vmem %s1, %s223
        %p225 = pneg %p76
        %p226 = pneg %p73
        %p227 = pneg %p102
        %p228 = pneg %p99
        %s229 = smul.u32 4, %s19
        %p230 = scmp.lt.s32.totalorder %s229, 3
        %s231 = scalar_select %p230, %s229, 3
        %s232 = smul.addr %s231, 8
        %s233 = scalar_lea.vmem %s2, %s232
        %p234 = pneg %p128
        %p235 = pneg %p125
        %p236 = scmp.lt.s32.totalorder %s19, 0
        %s237 = scalar_select %p236, %s19, 0
        %s238 = smul.addr %s237, 2
        %s239 = scalar_lea.vmem %s3, %s238
        %s240 = smul.u32 4, %s19
        %s241 = smul.u32 4, %s20
        %s242 = smul.u32 64, %s20
        %p243 = scmp.lt.s32.totalorder %s242, 127
        %s244 = scalar_select %p243, %s242, 127
        %s245 = smul.addr %s244, 4
        %s246 = scalar_lea.vmem %s1, %s245
        %s247 = smul.u32 64, %s20
        %s248 = smul.u32 4, %s19
        %p249 = scmp.lt.s32.totalorder %s248, 3
        %s250 = scalar_select %p249, %s248, 3
        %s251 = smul.addr %s250, 8
        %s252 = scalar_lea.vmem %s2, %s251
        %s253 = smul.u32 4, %s19
        %p254 = scmp.lt.s32.totalorder %s19, 0
        %s255 = scalar_select %p254, %s19, 0
        %s256 = smul.addr %s255, 2
        %s257 = scalar_lea.vmem %s3, %s256
        %p259 = scmp.eq.s32.totalorder %s20, 0
        // Predicated region
        $region52: #{patchgan_forward.9} parent=46 // pred_check
          %p260 = pneg %p259
        $region53: #{patchgan_forward.9} parent=46 // pred_check_branch
          %262 = sbr.rel (%p260) target = $region55
        $region54: #{patchgan_forward.9} parent=46 // pred_region
          %263 = vst [vmem:[#allocation2] sm:$0xff] 0.0
          %264 = vst [vmem:[#allocation2 + $0x8] sm:$0xff] 0.0
          %265 = vst [vmem:[#allocation2 + $0x10] sm:$0xff] 0.0
          %266 = vst [vmem:[#allocation2 + $0x18] sm:$0xff] 0.0
        $region55: #{patchgan_forward.9} parent=46 // pred_fallthru
          _
        %v267 = vld [vmem:[#allocation2] sm:$0xff]
        %v268 = vld [vmem:[#allocation2 + $0x8] sm:$0xff]
        %v269 = vld [vmem:[#allocation2 + $0x10] sm:$0xff]
        %v270 = vld [vmem:[#allocation2 + $0x18] sm:$0xff]
        %v271 = vld [vmem:[%s210] sm:$0xff]
        %v272 = vld [vmem:[%s210 + $0x8] sm:$0xff]
        %v273 = vld [vmem:[%s210 + $0x10] sm:$0xff]
        %v274 = vld [vmem:[%s210 + $0x18] sm:$0xff]
        %v275 = vld [vmem:[%s210 + $0x20] sm:$0xff]
        %v276 = vld [vmem:[%s210 + $0x28] sm:$0xff]
        %v277 = vld [vmem:[%s210 + $0x30] sm:$0xff]
        %v278 = vld [vmem:[%s210 + $0x38] sm:$0xff]
        %v279 = vld [vmem:[%s246] sm:$0xf]
        %v280 = vld [vmem:[%s246 + $0x4] sm:$0xf]
        %v281 = vld [vmem:[%s246 + $0x8] sm:$0xf]
        %v282 = vld [vmem:[%s246 + $0xc] sm:$0xf]
        %v283 = vld [vmem:[%s246 + $0x10] sm:$0xf]
        %v284 = vld [vmem:[%s246 + $0x14] sm:$0xf]
        %v285 = vld [vmem:[%s246 + $0x18] sm:$0xf]
        %v286 = vld [vmem:[%s246 + $0x1c] sm:$0xf]
        %v287 = vld [vmem:[%s246 + $0x20] sm:$0xf]
        %v288 = vld [vmem:[%s246 + $0x24] sm:$0xf]
        %v289 = vld [vmem:[%s246 + $0x28] sm:$0xf]
        %v290 = vld [vmem:[%s246 + $0x2c] sm:$0xf]
        %v291 = vld [vmem:[%s246 + $0x30] sm:$0xf]
        %v292 = vld [vmem:[%s246 + $0x34] sm:$0xf]
        %v293 = vld [vmem:[%s246 + $0x38] sm:$0xf]
        %v294 = vld [vmem:[%s246 + $0x3c] sm:$0xf]
        %v295 = vld [vmem:[%s246 + $0x40] sm:$0xf]
        %v296 = vld [vmem:[%s246 + $0x44] sm:$0xf]
        %v297 = vld [vmem:[%s246 + $0x48] sm:$0xf]
        %v298 = vld [vmem:[%s246 + $0x4c] sm:$0xf]
        %v299 = vld [vmem:[%s246 + $0x50] sm:$0xf]
        %v300 = vld [vmem:[%s246 + $0x54] sm:$0xf]
        %v301 = vld [vmem:[%s246 + $0x58] sm:$0xf]
        %v302 = vld [vmem:[%s246 + $0x5c] sm:$0xf]
        %v303 = vld [vmem:[%s246 + $0x60] sm:$0xf]
        %v304 = vld [vmem:[%s246 + $0x64] sm:$0xf]
        %v305 = vld [vmem:[%s246 + $0x68] sm:$0xf]
        %v306 = vld [vmem:[%s246 + $0x6c] sm:$0xf]
        %v307 = vld [vmem:[%s246 + $0x70] sm:$0xf]
        %v308 = vld [vmem:[%s246 + $0x74] sm:$0xf]
        %v309 = vld [vmem:[%s246 + $0x78] sm:$0xf]
        %v310 = vld [vmem:[%s246 + $0x7c] sm:$0xf]
        %v311 = vld [vmem:[%s246 + $0x80] sm:$0xf]
        %v312 = vld [vmem:[%s246 + $0x84] sm:$0xf]
        %v313 = vld [vmem:[%s246 + $0x88] sm:$0xf]
        %v314 = vld [vmem:[%s246 + $0x8c] sm:$0xf]
        %v315 = vld [vmem:[%s246 + $0x90] sm:$0xf]
        %v316 = vld [vmem:[%s246 + $0x94] sm:$0xf]
        %v317 = vld [vmem:[%s246 + $0x98] sm:$0xf]
        %v318 = vld [vmem:[%s246 + $0x9c] sm:$0xf]
        %v319 = vld [vmem:[%s246 + $0xa0] sm:$0xf]
        %v320 = vld [vmem:[%s246 + $0xa4] sm:$0xf]
        %v321 = vld [vmem:[%s246 + $0xa8] sm:$0xf]
        %v322 = vld [vmem:[%s246 + $0xac] sm:$0xf]
        %v323 = vld [vmem:[%s246 + $0xb0] sm:$0xf]
        %v324 = vld [vmem:[%s246 + $0xb4] sm:$0xf]
        %v325 = vld [vmem:[%s246 + $0xb8] sm:$0xf]
        %v326 = vld [vmem:[%s246 + $0xbc] sm:$0xf]
        %v327 = vld [vmem:[%s246 + $0xc0] sm:$0xf]
        %v328 = vld [vmem:[%s246 + $0xc4] sm:$0xf]
        %v329 = vld [vmem:[%s246 + $0xc8] sm:$0xf]
        %v330 = vld [vmem:[%s246 + $0xcc] sm:$0xf]
        %v331 = vld [vmem:[%s246 + $0xd0] sm:$0xf]
        %v332 = vld [vmem:[%s246 + $0xd4] sm:$0xf]
        %v333 = vld [vmem:[%s246 + $0xd8] sm:$0xf]
        %v334 = vld [vmem:[%s246 + $0xdc] sm:$0xf]
        %v335 = vld [vmem:[%s246 + $0xe0] sm:$0xf]
        %v336 = vld [vmem:[%s246 + $0xe4] sm:$0xf]
        %v337 = vld [vmem:[%s246 + $0xe8] sm:$0xf]
        %v338 = vld [vmem:[%s246 + $0xec] sm:$0xf]
        %v339 = vld [vmem:[%s246 + $0xf0] sm:$0xf]
        %v340 = vld [vmem:[%s246 + $0xf4] sm:$0xf]
        %v341 = vld [vmem:[%s246 + $0xf8] sm:$0xf]
        %v342 = vld [vmem:[%s246 + $0xfc] sm:$0xf]
        %v351 = vunpack.c.l.b16 %v271
        %v352 = vunpack.c.h.b16 %v271
        %v353 = vunpack.c.l.b16 %v272
        %v354 = vunpack.c.h.b16 %v272
        %v355 = vunpack.c.l.b16 %v273
        %v356 = vunpack.c.h.b16 %v273
        %v357 = vunpack.c.l.b16 %v274
        %v358 = vunpack.c.h.b16 %v274
        %v359 = vunpack.c.l.b16 %v275
        %v360 = vunpack.c.h.b16 %v275
        %v361 = vunpack.c.l.b16 %v276
        %v362 = vunpack.c.h.b16 %v276
        %v363 = vunpack.c.l.b16 %v277
        %v364 = vunpack.c.h.b16 %v277
        %v365 = vunpack.c.l.b16 %v278
        %v366 = vunpack.c.h.b16 %v278
        %v367 = vpack.c.b16 %v355, %v351
        %v368 = vpack.c.b16 %v356, %v352
        %v369 = vpack.c.b16 %v357, %v353
        %v370 = vpack.c.b16 %v358, %v354
        %v371 = vpack.c.b16 %v363, %v359
        %v372 = vpack.c.b16 %v364, %v360
        %v373 = vpack.c.b16 %v365, %v361
        %v374 = vpack.c.b16 %v366, %v362
        %v447 = vunpack.c.l.b16 %v279
        %v448 = vunpack.c.l.b16 %v280
        %v449 = vunpack.c.l.b16 %v281
        %v450 = vunpack.c.l.b16 %v282
        %v451 = vunpack.c.l.b16 %v283
        %v452 = vunpack.c.l.b16 %v284
        %v453 = vunpack.c.l.b16 %v285
        %v454 = vunpack.c.l.b16 %v286
        %v455 = vunpack.c.l.b16 %v287
        %v456 = vunpack.c.l.b16 %v288
        %v457 = vunpack.c.l.b16 %v289
        %v458 = vunpack.c.l.b16 %v290
        %v459 = vunpack.c.l.b16 %v291
        %v460 = vunpack.c.l.b16 %v292
        %v461 = vunpack.c.l.b16 %v293
        %v462 = vunpack.c.l.b16 %v294
        %v463 = vunpack.c.l.b16 %v295
        %v464 = vunpack.c.l.b16 %v296
        %v465 = vunpack.c.l.b16 %v297
        %v466 = vunpack.c.l.b16 %v298
        %v467 = vunpack.c.l.b16 %v299
        %v468 = vunpack.c.l.b16 %v300
        %v469 = vunpack.c.l.b16 %v301
        %v470 = vunpack.c.l.b16 %v302
        %v471 = vunpack.c.l.b16 %v303
        %v472 = vunpack.c.l.b16 %v304
        %v473 = vunpack.c.l.b16 %v305
        %v474 = vunpack.c.l.b16 %v306
        %v475 = vunpack.c.l.b16 %v307
        %v476 = vunpack.c.l.b16 %v308
        %v477 = vunpack.c.l.b16 %v309
        %v478 = vunpack.c.l.b16 %v310
        %v479 = vunpack.c.l.b16 %v311
        %v480 = vunpack.c.l.b16 %v312
        %v481 = vunpack.c.l.b16 %v313
        %v482 = vunpack.c.l.b16 %v314
        %v483 = vunpack.c.l.b16 %v315
        %v484 = vunpack.c.l.b16 %v316
        %v485 = vunpack.c.l.b16 %v317
        %v486 = vunpack.c.l.b16 %v318
        %v487 = vunpack.c.l.b16 %v319
        %v488 = vunpack.c.l.b16 %v320
        %v489 = vunpack.c.l.b16 %v321
        %v490 = vunpack.c.l.b16 %v322
        %v491 = vunpack.c.l.b16 %v323
        %v492 = vunpack.c.l.b16 %v324
        %v493 = vunpack.c.l.b16 %v325
        %v494 = vunpack.c.l.b16 %v326
        %v495 = vunpack.c.l.b16 %v327
        %v496 = vunpack.c.l.b16 %v328
        %v497 = vunpack.c.l.b16 %v329
        %v498 = vunpack.c.l.b16 %v330
        %v499 = vunpack.c.l.b16 %v331
        %v500 = vunpack.c.l.b16 %v332
        %v501 = vunpack.c.l.b16 %v333
        %v502 = vunpack.c.l.b16 %v334
        %v503 = vunpack.c.l.b16 %v335
        %v504 = vunpack.c.l.b16 %v336
        %v505 = vunpack.c.l.b16 %v337
        %v506 = vunpack.c.l.b16 %v338
        %v507 = vunpack.c.l.b16 %v339
        %v508 = vunpack.c.l.b16 %v340
        %v509 = vunpack.c.l.b16 %v341
        %v510 = vunpack.c.l.b16 %v342
        %v511 = vpack.c.b16 %v448, %v447
        %v512 = vpack.c.b16 %v450, %v449
        %v513 = vpack.c.b16 %v452, %v451
        %v514 = vpack.c.b16 %v454, %v453
        %v515 = vpack.c.b16 %v456, %v455
        %v516 = vpack.c.b16 %v458, %v457
        %v517 = vpack.c.b16 %v460, %v459
        %v518 = vpack.c.b16 %v462, %v461
        %v519 = vpack.c.b16 %v464, %v463
        %v520 = vpack.c.b16 %v466, %v465
        %v521 = vpack.c.b16 %v468, %v467
        %v522 = vpack.c.b16 %v470, %v469
        %v523 = vpack.c.b16 %v472, %v471
        %v524 = vpack.c.b16 %v474, %v473
        %v525 = vpack.c.b16 %v476, %v475
        %v526 = vpack.c.b16 %v478, %v477
        %v527 = vpack.c.b16 %v480, %v479
        %v528 = vpack.c.b16 %v482, %v481
        %v529 = vpack.c.b16 %v484, %v483
        %v530 = vpack.c.b16 %v486, %v485
        %v531 = vpack.c.b16 %v488, %v487
        %v532 = vpack.c.b16 %v490, %v489
        %v533 = vpack.c.b16 %v492, %v491
        %v534 = vpack.c.b16 %v494, %v493
        %v535 = vpack.c.b16 %v496, %v495
        %v536 = vpack.c.b16 %v498, %v497
        %v537 = vpack.c.b16 %v500, %v499
        %v538 = vpack.c.b16 %v502, %v501
        %v539 = vpack.c.b16 %v504, %v503
        %v540 = vpack.c.b16 %v506, %v505
        %v541 = vpack.c.b16 %v508, %v507
        %v542 = vpack.c.b16 %v510, %v509
        %575 = vmatprep.subr.bf16.mxu0 0
        %576 = vmatpush1.bf16.msra.mxu0 %v511
        %577 = vmatprep.subr.bf16.mxu0 0
        %578 = vmatpush1.bf16.msra.mxu0 %v512
        %579 = vmatprep.subr.bf16.mxu0 0
        %580 = vmatpush1.bf16.msra.mxu0 %v513
        %581 = vmatprep.subr.bf16.mxu0 0
        %582 = vmatpush1.bf16.msra.mxu0 %v514
        %583 = vmatprep.subr.bf16.mxu0 0
        %584 = vmatpush1.bf16.msra.mxu0 %v515
        %585 = vmatprep.subr.bf16.mxu0 0
        %586 = vmatpush1.bf16.msra.mxu0 %v516
        %587 = vmatprep.subr.bf16.mxu0 0
        %588 = vmatpush1.bf16.msra.mxu0 %v517
        %589 = vmatprep.subr.bf16.mxu0 0
        %590 = vmatpush1.bf16.msra.mxu0 %v518
        %591 = vmatprep.subr.bf16.mxu0 0
        %592 = vmatpush1.bf16.msra.mxu0 %v519
        %593 = vmatprep.subr.bf16.mxu0 0
        %594 = vmatpush1.bf16.msra.mxu0 %v520
        %595 = vmatprep.subr.bf16.mxu0 0
        %596 = vmatpush1.bf16.msra.mxu0 %v521
        %597 = vmatprep.subr.bf16.mxu0 0
        %598 = vmatpush1.bf16.msra.mxu0 %v522
        %599 = vmatprep.subr.bf16.mxu0 0
        %600 = vmatpush1.bf16.msra.mxu0 %v523
        %601 = vmatprep.subr.bf16.mxu0 0
        %602 = vmatpush1.bf16.msra.mxu0 %v524
        %603 = vmatprep.subr.bf16.mxu0 0
        %604 = vmatpush1.bf16.msra.mxu0 %v525
        %605 = vmatprep.subr.bf16.mxu0 0
        %606 = vmatpush1.bf16.msra.mxu0 %v526
        %607 = vmatprep.mubr.bf16.mxu0 %v368
        %608 = vmatmul.mubr.bf16.gmra.mrb[0].mxu0 %v367
        %v609 = vpop.f32.mrb[0].mxu0
        %v610 = vadd.f32 0.0, %v609
        %v611 = vpop.f32.mrb[0].mxu0
        %v612 = vpop.f32.mrb[0].mxu0
        %v613 = vadd.f32 0.0, %v612
        %v614 = vpop.f32.mrb[0].mxu0
        %615 = vmatprep.mubr.bf16.mxu0 %v372
        %616 = vmatmul.mubr.bf16.gmra.mrb[0].mxu0 %v371
        %v617 = vpop.f32.mrb[0].mxu0
        %v618 = vadd.f32 0.0, %v617
        %v619 = vpop.f32.mrb[0].mxu0
        %v620 = vpop.f32.mrb[0].mxu0
        %v621 = vadd.f32 0.0, %v620
        %v622 = vpop.f32.mrb[0].mxu0
        %623 = vdwg.mxu0
        %624 = vmatprep.subr.bf16.mxu0 0
        %625 = vmatpush1.bf16.msra.mxu0 %v527
        %626 = vmatprep.subr.bf16.mxu0 0
        %627 = vmatpush1.bf16.msra.mxu0 %v528
        %628 = vmatprep.subr.bf16.mxu0 0
        %629 = vmatpush1.bf16.msra.mxu0 %v529
        %630 = vmatprep.subr.bf16.mxu0 0
        %631 = vmatpush1.bf16.msra.mxu0 %v530
        %632 = vmatprep.subr.bf16.mxu0 0
        %633 = vmatpush1.bf16.msra.mxu0 %v531
        %634 = vmatprep.subr.bf16.mxu0 0
        %635 = vmatpush1.bf16.msra.mxu0 %v532
        %636 = vmatprep.subr.bf16.mxu0 0
        %637 = vmatpush1.bf16.msra.mxu0 %v533
        %638 = vmatprep.subr.bf16.mxu0 0
        %639 = vmatpush1.bf16.msra.mxu0 %v534
        %640 = vmatprep.subr.bf16.mxu0 0
        %641 = vmatpush1.bf16.msra.mxu0 %v535
        %642 = vmatprep.subr.bf16.mxu0 0
        %643 = vmatpush1.bf16.msra.mxu0 %v536
        %644 = vmatprep.subr.bf16.mxu0 0
        %645 = vmatpush1.bf16.msra.mxu0 %v537
        %646 = vmatprep.subr.bf16.mxu0 0
        %647 = vmatpush1.bf16.msra.mxu0 %v538
        %648 = vmatprep.subr.bf16.mxu0 0
        %649 = vmatpush1.bf16.msra.mxu0 %v539
        %650 = vmatprep.subr.bf16.mxu0 0
        %651 = vmatpush1.bf16.msra.mxu0 %v540
        %652 = vmatprep.subr.bf16.mxu0 0
        %653 = vmatpush1.bf16.msra.mxu0 %v541
        %654 = vmatprep.subr.bf16.mxu0 0
        %655 = vmatpush1.bf16.msra.mxu0 %v542
        %656 = vmatprep.mubr.bf16.mxu0 %v370
        %657 = vmatmul.mubr.bf16.gmra.mrb[0].mxu0 %v369
        %v658 = vpop.f32.mrb[0].mxu0
        %v659 = vadd.f32 %v610, %v658
        %v660 = vpop.f32.mrb[0].mxu0
        %v661 = vpop.f32.mrb[0].mxu0
        %v662 = vadd.f32 %v613, %v661
        %v663 = vpop.f32.mrb[0].mxu0
        %664 = vmatprep.mubr.bf16.mxu0 %v374
        %665 = vmatmul.mubr.bf16.gmra.mrb[0].mxu0 %v373
        %v666 = vpop.f32.mrb[0].mxu0
        %v667 = vadd.f32 %v618, %v666
        %v668 = vpop.f32.mrb[0].mxu0
        %v669 = vpop.f32.mrb[0].mxu0
        %v670 = vadd.f32 %v621, %v669
        %v671 = vpop.f32.mrb[0].mxu0
        %672 = vdwg.mxu0
        %v673 = vadd.f32 %v267, %v659
        %v674 = vadd.f32 %v268, %v662
        %v675 = vadd.f32 %v269, %v667
        %v676 = vadd.f32 %v270, %v670
        %677 = vst [vmem:[#allocation2] sm:$0xff] %v673
        %678 = vst [vmem:[#allocation2 + $0x8] sm:$0xff] %v674
        %679 = vst [vmem:[#allocation2 + $0x10] sm:$0xff] %v675
        %680 = vst [vmem:[#allocation2 + $0x18] sm:$0xff] %v676
        %p681 = scmp.eq.s32.totalorder %s20, 1
        // Predicated region
        $region56: #{patchgan_forward.9} parent=46 // pred_check
          %p682 = pneg %p681
        $region57: #{patchgan_forward.9} parent=46 // pred_check_branch
          %684 = sbr.rel (%p682) target = $region59
        $region58: #{patchgan_forward.9} parent=46 // pred_region
          %v685 = vld [vmem:[#allocation2] sm:$0xff]
          %v686 = vld [vmem:[#allocation2 + $0x8] sm:$0xff]
          %v687 = vld [vmem:[#allocation2 + $0x10] sm:$0xff]
          %v688 = vld [vmem:[#allocation2 + $0x18] sm:$0xff]
          %689 = vst [vmem:[%s252] sm:$0xff] %v685
          %690 = vst [vmem:[%s252 + $0x8] sm:$0xff] %v686
          %691 = vst [vmem:[%s252 + $0x10] sm:$0xff] %v687
          %692 = vst [vmem:[%s252 + $0x18] sm:$0xff] %v688
          %v693 = vadd.f32 %v685, %v686
          %v694 = vadd.f32 %v693, %v687
          %v695 = vadd.f32 %v694, %v688
          %v696 = vrot.slane %v695, 4
          %v697 = vadd.f32 %v695, %v696
          %v698 = vrot.slane %v697, 2
          %v699 = vadd.f32 %v697, %v698
          %v700 = vrot.slane %v699, 1
          %v701 = vadd.f32 %v699, %v700
          %702 = vst [vmem:[%s257] sm:$0x1] %v701
          %v703 = vmul.f32 %v685, %v685
          %v704 = vmul.f32 %v686, %v686
          %v705 = vmul.f32 %v687, %v687
          %v706 = vmul.f32 %v688, %v688
          %v707 = vadd.f32 %v703, %v704
          %v708 = vadd.f32 %v707, %v705
          %v709 = vadd.f32 %v708, %v706
          %v710 = vrot.slane %v709, 4
          %v711 = vadd.f32 %v709, %v710
          %v712 = vrot.slane %v711, 2
          %v713 = vadd.f32 %v711, %v712
          %v714 = vrot.slane %v713, 1
          %v715 = vadd.f32 %v713, %v714
          %716 = vst [vmem:[%s257 + $0x1] sm:$0x1] %v715
        $region59: #{patchgan_forward.9} parent=46 // pred_fallthru
          _
        %s717 = smul.u32 4, %s19
        %p718 = scmp.lt.s32.totalorder %s717, 3
        %s719 = scalar_select %p718, %s717, 3
        %s720 = smul.addr %s719, 8
        %s721 = scalar_lea.vmem %s2, %s720
        %p722 = scmp.lt.s32.totalorder %s19, 0
        %s723 = scalar_select %p722, %s19, 0
        %s724 = smul.addr %s723, 2
        %s725 = scalar_lea.vmem %s3, %s724
        // Predicated region
        $region60: #{patchgan_forward.9} parent=46 // pred_check
          %p726 = pneg %p99
        $region61: #{patchgan_forward.9} parent=46 // pred_check_branch
          %728 = sbr.rel (%p726) target = $region63
        $region62: #{patchgan_forward.9} parent=46 // pred_region
          %s729 = smul.u32 4, %s19
        $region63: #{patchgan_forward.9} parent=46 // pred_fallthru
          _
        // Predicated region
        $region64: #{patchgan_forward.9} parent=46 // pred_check
          %p730 = pneg %p125
        $region65: #{patchgan_forward.9} parent=46 // pred_check_branch
          %732 = sbr.rel (%p730) target = $region67
        $region66: #{patchgan_forward.9} parent=46 // pred_region
          _
        $region67: #{patchgan_forward.9} parent=46 // pred_fallthru
          _
        // Predicated region
        $region68: #{patchgan_forward.9} parent=46 // pred_check
          %p733 = pneg %p99
        $region69: #{patchgan_forward.9} parent=46 // pred_check_branch
          %735 = sbr.rel (%p733) target = $region71
        $region70: #{patchgan_forward.9} parent=46 // pred_region
          %s736 = smul.u32 4, %s19
          %p737 = scmp.lt.s32.totalorder %s736, 3
          %s738 = scalar_select %p737, %s736, 3
          %s739 = smul.addr %s738, 8
          %s740 = scalar_lea.vmem %s2, %s739
        $region71: #{patchgan_forward.9} parent=46 // pred_fallthru
          _
        // Predicated region
        $region72: #{patchgan_forward.9} parent=46 // pred_check
          %p741 = pneg %p125
        $region73: #{patchgan_forward.9} parent=46 // pred_check_branch
          %743 = sbr.rel (%p741) target = $region75
        $region74: #{patchgan_forward.9} parent=46 // pred_region
          %p744 = scmp.lt.s32.totalorder %s19, 0
          %s745 = scalar_select %p744, %s19, 0
          %s746 = smul.addr %s745, 2
          %s747 = scalar_lea.vmem %s3, %s746
        $region75: #{patchgan_forward.9} parent=46 // pred_fallthru
          _
      $region47: #{patchgan_forward.9} parent=5 // pred_fallthru
        _
      %p748 = scmp.le.s32.totalorder 2, %s10
      // Predicated region
      $region76: #{patchgan_forward.9} parent=5 // pred_check
        %p749 = pneg %p748
      $region77: #{patchgan_forward.9} parent=5 // pred_check_branch
        %751 = sbr.rel (%p749) target = $region79
      $region78: #{patchgan_forward.9} parent=5 // pred_region
        %s752 = ssub.s32 %s10, 2
      $region79: #{patchgan_forward.9} parent=5 // pred_fallthru
        _
    $region6: #{patchgan_forward.9} parent=1 // loop_footer
      %s14 = sadd.s32 1, %s10
    $region7: #{patchgan_forward.9} parent=1 // loop_footer_branch
      %9 = sbr.rel target = $region3
    $region8: #{patchgan_forward.9} parent=1 // loop_exit
      _

// kernel: patchgan_forward.10
$region0: #{patchgan_forward.10}
  #allocation0 [shape = 'u32[]', space=smem, size = 0x4, offset = 0x4, fixed_abs, tag = 'smem constant byte address 0x4 - core index']
  #allocation1 [shape = 'u32[144,128]{1,0:T(1,128)}', space=vmem, size = 0x12000, scoped, tag = 'internal scratch']
  %s0 = inlined_call_operand.vmem [shape: f32[32,128], index: 0, kind: input, shape index: {}]
  %s1 = inlined_call_operand.vmem [shape: f32[1,128], index: 1, kind: input, shape index: {}]
  %s2 = inlined_call_operand.vmem [shape: f32[1,128], index: 2, kind: input, shape index: {}]
  %s3 = inlined_call_operand.vmem [shape: bf16[32,128], index: 3, kind: output, shape index: {}]
  %s4 = sld [smem:[#allocation0]]
  $region22: #{patchgan_forward.10} parent=0
    _
  %s6 = ssub.s32 1, %s4
  %s7 = scalar_select 0, %s6, %s4
  // Predicated region
  $region2: #{patchgan_forward.10} parent=0 // pred_check
    _
  $region3: #{patchgan_forward.10} parent=0 // pred_check_branch
    %9 = sbr.rel (0) target = $region5
  $region4: #{patchgan_forward.10} parent=0 // pred_region
    _
  $region5: #{patchgan_forward.10} parent=0 // pred_fallthru
    _
  // Predicated region
  $region6: #{patchgan_forward.10} parent=0 // pred_check
    _
  $region7: #{patchgan_forward.10} parent=0 // pred_check_branch
    %11 = sbr.rel (0) target = $region9
  $region8: #{patchgan_forward.10} parent=0 // pred_region
    _
  $region9: #{patchgan_forward.10} parent=0 // pred_fallthru
    _
  // Predicated region
  $region10: #{patchgan_forward.10} parent=0 // pred_check
    _
  $region11: #{patchgan_forward.10} parent=0 // pred_check_branch
    %13 = sbr.rel (0) target = $region13
  $region12: #{patchgan_forward.10} parent=0 // pred_region
    _
  $region13: #{patchgan_forward.10} parent=0 // pred_fallthru
    _
  %v14 = vld [vmem:[%s0] sm:$0xff]
  %v15 = vld [vmem:[%s0 + $0x8] sm:$0xff]
  %v16 = vld [vmem:[%s0 + $0x10] sm:$0xff]
  %v17 = vld [vmem:[%s0 + $0x18] sm:$0xff]
  %v18 = vld [vmem:[%s1] sm:$0x1]
  %v20 = vlaneseq
  %v21 = vshrl.u32 %v20, 7
  %v22 = vsub.s32 0, %v21
  %v23 = vrot.slane %v18, %v22
  %v25 = vmul.f32 %v14, %v23
  %v26 = vmul.f32 %v15, %v23
  %v27 = vmul.f32 %v16, %v23
  %v28 = vmul.f32 %v17, %v23
  %v29 = vld [vmem:[%s2] sm:$0x1]
  %v31 = vlaneseq
  %v32 = vshrl.u32 %v31, 7
  %v33 = vsub.s32 0, %v32
  %v34 = vrot.slane %v29, %v33
  %v36 = vadd.f32 %v25, %v34
  %v37 = vadd.f32 %v26, %v34
  %v38 = vadd.f32 %v27, %v34
  %v39 = vadd.f32 %v28, %v34
  %vm40 = vcmp.gt.f32.partialorder %v36, 0.0
  %vm41 = vcmp.gt.f32.partialorder %v37, 0.0
  %vm42 = vcmp.gt.f32.partialorder %v38, 0.0
  %vm43 = vcmp.gt.f32.partialorder %v39, 0.0
  %v44 = vmul.f32 %v36, 0.2
  %v45 = vmul.f32 %v37, 0.2
  %v46 = vmul.f32 %v38, 0.2
  %v47 = vmul.f32 %v39, 0.2
  %v48 = vsel %vm40, %v36, %v44
  %v49 = vsel %vm41, %v37, %v45
  %v50 = vsel %vm42, %v38, %v46
  %v51 = vsel %vm43, %v39, %v47
  %v52 = vpack.c.bf16 %v49, %v48
  %v53 = vpack.c.bf16 %v51, %v50
  %v56 = vunpack.c.l.b16 %v52
  %v57 = vunpack.c.h.b16 %v52
  %v58 = vunpack.c.l.b16 %v53
  %v59 = vunpack.c.h.b16 %v53
  %v60 = vpack.c.b16 %v56, %v56
  %v61 = vpack.c.b16 %v57, %v57
  %v62 = vpack.c.b16 %v58, %v58
  %v63 = vpack.c.b16 %v59, %v59
  %68 = vst [vmem:[%s3] sm:$0xf] %v60
  %69 = vst [vmem:[%s3 + $0x4] sm:$0xf] %v61
  %70 = vst [vmem:[%s3 + $0x8] sm:$0xf] %v62
  %71 = vst [vmem:[%s3 + $0xc] sm:$0xf] %v63
  // Predicated region
  $region14: #{patchgan_forward.10} parent=0 // pred_check
    _
  $region15: #{patchgan_forward.10} parent=0 // pred_check_branch
    %73 = sbr.rel (0) target = $region17
  $region16: #{patchgan_forward.10} parent=0 // pred_region
    _
  $region17: #{patchgan_forward.10} parent=0 // pred_fallthru
    _
  // Predicated region
  $region18: #{patchgan_forward.10} parent=0 // pred_check
    _
  $region19: #{patchgan_forward.10} parent=0 // pred_check_branch
    %75 = sbr.rel (0) target = $region21
  $region20: #{patchgan_forward.10} parent=0 // pred_region
    _
  $region21: #{patchgan_forward.10} parent=0 // pred_fallthru
    _

// kernel: patchgan_forward.12
$region0: #{patchgan_forward.12}
  #allocation0 [shape = 'u32[]', space=smem, size = 0x4, offset = 0x4, fixed_abs, tag = 'smem constant byte address 0x4 - core index']
  #allocation1 [shape = 'u32[144,128]{1,0:T(1,128)}', space=vmem, size = 0x12000, scoped, tag = 'internal scratch']
  %s0 = inlined_call_operand.vmem [shape: f32[16,256], index: 0, kind: input, shape index: {}]
  %s1 = inlined_call_operand.vmem [shape: f32[1,256], index: 1, kind: input, shape index: {}]
  %s2 = inlined_call_operand.vmem [shape: f32[1,256], index: 2, kind: input, shape index: {}]
  %s3 = inlined_call_operand.vmem [shape: bf16[16,256], index: 3, kind: output, shape index: {}]
  %s4 = sld [smem:[#allocation0]]
  $region22: #{patchgan_forward.12} parent=0
    _
  %s6 = ssub.s32 1, %s4
  %s7 = scalar_select 0, %s6, %s4
  // Predicated region
  $region2: #{patchgan_forward.12} parent=0 // pred_check
    _
  $region3: #{patchgan_forward.12} parent=0 // pred_check_branch
    %9 = sbr.rel (0) target = $region5
  $region4: #{patchgan_forward.12} parent=0 // pred_region
    _
  $region5: #{patchgan_forward.12} parent=0 // pred_fallthru
    _
  // Predicated region
  $region6: #{patchgan_forward.12} parent=0 // pred_check
    _
  $region7: #{patchgan_forward.12} parent=0 // pred_check_branch
    %11 = sbr.rel (0) target = $region9
  $region8: #{patchgan_forward.12} parent=0 // pred_region
    _
  $region9: #{patchgan_forward.12} parent=0 // pred_fallthru
    _
  // Predicated region
  $region10: #{patchgan_forward.12} parent=0 // pred_check
    _
  $region11: #{patchgan_forward.12} parent=0 // pred_check_branch
    %13 = sbr.rel (0) target = $region13
  $region12: #{patchgan_forward.12} parent=0 // pred_region
    _
  $region13: #{patchgan_forward.12} parent=0 // pred_fallthru
    _
  %v14 = vld [vmem:[%s0] sm:$0xff]
  %v15 = vld [vmem:[%s0 + $0x8] sm:$0xff]
  %v16 = vld [vmem:[%s0 + $0x10] sm:$0xff]
  %v17 = vld [vmem:[%s0 + $0x18] sm:$0xff]
  %v18 = vld [vmem:[%s1] sm:$0x3]
  %v20 = vlaneseq
  %v21 = vshrl.u32 %v20, 7
  %v22 = vsub.s32 0, %v21
  %v23 = vrot.slane %v18, %v22
  %v24 = vlaneseq
  %v25 = vshrl.u32 %v24, 7
  %v26 = vsub.s32 1, %v25
  %v27 = vrot.slane %v18, %v26
  %v30 = vmul.f32 %v14, %v23
  %v31 = vmul.f32 %v15, %v27
  %v32 = vmul.f32 %v16, %v23
  %v33 = vmul.f32 %v17, %v27
  %v34 = vld [vmem:[%s2] sm:$0x3]
  %v36 = vlaneseq
  %v37 = vshrl.u32 %v36, 7
  %v38 = vsub.s32 0, %v37
  %v39 = vrot.slane %v34, %v38
  %v40 = vlaneseq
  %v41 = vshrl.u32 %v40, 7
  %v42 = vsub.s32 1, %v41
  %v43 = vrot.slane %v34, %v42
  %v46 = vadd.f32 %v30, %v39
  %v47 = vadd.f32 %v31, %v43
  %v48 = vadd.f32 %v32, %v39
  %v49 = vadd.f32 %v33, %v43
  %vm50 = vcmp.gt.f32.partialorder %v46, 0.0
  %vm51 = vcmp.gt.f32.partialorder %v47, 0.0
  %vm52 = vcmp.gt.f32.partialorder %v48, 0.0
  %vm53 = vcmp.gt.f32.partialorder %v49, 0.0
  %v54 = vmul.f32 %v46, 0.2
  %v55 = vmul.f32 %v47, 0.2
  %v56 = vmul.f32 %v48, 0.2
  %v57 = vmul.f32 %v49, 0.2
  %v58 = vsel %vm50, %v46, %v54
  %v59 = vsel %vm51, %v47, %v55
  %v60 = vsel %vm52, %v48, %v56
  %v61 = vsel %vm53, %v49, %v57
  %v62 = vpack.c.bf16 %v60, %v58
  %v63 = vpack.c.bf16 %v61, %v59
  %v66 = vunpack.c.l.b16 %v62
  %v67 = vunpack.c.l.b16 %v63
  %v68 = vunpack.c.h.b16 %v62
  %v69 = vunpack.c.h.b16 %v63
  %v70 = vpack.c.b16 %v67, %v66
  %v71 = vpack.c.b16 %v69, %v68
  %74 = vst [vmem:[%s3] sm:$0xff] %v70
  %75 = vst [vmem:[%s3 + $0x8] sm:$0xff] %v71
  // Predicated region
  $region14: #{patchgan_forward.12} parent=0 // pred_check
    _
  $region15: #{patchgan_forward.12} parent=0 // pred_check_branch
    %77 = sbr.rel (0) target = $region17
  $region16: #{patchgan_forward.12} parent=0 // pred_region
    _
  $region17: #{patchgan_forward.12} parent=0 // pred_fallthru
    _
  // Predicated region
  $region18: #{patchgan_forward.12} parent=0 // pred_check
    _
  $region19: #{patchgan_forward.12} parent=0 // pred_check_branch
    %79 = sbr.rel (0) target = $region21
  $region20: #{patchgan_forward.12} parent=0 // pred_region
    _
  $region21: #{patchgan_forward.12} parent=0 // pred_fallthru
    _

// kernel: patchgan_forward.11
$region0: #{patchgan_forward.11}
  #allocation0 [shape = 'u32[]', space=smem, size = 0x4, offset = 0x4, fixed_abs, tag = 'smem constant byte address 0x4 - core index']
  #allocation1 [shape = 'u32[144,128]{1,0:T(1,128)}', space=vmem, size = 0x12000, scoped, tag = 'internal scratch']
  #allocation2 [shape = 'f32[16,256]{1,0:T(8,128)}', space=vmem, size = 0x4000, scoped, tag = 'scratch operand']
  %s0 = inlined_call_operand.vmem [shape: bf16[16,2048], index: 0, kind: input, shape index: {}]
  %s1 = inlined_call_operand.vmem [shape: bf16[2048,256], index: 1, kind: input, shape index: {}]
  %s2 = inlined_call_operand.vmem [shape: f32[16,256], index: 2, kind: output, shape index: {0}]
  %s3 = inlined_call_operand.vmem [shape: f32[1,2,256], index: 3, kind: output, shape index: {1}]
  %4 = xla_tuple %s2, %s3
  %s5 = sld [smem:[#allocation0]]
  $region80: #{patchgan_forward.11} parent=0
    _
  %s7 = ssub.s32 1, %s5
  %s8 = scalar_select 0, %s7, %s5
  $region1: #{patchgan_forward.11} parent=0
    #allocation3 [shape = 'u8[32768]{0}', space=vmem, size = 0x8000, scoped, tag = 'input window, operand 0']
    loop: start=0, step=1, limit=6
    $region2: #{patchgan_forward.11} parent=1 // loop_pre_header
      _
    $region3: #{patchgan_forward.11} parent=1 // loop_header
      %s10 = sphi 0, %s14
      %p11 = scmp.ge.s32.totalorder %s10, 6
      %s17 = sphi 0, %s29
      %s18 = sphi 0, %s25
      %s19 = sphi 0, %s17
      %s20 = sphi 0, %s18
      %s21 = sphi 0, %s19
      %s22 = sphi 0, %s20
      %s34 = sphi 0, %s36
      %s37 = sphi 0, %s34
      %s38 = sphi 0, %s37
      %s54 = sphi 0, %s38
      %s60 = sphi 0, %s62
      %s63 = sphi 0, %s60
      %s64 = sphi 0, %s63
      %s80 = sphi 0, %s64
      %s86 = sphi 0, %s88
      %s89 = sphi 0, %s86
      %s90 = sphi 0, %s89
      %s106 = sphi 0, %s90
      %s112 = sphi 0, %s114
      %s115 = sphi 0, %s112
      %s116 = sphi 0, %s115
      %s132 = sphi 0, %s116
    $region4: #{patchgan_forward.11} parent=1 // loop_header_branch
      %13 = sbr.rel (%p11) target = $region8
    $region5: #{patchgan_forward.11} parent=1 // loop_body
      %s15 = ssub.s32 %s10, 1
      %s16 = ssub.s32 %s10, 2
      %s23 = sadd.s32 1, %s18
      %p24 = scmp.ge.s32.totalorder %s23, 4
      %s25 = scalar_select %p24, 0, %s23
      %s26 = sadd.s32 1, %s17
      %s27 = scalar_select %p24, %s26, %s17
      %p28 = scmp.ge.s32.totalorder %s27, 1
      %s29 = scalar_select %p28, 0, %s27
      %s30 = ssub.s32 %s17, %s29
      %s31 = ssub.s32 %s18, %s25
      %s32 = sor.u32 %s30, %s31
      %p33 = scmp.eq.s32.totalorder %s32, 0
      %s35 = sadd.s32 %s34, 1
      %s36 = scalar_select %p33, %s34, %s35
      %p39 = pneg %p33
      %p40 = scmp.eq.s32.totalorder %s10, 3
      %p41 = por %p39, %p40
      %p42 = scmp.ne.s32.totalorder %s34, %s37
      %p43 = scmp.eq.s32.totalorder %s10, 0
      %p44 = por %p42, %p43
      %p45 = scmp.ne.s32.totalorder %s34, %s37
      %p46 = scmp.eq.s32.totalorder %s15, 3
      %p47 = por %p45, %p46
      %p48 = scmp.ne.s32.totalorder %s37, %s38
      %p49 = scmp.eq.s32.totalorder %s15, 0
      %p50 = por %p48, %p49
      %p51 = scmp.ne.s32.totalorder %s37, %s38
      %p52 = scmp.eq.s32.totalorder %s16, 3
      %p53 = por %p51, %p52
      %p55 = scmp.ne.s32.totalorder %s38, %s54
      %p56 = scmp.eq.s32.totalorder %s16, 0
      %p57 = por %p55, %p56
      %s58 = ssub.s32 %s18, %s25
      %p59 = scmp.eq.s32.totalorder %s58, 0
      %s61 = sadd.s32 %s60, 1
      %s62 = scalar_select %p59, %s60, %s61
      %p65 = pneg %p59
      %p66 = scmp.eq.s32.totalorder %s10, 3
      %p67 = por %p65, %p66
      %p68 = scmp.ne.s32.totalorder %s60, %s63
      %p69 = scmp.eq.s32.totalorder %s10, 0
      %p70 = por %p68, %p69
      %p71 = scmp.ne.s32.totalorder %s60, %s63
      %p72 = scmp.eq.s32.totalorder %s15, 3
      %p73 = por %p71, %p72
      %p74 = scmp.ne.s32.totalorder %s63, %s64
      %p75 = scmp.eq.s32.totalorder %s15, 0
      %p76 = por %p74, %p75
      %p77 = scmp.ne.s32.totalorder %s63, %s64
      %p78 = scmp.eq.s32.totalorder %s16, 3
      %p79 = por %p77, %p78
      %p81 = scmp.ne.s32.totalorder %s64, %s80
      %p82 = scmp.eq.s32.totalorder %s16, 0
      %p83 = por %p81, %p82
      %s84 = ssub.s32 %s17, %s29
      %p85 = scmp.eq.s32.totalorder %s84, 0
      %s87 = sadd.s32 %s86, 1
      %s88 = scalar_select %p85, %s86, %s87
      %p91 = pneg %p85
      %p92 = scmp.eq.s32.totalorder %s10, 3
      %p93 = por %p91, %p92
      %p94 = scmp.ne.s32.totalorder %s86, %s89
      %p95 = scmp.eq.s32.totalorder %s10, 0
      %p96 = por %p94, %p95
      %p97 = scmp.ne.s32.totalorder %s86, %s89
      %p98 = scmp.eq.s32.totalorder %s15, 3
      %p99 = por %p97, %p98
      %p100 = scmp.ne.s32.totalorder %s89, %s90
      %p101 = scmp.eq.s32.totalorder %s15, 0
      %p102 = por %p100, %p101
      %p103 = scmp.ne.s32.totalorder %s89, %s90
      %p104 = scmp.eq.s32.totalorder %s16, 3
      %p105 = por %p103, %p104
      %p107 = scmp.ne.s32.totalorder %s90, %s106
      %p108 = scmp.eq.s32.totalorder %s16, 0
      %p109 = por %p107, %p108
      %s110 = ssub.s32 %s17, %s29
      %p111 = scmp.eq.s32.totalorder %s110, 0
      %s113 = sadd.s32 %s112, 1
      %s114 = scalar_select %p111, %s112, %s113
      %p117 = pneg %p111
      %p118 = scmp.eq.s32.totalorder %s10, 3
      %p119 = por %p117, %p118
      %p120 = scmp.ne.s32.totalorder %s112, %s115
      %p121 = scmp.eq.s32.totalorder %s10, 0
      %p122 = por %p120, %p121
      %p123 = scmp.ne.s32.totalorder %s112, %s115
      %p124 = scmp.eq.s32.totalorder %s15, 3
      %p125 = por %p123, %p124
      %p126 = scmp.ne.s32.totalorder %s115, %s116
      %p127 = scmp.eq.s32.totalorder %s15, 0
      %p128 = por %p126, %p127
      %p129 = scmp.ne.s32.totalorder %s115, %s116
      %p130 = scmp.eq.s32.totalorder %s16, 3
      %p131 = por %p129, %p130
      %p133 = scmp.ne.s32.totalorder %s116, %s132
      %p134 = scmp.eq.s32.totalorder %s16, 0
      %p135 = por %p133, %p134
      %p136 = scmp.le.s32.totalorder 1, %s10
      %p137 = scmp.lt.s32.totalorder %s10, 5
      %p138 = pnand %p136, %p137
      %p139 = pneg %p138
      // Predicated region
      $region9: #{patchgan_forward.11} parent=5 // pred_check
        _
      $region10: #{patchgan_forward.11} parent=5 // pred_check_branch
        %141 = sbr.rel (%p138) target = $region12
      $region11: #{patchgan_forward.11} parent=5 // pred_region
        %s142 = ssub.s32 %s10, 1
      $region12: #{patchgan_forward.11} parent=5 // pred_fallthru
        _
      %p143 = scmp.lt.s32.totalorder %s10, 4
      // Predicated region
      $region13: #{patchgan_forward.11} parent=5 // pred_check
        %p144 = pneg %p143
      $region14: #{patchgan_forward.11} parent=5 // pred_check_branch
        %146 = sbr.rel (%p144) target = $region16
      $region15: #{patchgan_forward.11} parent=5 // pred_region
        // Predicated region
        $region17: #{patchgan_forward.11} parent=15 // pred_check
          %p147 = pneg %p44
        $region18: #{patchgan_forward.11} parent=15 // pred_check_branch
          %149 = sbr.rel (%p147) target = $region20
        $region19: #{patchgan_forward.11} parent=15 // pred_region
          %s150 = sand.u32 %s34, 1
          %s151 = sand.u32 %s34, 1
          %s152 = smul.addr %s151, 32
          %s153 = scalar_lea.vmem [#allocation3], %s152
          %s154 = smul.u32 2, %s17
          %s155 = smul.u32 4, %s18
          %s156 = smul.addr %s154, 16
          %s157 = sadd.s32 %s155, %s156
          %s158 = smul.addr %s157, 4
          %s159 = scalar_lea.vmem %s0, %s158
          // Predicated region
          $region21: #{patchgan_forward.11} parent=19 // pred_check
            _
          $region22: #{patchgan_forward.11} parent=19 // pred_check_branch
            %161 = sbr.rel (0) target = $region24
          $region23: #{patchgan_forward.11} parent=19 // pred_region
            // Predicated region
            $region25: #{patchgan_forward.11} parent=23 // pred_check
              _
            $region26: #{patchgan_forward.11} parent=23 // pred_check_branch
              %163 = sbr.rel (0) target = $region28
            $region27: #{patchgan_forward.11} parent=23 // pred_region
              loop: start=0, step=1, limit=1
              $region29: #{patchgan_forward.11} parent=27 // loop_pre_header
                _
              $region30: #{patchgan_forward.11} parent=27 // loop_header
                %s165 = sphi 0, %s169
                %p166 = scmp.ge.s32.totalorder %s165, 1
                %s170 = sphi %s159, %s159
                %s171 = sphi %s153, %s153
              $region31: #{patchgan_forward.11} parent=27 // loop_header_branch
                %168 = sbr.rel (%p166) target = $region35
              $region32: #{patchgan_forward.11} parent=27 // loop_body
                %v172 = vld [vmem:[%s170] sm:$0xff]
                %173 = vst [vmem:[%s171] sm:$0xff] %v172
                %v174 = vld [vmem:[%s170 + $0x8] sm:$0xff]
                %175 = vst [vmem:[%s171 + $0x8] sm:$0xff] %v174
                %v176 = vld [vmem:[%s170 + $0x40] sm:$0xff]
                %177 = vst [vmem:[%s171 + $0x10] sm:$0xff] %v176
                %v178 = vld [vmem:[%s170 + $0x48] sm:$0xff]
                %179 = vst [vmem:[%s171 + $0x18] sm:$0xff] %v178
              $region33: #{patchgan_forward.11} parent=27 // loop_footer
                %s169 = sadd.s32 1, %s165
              $region34: #{patchgan_forward.11} parent=27 // loop_footer_branch
                %164 = sbr.rel target = $region30
              $region35: #{patchgan_forward.11} parent=27 // loop_exit
                _
            $region28: #{patchgan_forward.11} parent=23 // pred_fallthru
              _
            // Predicated region
            $region36: #{patchgan_forward.11} parent=23 // pred_check
              _
            $region37: #{patchgan_forward.11} parent=23 // pred_check_branch
              %181 = sbr.rel target = $region39
            $region38: #{patchgan_forward.11} parent=23 // pred_region
              _
            $region39: #{patchgan_forward.11} parent=23 // pred_fallthru
              _
          $region24: #{patchgan_forward.11} parent=19 // pred_fallthru
            _
          %182 = vnop
        $region20: #{patchgan_forward.11} parent=15 // pred_fallthru
          _
        // Predicated region
        $region40: #{patchgan_forward.11} parent=15 // pred_check
          %p183 = pneg %p70
        $region41: #{patchgan_forward.11} parent=15 // pred_check_branch
          %185 = sbr.rel (%p183) target = $region43
        $region42: #{patchgan_forward.11} parent=15 // pred_region
          %s186 = smul.u32 64, %s18
          %p187 = scmp.lt.s32.totalorder %s186, 255
          %s188 = scalar_select %p187, %s186, 255
          %s189 = smul.addr %s188, 2
          %s190 = smul.addr %s189, 4
          %s191 = scalar_lea.vmem %s1, %s190
          %s192 = smul.u32 64, %s18
        $region43: #{patchgan_forward.11} parent=15 // pred_fallthru
          _
      $region16: #{patchgan_forward.11} parent=5 // pred_fallthru
        _
      %p193 = scmp.le.s32.totalorder 1, %s10
      %p194 = scmp.lt.s32.totalorder %s10, 5
      %p195 = pnand %p193, %p194
      %p196 = pneg %p195
      // Predicated region
      $region44: #{patchgan_forward.11} parent=5 // pred_check
        _
      $region45: #{patchgan_forward.11} parent=5 // pred_check_branch
        %198 = sbr.rel (%p195) target = $region47
      $region46: #{patchgan_forward.11} parent=5 // pred_region
        %s199 = ssub.s32 %s10, 1
        %s200 = sand.u32 %s37, 1
        %s201 = sand.u32 %s37, 1
        %s202 = smul.addr %s201, 32
        %s203 = scalar_lea.vmem [#allocation3], %s202
        // Predicated region
        $region48: #{patchgan_forward.11} parent=46 // pred_check
          %p204 = pneg %p50
        $region49: #{patchgan_forward.11} parent=46 // pred_check_branch
          %206 = sbr.rel (%p204) target = $region51
        $region50: #{patchgan_forward.11} parent=46 // pred_region
          _
        $region51: #{patchgan_forward.11} parent=46 // pred_fallthru
          _
        %s207 = sand.u32 %s37, 1
        %s208 = sand.u32 %s37, 1
        %s209 = smul.addr %s208, 32
        %s210 = scalar_lea.vmem [#allocation3], %s209
        %p211 = pneg %p50
        %p212 = pneg %p47
        %s213 = smul.u32 64, %s20
        %p214 = scmp.lt.s32.totalorder %s213, 255
        %s215 = scalar_select %p214, %s213, 255
        %s216 = smul.addr %s215, 2
        %s217 = smul.addr %s216, 4
        %s218 = scalar_lea.vmem %s1, %s217
        %p219 = pneg %p76
        %p220 = pneg %p73
        %p221 = pneg %p102
        %p222 = pneg %p99
        %s223 = smul.u32 2, %s19
        %p224 = scmp.lt.s32.totalorder %s223, 1
        %s225 = scalar_select %p224, %s223, 1
        %s226 = smul.addr %s225, 2
        %s227 = smul.addr %s226, 8
        %s228 = scalar_lea.vmem %s2, %s227
        %p229 = pneg %p128
        %p230 = pneg %p125
        %p231 = scmp.lt.s32.totalorder %s19, 0
        %s232 = scalar_select %p231, %s19, 0
        %s233 = smul.addr %s232, 2
        %s234 = smul.addr %s233, 2
        %s235 = scalar_lea.vmem %s3, %s234
        %s236 = smul.u32 2, %s19
        %s237 = smul.u32 4, %s20
        %s238 = smul.u32 64, %s20
        %p239 = scmp.lt.s32.totalorder %s238, 255
        %s240 = scalar_select %p239, %s238, 255
        %s241 = smul.addr %s240, 2
        %s242 = smul.addr %s241, 4
        %s243 = scalar_lea.vmem %s1, %s242
        %s244 = smul.u32 64, %s20
        %s245 = smul.u32 2, %s19
        %p246 = scmp.lt.s32.totalorder %s245, 1
        %s247 = scalar_select %p246, %s245, 1
        %s248 = smul.addr %s247, 2
        %s249 = smul.addr %s248, 8
        %s250 = scalar_lea.vmem %s2, %s249
        %s251 = smul.u32 2, %s19
        %p252 = scmp.lt.s32.totalorder %s19, 0
        %s253 = scalar_select %p252, %s19, 0
        %s254 = smul.addr %s253, 2
        %s255 = smul.addr %s254, 2
        %s256 = scalar_lea.vmem %s3, %s255
        %p257 = scmp.eq.s32.totalorder %s20, 0
        // Predicated region
        $region52: #{patchgan_forward.11} parent=46 // pred_check
          %p258 = pneg %p257
        $region53: #{patchgan_forward.11} parent=46 // pred_check_branch
          %260 = sbr.rel (%p258) target = $region55
        $region54: #{patchgan_forward.11} parent=46 // pred_region
          %261 = vst [vmem:[#allocation2] sm:$0xff] 0.0
          %262 = vst [vmem:[#allocation2 + $0x8] sm:$0xff] 0.0
          %263 = vst [vmem:[#allocation2 + $0x10] sm:$0xff] 0.0
          %264 = vst [vmem:[#allocation2 + $0x18] sm:$0xff] 0.0
        $region55: #{patchgan_forward.11} parent=46 // pred_fallthru
          _
        %v265 = vld [vmem:[#allocation2] sm:$0xff]
        %v266 = vld [vmem:[#allocation2 + $0x8] sm:$0xff]
        %v267 = vld [vmem:[#allocation2 + $0x10] sm:$0xff]
        %v268 = vld [vmem:[#allocation2 + $0x18] sm:$0xff]
        %v269 = vld [vmem:[%s203] sm:$0xff]
        %v270 = vld [vmem:[%s203 + $0x8] sm:$0xff]
        %v271 = vld [vmem:[%s203 + $0x10] sm:$0xff]
        %v272 = vld [vmem:[%s203 + $0x18] sm:$0xff]
        %v273 = vld [vmem:[%s243] sm:$0xff]
        %v274 = vld [vmem:[%s243 + $0x8] sm:$0xff]
        %v275 = vld [vmem:[%s243 + $0x10] sm:$0xff]
        %v276 = vld [vmem:[%s243 + $0x18] sm:$0xff]
        %v277 = vld [vmem:[%s243 + $0x20] sm:$0xff]
        %v278 = vld [vmem:[%s243 + $0x28] sm:$0xff]
        %v279 = vld [vmem:[%s243 + $0x30] sm:$0xff]
        %v280 = vld [vmem:[%s243 + $0x38] sm:$0xff]
        %v281 = vld [vmem:[%s243 + $0x40] sm:$0xff]
        %v282 = vld [vmem:[%s243 + $0x48] sm:$0xff]
        %v283 = vld [vmem:[%s243 + $0x50] sm:$0xff]
        %v284 = vld [vmem:[%s243 + $0x58] sm:$0xff]
        %v285 = vld [vmem:[%s243 + $0x60] sm:$0xff]
        %v286 = vld [vmem:[%s243 + $0x68] sm:$0xff]
        %v287 = vld [vmem:[%s243 + $0x70] sm:$0xff]
        %v288 = vld [vmem:[%s243 + $0x78] sm:$0xff]
        %v289 = vld [vmem:[%s243 + $0x80] sm:$0xff]
        %v290 = vld [vmem:[%s243 + $0x88] sm:$0xff]
        %v291 = vld [vmem:[%s243 + $0x90] sm:$0xff]
        %v292 = vld [vmem:[%s243 + $0x98] sm:$0xff]
        %v293 = vld [vmem:[%s243 + $0xa0] sm:$0xff]
        %v294 = vld [vmem:[%s243 + $0xa8] sm:$0xff]
        %v295 = vld [vmem:[%s243 + $0xb0] sm:$0xff]
        %v296 = vld [vmem:[%s243 + $0xb8] sm:$0xff]
        %v297 = vld [vmem:[%s243 + $0xc0] sm:$0xff]
        %v298 = vld [vmem:[%s243 + $0xc8] sm:$0xff]
        %v299 = vld [vmem:[%s243 + $0xd0] sm:$0xff]
        %v300 = vld [vmem:[%s243 + $0xd8] sm:$0xff]
        %v301 = vld [vmem:[%s243 + $0xe0] sm:$0xff]
        %v302 = vld [vmem:[%s243 + $0xe8] sm:$0xff]
        %v303 = vld [vmem:[%s243 + $0xf0] sm:$0xff]
        %v304 = vld [vmem:[%s243 + $0xf8] sm:$0xff]
        %v305 = vld [vmem:[%s243 + $0x100] sm:$0xff]
        %v306 = vld [vmem:[%s243 + $0x108] sm:$0xff]
        %v307 = vld [vmem:[%s243 + $0x110] sm:$0xff]
        %v308 = vld [vmem:[%s243 + $0x118] sm:$0xff]
        %v309 = vld [vmem:[%s243 + $0x120] sm:$0xff]
        %v310 = vld [vmem:[%s243 + $0x128] sm:$0xff]
        %v311 = vld [vmem:[%s243 + $0x130] sm:$0xff]
        %v312 = vld [vmem:[%s243 + $0x138] sm:$0xff]
        %v313 = vld [vmem:[%s243 + $0x140] sm:$0xff]
        %v314 = vld [vmem:[%s243 + $0x148] sm:$0xff]
        %v315 = vld [vmem:[%s243 + $0x150] sm:$0xff]
        %v316 = vld [vmem:[%s243 + $0x158] sm:$0xff]
        %v317 = vld [vmem:[%s243 + $0x160] sm:$0xff]
        %v318 = vld [vmem:[%s243 + $0x168] sm:$0xff]
        %v319 = vld [vmem:[%s243 + $0x170] sm:$0xff]
        %v320 = vld [vmem:[%s243 + $0x178] sm:$0xff]
        %v321 = vld [vmem:[%s243 + $0x180] sm:$0xff]
        %v322 = vld [vmem:[%s243 + $0x188] sm:$0xff]
        %v323 = vld [vmem:[%s243 + $0x190] sm:$0xff]
        %v324 = vld [vmem:[%s243 + $0x198] sm:$0xff]
        %v325 = vld [vmem:[%s243 + $0x1a0] sm:$0xff]
        %v326 = vld [vmem:[%s243 + $0x1a8] sm:$0xff]
        %v327 = vld [vmem:[%s243 + $0x1b0] sm:$0xff]
        %v328 = vld [vmem:[%s243 + $0x1b8] sm:$0xff]
        %v329 = vld [vmem:[%s243 + $0x1c0] sm:$0xff]
        %v330 = vld [vmem:[%s243 + $0x1c8] sm:$0xff]
        %v331 = vld [vmem:[%s243 + $0x1d0] sm:$0xff]
        %v332 = vld [vmem:[%s243 + $0x1d8] sm:$0xff]
        %v333 = vld [vmem:[%s243 + $0x1e0] sm:$0xff]
        %v334 = vld [vmem:[%s243 + $0x1e8] sm:$0xff]
        %v335 = vld [vmem:[%s243 + $0x1f0] sm:$0xff]
        %v336 = vld [vmem:[%s243 + $0x1f8] sm:$0xff]
        %v341 = vunpack.c.l.b16 %v269
        %v342 = vunpack.c.h.b16 %v269
        %v343 = vunpack.c.l.b16 %v270
        %v344 = vunpack.c.h.b16 %v270
        %v345 = vunpack.c.l.b16 %v271
        %v346 = vunpack.c.h.b16 %v271
        %v347 = vunpack.c.l.b16 %v272
        %v348 = vunpack.c.h.b16 %v272
        %v349 = vpack.c.b16 %v345, %v341
        %v350 = vpack.c.b16 %v346, %v342
        %v351 = vpack.c.b16 %v347, %v343
        %v352 = vpack.c.b16 %v348, %v344
        %v421 = vunpack.c.l.b16 %v273
        %v422 = vunpack.c.h.b16 %v273
        %v423 = vunpack.c.l.b16 %v274
        %v424 = vunpack.c.h.b16 %v274
        %v425 = vunpack.c.l.b16 %v275
        %v426 = vunpack.c.h.b16 %v275
        %v427 = vunpack.c.l.b16 %v276
        %v428 = vunpack.c.h.b16 %v276
        %v429 = vunpack.c.l.b16 %v277
        %v430 = vunpack.c.h.b16 %v277
        %v431 = vunpack.c.l.b16 %v278
        %v432 = vunpack.c.h.b16 %v278
        %v433 = vunpack.c.l.b16 %v279
        %v434 = vunpack.c.h.b16 %v279
        %v435 = vunpack.c.l.b16 %v280
        %v436 = vunpack.c.h.b16 %v280
        %v437 = vunpack.c.l.b16 %v281
        %v438 = vunpack.c.h.b16 %v281
        %v439 = vunpack.c.l.b16 %v282
        %v440 = vunpack.c.h.b16 %v282
        %v441 = vunpack.c.l.b16 %v283
        %v442 = vunpack.c.h.b16 %v283
        %v443 = vunpack.c.l.b16 %v284
        %v444 = vunpack.c.h.b16 %v284
        %v445 = vunpack.c.l.b16 %v285
        %v446 = vunpack.c.h.b16 %v285
        %v447 = vunpack.c.l.b16 %v286
        %v448 = vunpack.c.h.b16 %v286
        %v449 = vunpack.c.l.b16 %v287
        %v450 = vunpack.c.h.b16 %v287
        %v451 = vunpack.c.l.b16 %v288
        %v452 = vunpack.c.h.b16 %v288
        %v453 = vunpack.c.l.b16 %v289
        %v454 = vunpack.c.h.b16 %v289
        %v455 = vunpack.c.l.b16 %v290
        %v456 = vunpack.c.h.b16 %v290
        %v457 = vunpack.c.l.b16 %v291
        %v458 = vunpack.c.h.b16 %v291
        %v459 = vunpack.c.l.b16 %v292
        %v460 = vunpack.c.h.b16 %v292
        %v461 = vunpack.c.l.b16 %v293
        %v462 = vunpack.c.h.b16 %v293
        %v463 = vunpack.c.l.b16 %v294
        %v464 = vunpack.c.h.b16 %v294
        %v465 = vunpack.c.l.b16 %v295
        %v466 = vunpack.c.h.b16 %v295
        %v467 = vunpack.c.l.b16 %v296
        %v468 = vunpack.c.h.b16 %v296
        %v469 = vunpack.c.l.b16 %v297
        %v470 = vunpack.c.h.b16 %v297
        %v471 = vunpack.c.l.b16 %v298
        %v472 = vunpack.c.h.b16 %v298
        %v473 = vunpack.c.l.b16 %v299
        %v474 = vunpack.c.h.b16 %v299
        %v475 = vunpack.c.l.b16 %v300
        %v476 = vunpack.c.h.b16 %v300
        %v477 = vunpack.c.l.b16 %v301
        %v478 = vunpack.c.h.b16 %v301
        %v479 = vunpack.c.l.b16 %v302
        %v480 = vunpack.c.h.b16 %v302
        %v481 = vunpack.c.l.b16 %v303
        %v482 = vunpack.c.h.b16 %v303
        %v483 = vunpack.c.l.b16 %v304
        %v484 = vunpack.c.h.b16 %v304
        %v485 = vunpack.c.l.b16 %v305
        %v486 = vunpack.c.h.b16 %v305
        %v487 = vunpack.c.l.b16 %v306
        %v488 = vunpack.c.h.b16 %v306
        %v489 = vunpack.c.l.b16 %v307
        %v490 = vunpack.c.h.b16 %v307
        %v491 = vunpack.c.l.b16 %v308
        %v492 = vunpack.c.h.b16 %v308
        %v493 = vunpack.c.l.b16 %v309
        %v494 = vunpack.c.h.b16 %v309
        %v495 = vunpack.c.l.b16 %v310
        %v496 = vunpack.c.h.b16 %v310
        %v497 = vunpack.c.l.b16 %v311
        %v498 = vunpack.c.h.b16 %v311
        %v499 = vunpack.c.l.b16 %v312
        %v500 = vunpack.c.h.b16 %v312
        %v501 = vunpack.c.l.b16 %v313
        %v502 = vunpack.c.h.b16 %v313
        %v503 = vunpack.c.l.b16 %v314
        %v504 = vunpack.c.h.b16 %v314
        %v505 = vunpack.c.l.b16 %v315
        %v506 = vunpack.c.h.b16 %v315
        %v507 = vunpack.c.l.b16 %v316
        %v508 = vunpack.c.h.b16 %v316
        %v509 = vunpack.c.l.b16 %v317
        %v510 = vunpack.c.h.b16 %v317
        %v511 = vunpack.c.l.b16 %v318
        %v512 = vunpack.c.h.b16 %v318
        %v513 = vunpack.c.l.b16 %v319
        %v514 = vunpack.c.h.b16 %v319
        %v515 = vunpack.c.l.b16 %v320
        %v516 = vunpack.c.h.b16 %v320
        %v517 = vunpack.c.l.b16 %v321
        %v518 = vunpack.c.h.b16 %v321
        %v519 = vunpack.c.l.b16 %v322
        %v520 = vunpack.c.h.b16 %v322
        %v521 = vunpack.c.l.b16 %v323
        %v522 = vunpack.c.h.b16 %v323
        %v523 = vunpack.c.l.b16 %v324
        %v524 = vunpack.c.h.b16 %v324
        %v525 = vunpack.c.l.b16 %v325
        %v526 = vunpack.c.h.b16 %v325
        %v527 = vunpack.c.l.b16 %v326
        %v528 = vunpack.c.h.b16 %v326
        %v529 = vunpack.c.l.b16 %v327
        %v530 = vunpack.c.h.b16 %v327
        %v531 = vunpack.c.l.b16 %v328
        %v532 = vunpack.c.h.b16 %v328
        %v533 = vunpack.c.l.b16 %v329
        %v534 = vunpack.c.h.b16 %v329
        %v535 = vunpack.c.l.b16 %v330
        %v536 = vunpack.c.h.b16 %v330
        %v537 = vunpack.c.l.b16 %v331
        %v538 = vunpack.c.h.b16 %v331
        %v539 = vunpack.c.l.b16 %v332
        %v540 = vunpack.c.h.b16 %v332
        %v541 = vunpack.c.l.b16 %v333
        %v542 = vunpack.c.h.b16 %v333
        %v543 = vunpack.c.l.b16 %v334
        %v544 = vunpack.c.h.b16 %v334
        %v545 = vunpack.c.l.b16 %v335
        %v546 = vunpack.c.h.b16 %v335
        %v547 = vunpack.c.l.b16 %v336
        %v548 = vunpack.c.h.b16 %v336
        %v549 = vpack.c.b16 %v423, %v421
        %v550 = vpack.c.b16 %v424, %v422
        %v551 = vpack.c.b16 %v427, %v425
        %v552 = vpack.c.b16 %v428, %v426
        %v553 = vpack.c.b16 %v431, %v429
        %v554 = vpack.c.b16 %v432, %v430
        %v555 = vpack.c.b16 %v435, %v433
        %v556 = vpack.c.b16 %v436, %v434
        %v557 = vpack.c.b16 %v439, %v437
        %v558 = vpack.c.b16 %v440, %v438
        %v559 = vpack.c.b16 %v443, %v441
        %v560 = vpack.c.b16 %v444, %v442
        %v561 = vpack.c.b16 %v447, %v445
        %v562 = vpack.c.b16 %v448, %v446
        %v563 = vpack.c.b16 %v451, %v449
        %v564 = vpack.c.b16 %v452, %v450
        %v565 = vpack.c.b16 %v455, %v453
        %v566 = vpack.c.b16 %v456, %v454
        %v567 = vpack.c.b16 %v459, %v457
        %v568 = vpack.c.b16 %v460, %v458
        %v569 = vpack.c.b16 %v463, %v461
        %v570 = vpack.c.b16 %v464, %v462
        %v571 = vpack.c.b16 %v467, %v465
        %v572 = vpack.c.b16 %v468, %v466
        %v573 = vpack.c.b16 %v471, %v469
        %v574 = vpack.c.b16 %v472, %v470
        %v575 = vpack.c.b16 %v475, %v473
        %v576 = vpack.c.b16 %v476, %v474
        %v577 = vpack.c.b16 %v479, %v477
        %v578 = vpack.c.b16 %v480, %v478
        %v579 = vpack.c.b16 %v483, %v481
        %v580 = vpack.c.b16 %v484, %v482
        %v581 = vpack.c.b16 %v487, %v485
        %v582 = vpack.c.b16 %v488, %v486
        %v583 = vpack.c.b16 %v491, %v489
        %v584 = vpack.c.b16 %v492, %v490
        %v585 = vpack.c.b16 %v495, %v493
        %v586 = vpack.c.b16 %v496, %v494
        %v587 = vpack.c.b16 %v499, %v497
        %v588 = vpack.c.b16 %v500, %v498
        %v589 = vpack.c.b16 %v503, %v501
        %v590 = vpack.c.b16 %v504, %v502
        %v591 = vpack.c.b16 %v507, %v505
        %v592 = vpack.c.b16 %v508, %v506
        %v593 = vpack.c.b16 %v511, %v509
        %v594 = vpack.c.b16 %v512, %v510
        %v595 = vpack.c.b16 %v515, %v513
        %v596 = vpack.c.b16 %v516, %v514
        %v597 = vpack.c.b16 %v519, %v517
        %v598 = vpack.c.b16 %v520, %v518
        %v599 = vpack.c.b16 %v523, %v521
        %v600 = vpack.c.b16 %v524, %v522
        %v601 = vpack.c.b16 %v527, %v525
        %v602 = vpack.c.b16 %v528, %v526
        %v603 = vpack.c.b16 %v531, %v529
        %v604 = vpack.c.b16 %v532, %v530
        %v605 = vpack.c.b16 %v535, %v533
        %v606 = vpack.c.b16 %v536, %v534
        %v607 = vpack.c.b16 %v539, %v537
        %v608 = vpack.c.b16 %v540, %v538
        %v609 = vpack.c.b16 %v543, %v541
        %v610 = vpack.c.b16 %v544, %v542
        %v611 = vpack.c.b16 %v547, %v545
        %v612 = vpack.c.b16 %v548, %v546
        %677 = vmatprep.subr.bf16.mxu0 %v550
        %678 = vmatpush1.bf16.msra.mxu0 %v549
        %679 = vmatprep.subr.bf16.mxu0 %v552
        %680 = vmatpush1.bf16.msra.mxu0 %v551
        %681 = vmatprep.subr.bf16.mxu0 %v554
        %682 = vmatpush1.bf16.msra.mxu0 %v553
        %683 = vmatprep.subr.bf16.mxu0 %v556
        %684 = vmatpush1.bf16.msra.mxu0 %v555
        %685 = vmatprep.subr.bf16.mxu0 %v558
        %686 = vmatpush1.bf16.msra.mxu0 %v557
        %687 = vmatprep.subr.bf16.mxu0 %v560
        %688 = vmatpush1.bf16.msra.mxu0 %v559
        %689 = vmatprep.subr.bf16.mxu0 %v562
        %690 = vmatpush1.bf16.msra.mxu0 %v561
        %691 = vmatprep.subr.bf16.mxu0 %v564
        %692 = vmatpush1.bf16.msra.mxu0 %v563
        %693 = vmatprep.subr.bf16.mxu0 %v566
        %694 = vmatpush1.bf16.msra.mxu0 %v565
        %695 = vmatprep.subr.bf16.mxu0 %v568
        %696 = vmatpush1.bf16.msra.mxu0 %v567
        %697 = vmatprep.subr.bf16.mxu0 %v570
        %698 = vmatpush1.bf16.msra.mxu0 %v569
        %699 = vmatprep.subr.bf16.mxu0 %v572
        %700 = vmatpush1.bf16.msra.mxu0 %v571
        %701 = vmatprep.subr.bf16.mxu0 %v574
        %702 = vmatpush1.bf16.msra.mxu0 %v573
        %703 = vmatprep.subr.bf16.mxu0 %v576
        %704 = vmatpush1.bf16.msra.mxu0 %v575
        %705 = vmatprep.subr.bf16.mxu0 %v578
        %706 = vmatpush1.bf16.msra.mxu0 %v577
        %707 = vmatprep.subr.bf16.mxu0 %v580
        %708 = vmatpush1.bf16.msra.mxu0 %v579
        %709 = vmatprep.mubr.bf16.mxu0 %v350
        %710 = vmatmul.mubr.bf16.gmra.mrb[0].mxu0 %v349
        %v711 = vpop.f32.mrb[0].mxu0
        %v712 = vadd.f32 0.0, %v711
        %v713 = vpop.f32.mrb[0].mxu0
        %v714 = vadd.f32 0.0, %v713
        %v715 = vpop.f32.mrb[0].mxu0
        %v716 = vadd.f32 0.0, %v715
        %v717 = vpop.f32.mrb[0].mxu0
        %v718 = vadd.f32 0.0, %v717
        %719 = vdwg.mxu0
        %720 = vmatprep.subr.bf16.mxu0 %v582
        %721 = vmatpush1.bf16.msra.mxu0 %v581
        %722 = vmatprep.subr.bf16.mxu0 %v584
        %723 = vmatpush1.bf16.msra.mxu0 %v583
        %724 = vmatprep.subr.bf16.mxu0 %v586
        %725 = vmatpush1.bf16.msra.mxu0 %v585
        %726 = vmatprep.subr.bf16.mxu0 %v588
        %727 = vmatpush1.bf16.msra.mxu0 %v587
        %728 = vmatprep.subr.bf16.mxu0 %v590
        %729 = vmatpush1.bf16.msra.mxu0 %v589
        %730 = vmatprep.subr.bf16.mxu0 %v592
        %731 = vmatpush1.bf16.msra.mxu0 %v591
        %732 = vmatprep.subr.bf16.mxu0 %v594
        %733 = vmatpush1.bf16.msra.mxu0 %v593
        %734 = vmatprep.subr.bf16.mxu0 %v596
        %735 = vmatpush1.bf16.msra.mxu0 %v595
        %736 = vmatprep.subr.bf16.mxu0 %v598
        %737 = vmatpush1.bf16.msra.mxu0 %v597
        %738 = vmatprep.subr.bf16.mxu0 %v600
        %739 = vmatpush1.bf16.msra.mxu0 %v599
        %740 = vmatprep.subr.bf16.mxu0 %v602
        %741 = vmatpush1.bf16.msra.mxu0 %v601
        %742 = vmatprep.subr.bf16.mxu0 %v604
        %743 = vmatpush1.bf16.msra.mxu0 %v603
        %744 = vmatprep.subr.bf16.mxu0 %v606
        %745 = vmatpush1.bf16.msra.mxu0 %v605
        %746 = vmatprep.subr.bf16.mxu0 %v608
        %747 = vmatpush1.bf16.msra.mxu0 %v607
        %748 = vmatprep.subr.bf16.mxu0 %v610
        %749 = vmatpush1.bf16.msra.mxu0 %v609
        %750 = vmatprep.subr.bf16.mxu0 %v612
        %751 = vmatpush1.bf16.msra.mxu0 %v611
        %752 = vmatprep.mubr.bf16.mxu0 %v352
        %753 = vmatmul.mubr.bf16.gmra.mrb[0].mxu0 %v351
        %v754 = vpop.f32.mrb[0].mxu0
        %v755 = vadd.f32 %v712, %v754
        %v756 = vpop.f32.mrb[0].mxu0
        %v757 = vadd.f32 %v714, %v756
        %v758 = vpop.f32.mrb[0].mxu0
        %v759 = vadd.f32 %v716, %v758
        %v760 = vpop.f32.mrb[0].mxu0
        %v761 = vadd.f32 %v718, %v760
        %762 = vdwg.mxu0
        %v763 = vadd.f32 %v265, %v755
        %v764 = vadd.f32 %v266, %v757
        %v765 = vadd.f32 %v267, %v759
        %v766 = vadd.f32 %v268, %v761
        %767 = vst [vmem:[#allocation2] sm:$0xff] %v763
        %768 = vst [vmem:[#allocation2 + $0x8] sm:$0xff] %v764
        %769 = vst [vmem:[#allocation2 + $0x10] sm:$0xff] %v765
        %770 = vst [vmem:[#allocation2 + $0x18] sm:$0xff] %v766
        %p771 = scmp.eq.s32.totalorder %s20, 3
        // Predicated region
        $region56: #{patchgan_forward.11} parent=46 // pred_check
          %p772 = pneg %p771
        $region57: #{patchgan_forward.11} parent=46 // pred_check_branch
          %774 = sbr.rel (%p772) target = $region59
        $region58: #{patchgan_forward.11} parent=46 // pred_region
          %v775 = vld [vmem:[#allocation2] sm:$0xff]
          %v776 = vld [vmem:[#allocation2 + $0x8] sm:$0xff]
          %v777 = vld [vmem:[#allocation2 + $0x10] sm:$0xff]
          %v778 = vld [vmem:[#allocation2 + $0x18] sm:$0xff]
          %779 = vst [vmem:[%s250] sm:$0xff] %v775
          %780 = vst [vmem:[%s250 + $0x8] sm:$0xff] %v776
          %781 = vst [vmem:[%s250 + $0x10] sm:$0xff] %v777
          %782 = vst [vmem:[%s250 + $0x18] sm:$0xff] %v778
          %v783 = vadd.f32 %v775, %v777
          %v784 = vrot.slane %v783, 4
          %v785 = vadd.f32 %v783, %v784
          %v786 = vrot.slane %v785, 2
          %v787 = vadd.f32 %v785, %v786
          %v788 = vrot.slane %v787, 1
          %v789 = vadd.f32 %v787, %v788
          %v790 = vadd.f32 %v776, %v778
          %v791 = vrot.slane %v790, 4
          %v792 = vadd.f32 %v790, %v791
          %v793 = vrot.slane %v792, 2
          %v794 = vadd.f32 %v792, %v793
          %v795 = vrot.slane %v794, 1
          %v796 = vadd.f32 %v794, %v795
          %v799 = vcombine.low %v789, %v796
          %v801 = vunpack.c.l.s4 1966171168
          %v802 = vunpack.c.0.s8 %v801
          %v803 = vlaneseq
          %v804 = vshrl.u32 %v803, 7
          %v805 = vsub.s32 %v802, %v804
          %v806 = vrot.slane %v799, %v805
          %v808 = vunpack.c.l.s4 1966171168
          %v809 = vunpack.c.0.s8 %v808
          %v810 = vlaneseq
          %v811 = vshrl.u32 %v810, 7
          %v812 = vsub.s32 %v809, %v811
          %v813 = vrot.slane %v806, %v812
          %v815 = vlaneseq
          %vm816 = vcmp.ge.s32.totalorder %v815, 0
          %vm817 = vcmp.lt.s32.totalorder %v815, 256
          %vm818 = vmand %vm816, %vm817
          %819 = vst.msk [vmem:[%s256] ss:$2 sm:$0x3] %vm818, %v813
          %v820 = vmul.f32 %v775, %v775
          %v821 = vmul.f32 %v776, %v776
          %v822 = vmul.f32 %v777, %v777
          %v823 = vmul.f32 %v778, %v778
          %v824 = vadd.f32 %v820, %v822
          %v825 = vrot.slane %v824, 4
          %v826 = vadd.f32 %v824, %v825
          %v827 = vrot.slane %v826, 2
          %v828 = vadd.f32 %v826, %v827
          %v829 = vrot.slane %v828, 1
          %v830 = vadd.f32 %v828, %v829
          %v831 = vadd.f32 %v821, %v823
          %v832 = vrot.slane %v831, 4
          %v833 = vadd.f32 %v831, %v832
          %v834 = vrot.slane %v833, 2
          %v835 = vadd.f32 %v833, %v834
          %v836 = vrot.slane %v835, 1
          %v837 = vadd.f32 %v835, %v836
          %v840 = vcombine.low %v830, %v837
          %v842 = vunpack.c.l.s4 1966171168
          %v843 = vunpack.c.0.s8 %v842
          %v844 = vlaneseq
          %v845 = vshrl.u32 %v844, 7
          %v846 = vsub.s32 %v843, %v845
          %v847 = vrot.slane %v840, %v846
          %v849 = vunpack.c.l.s4 1966171168
          %v850 = vunpack.c.0.s8 %v849
          %v851 = vlaneseq
          %v852 = vshrl.u32 %v851, 7
          %v853 = vsub.s32 %v850, %v852
          %v854 = vrot.slane %v847, %v853
          %s856 = scalar_lea.vmem %s256, 1
          %857 = vst.msk [vmem:[%s856] ss:$2 sm:$0x3] %vm818, %v854
        $region59: #{patchgan_forward.11} parent=46 // pred_fallthru
          _
        %s858 = smul.u32 2, %s19
        %p859 = scmp.lt.s32.totalorder %s858, 1
        %s860 = scalar_select %p859, %s858, 1
        %s861 = smul.addr %s860, 2
        %s862 = smul.addr %s861, 8
        %s863 = scalar_lea.vmem %s2, %s862
        %p864 = scmp.lt.s32.totalorder %s19, 0
        %s865 = scalar_select %p864, %s19, 0
        %s866 = smul.addr %s865, 2
        %s867 = smul.addr %s866, 2
        %s868 = scalar_lea.vmem %s3, %s867
        // Predicated region
        $region60: #{patchgan_forward.11} parent=46 // pred_check
          %p869 = pneg %p99
        $region61: #{patchgan_forward.11} parent=46 // pred_check_branch
          %871 = sbr.rel (%p869) target = $region63
        $region62: #{patchgan_forward.11} parent=46 // pred_region
          %s872 = smul.u32 2, %s19
        $region63: #{patchgan_forward.11} parent=46 // pred_fallthru
          _
        // Predicated region
        $region64: #{patchgan_forward.11} parent=46 // pred_check
          %p873 = pneg %p125
        $region65: #{patchgan_forward.11} parent=46 // pred_check_branch
          %875 = sbr.rel (%p873) target = $region67
        $region66: #{patchgan_forward.11} parent=46 // pred_region
          _
        $region67: #{patchgan_forward.11} parent=46 // pred_fallthru
          _
        // Predicated region
        $region68: #{patchgan_forward.11} parent=46 // pred_check
          %p876 = pneg %p99
        $region69: #{patchgan_forward.11} parent=46 // pred_check_branch
          %878 = sbr.rel (%p876) target = $region71
        $region70: #{patchgan_forward.11} parent=46 // pred_region
          %s879 = smul.u32 2, %s19
          %p880 = scmp.lt.s32.totalorder %s879, 1
          %s881 = scalar_select %p880, %s879, 1
          %s882 = smul.addr %s881, 2
          %s883 = smul.addr %s882, 8
          %s884 = scalar_lea.vmem %s2, %s883
        $region71: #{patchgan_forward.11} parent=46 // pred_fallthru
          _
        // Predicated region
        $region72: #{patchgan_forward.11} parent=46 // pred_check
          %p885 = pneg %p125
        $region73: #{patchgan_forward.11} parent=46 // pred_check_branch
          %887 = sbr.rel (%p885) target = $region75
        $region74: #{patchgan_forward.11} parent=46 // pred_region
          %p888 = scmp.lt.s32.totalorder %s19, 0
          %s889 = scalar_select %p888, %s19, 0
          %s890 = smul.addr %s889, 2
          %s891 = smul.addr %s890, 2
          %s892 = scalar_lea.vmem %s3, %s891
        $region75: #{patchgan_forward.11} parent=46 // pred_fallthru
          _
      $region47: #{patchgan_forward.11} parent=5 // pred_fallthru
        _
      %p893 = scmp.le.s32.totalorder 2, %s10
      // Predicated region
      $region76: #{patchgan_forward.11} parent=5 // pred_check
        %p894 = pneg %p893
      $region77: #{patchgan_forward.11} parent=5 // pred_check_branch
        %896 = sbr.rel (%p894) target = $region79
      $region78: #{patchgan_forward.11} parent=5 // pred_region
        %s897 = ssub.s32 %s10, 2
      $region79: #{patchgan_forward.11} parent=5 // pred_fallthru
        _
    $region6: #{patchgan_forward.11} parent=1 // loop_footer
      %s14 = sadd.s32 1, %s10
    $region7: #{patchgan_forward.11} parent=1 // loop_footer_branch
      %9 = sbr.rel target = $region3
    $region8: #{patchgan_forward.11} parent=1 // loop_exit
      _

// kernel: patchgan_forward.13
$region0: #{patchgan_forward.13}
  #allocation0 [shape = 'u32[]', space=smem, size = 0x4, offset = 0x4, fixed_abs, tag = 'smem constant byte address 0x4 - core index']
  #allocation1 [shape = 'u32[144,128]{1,0:T(1,128)}', space=vmem, size = 0x12000, scoped, tag = 'internal scratch']
  #allocation2 [shape = 'f32[16,512]{1,0:T(8,128)}', space=vmem, size = 0x8000, scoped, tag = 'scratch operand']
  %s0 = inlined_call_operand.vmem [shape: bf16[16,4096], index: 0, kind: input, shape index: {}]
  %s1 = inlined_call_operand.vmem [shape: bf16[4096,512], index: 1, kind: input, shape index: {}]
  %s2 = inlined_call_operand.vmem [shape: f32[16,512], index: 2, kind: output, shape index: {0}]
  %s3 = inlined_call_operand.vmem [shape: f32[1,2,512], index: 3, kind: output, shape index: {1}]
  %4 = xla_tuple %s2, %s3
  %s5 = sld [smem:[#allocation0]]
  $region80: #{patchgan_forward.13} parent=0
    _
  %s7 = ssub.s32 1, %s5
  %s8 = scalar_select 0, %s7, %s5
  $region1: #{patchgan_forward.13} parent=0
    #allocation3 [shape = 'u8[32768]{0}', space=vmem, size = 0x8000, scoped, tag = 'input window, operand 0']
    loop: start=0, step=1, limit=10
    $region2: #{patchgan_forward.13} parent=1 // loop_pre_header
      _
    $region3: #{patchgan_forward.13} parent=1 // loop_header
      %s10 = sphi 0, %s14
      %p11 = scmp.ge.s32.totalorder %s10, 10
      %s17 = sphi 0, %s29
      %s18 = sphi 0, %s25
      %s19 = sphi 0, %s17
      %s20 = sphi 0, %s18
      %s21 = sphi 0, %s19
      %s22 = sphi 0, %s20
      %s34 = sphi 0, %s36
      %s37 = sphi 0, %s34
      %s38 = sphi 0, %s37
      %s54 = sphi 0, %s38
      %s60 = sphi 0, %s62
      %s63 = sphi 0, %s60
      %s64 = sphi 0, %s63
      %s80 = sphi 0, %s64
      %s86 = sphi 0, %s88
      %s89 = sphi 0, %s86
      %s90 = sphi 0, %s89
      %s106 = sphi 0, %s90
      %s112 = sphi 0, %s114
      %s115 = sphi 0, %s112
      %s116 = sphi 0, %s115
      %s132 = sphi 0, %s116
    $region4: #{patchgan_forward.13} parent=1 // loop_header_branch
      %13 = sbr.rel (%p11) target = $region8
    $region5: #{patchgan_forward.13} parent=1 // loop_body
      %s15 = ssub.s32 %s10, 1
      %s16 = ssub.s32 %s10, 2
      %s23 = sadd.s32 1, %s18
      %p24 = scmp.ge.s32.totalorder %s23, 8
      %s25 = scalar_select %p24, 0, %s23
      %s26 = sadd.s32 1, %s17
      %s27 = scalar_select %p24, %s26, %s17
      %p28 = scmp.ge.s32.totalorder %s27, 1
      %s29 = scalar_select %p28, 0, %s27
      %s30 = ssub.s32 %s17, %s29
      %s31 = ssub.s32 %s18, %s25
      %s32 = sor.u32 %s30, %s31
      %p33 = scmp.eq.s32.totalorder %s32, 0
      %s35 = sadd.s32 %s34, 1
      %s36 = scalar_select %p33, %s34, %s35
      %p39 = pneg %p33
      %p40 = scmp.eq.s32.totalorder %s10, 7
      %p41 = por %p39, %p40
      %p42 = scmp.ne.s32.totalorder %s34, %s37
      %p43 = scmp.eq.s32.totalorder %s10, 0
      %p44 = por %p42, %p43
      %p45 = scmp.ne.s32.totalorder %s34, %s37
      %p46 = scmp.eq.s32.totalorder %s15, 7
      %p47 = por %p45, %p46
      %p48 = scmp.ne.s32.totalorder %s37, %s38
      %p49 = scmp.eq.s32.totalorder %s15, 0
      %p50 = por %p48, %p49
      %p51 = scmp.ne.s32.totalorder %s37, %s38
      %p52 = scmp.eq.s32.totalorder %s16, 7
      %p53 = por %p51, %p52
      %p55 = scmp.ne.s32.totalorder %s38, %s54
      %p56 = scmp.eq.s32.totalorder %s16, 0
      %p57 = por %p55, %p56
      %s58 = ssub.s32 %s18, %s25
      %p59 = scmp.eq.s32.totalorder %s58, 0
      %s61 = sadd.s32 %s60, 1
      %s62 = scalar_select %p59, %s60, %s61
      %p65 = pneg %p59
      %p66 = scmp.eq.s32.totalorder %s10, 7
      %p67 = por %p65, %p66
      %p68 = scmp.ne.s32.totalorder %s60, %s63
      %p69 = scmp.eq.s32.totalorder %s10, 0
      %p70 = por %p68, %p69
      %p71 = scmp.ne.s32.totalorder %s60, %s63
      %p72 = scmp.eq.s32.totalorder %s15, 7
      %p73 = por %p71, %p72
      %p74 = scmp.ne.s32.totalorder %s63, %s64
      %p75 = scmp.eq.s32.totalorder %s15, 0
      %p76 = por %p74, %p75
      %p77 = scmp.ne.s32.totalorder %s63, %s64
      %p78 = scmp.eq.s32.totalorder %s16, 7
      %p79 = por %p77, %p78
      %p81 = scmp.ne.s32.totalorder %s64, %s80
      %p82 = scmp.eq.s32.totalorder %s16, 0
      %p83 = por %p81, %p82
      %s84 = ssub.s32 %s17, %s29
      %p85 = scmp.eq.s32.totalorder %s84, 0
      %s87 = sadd.s32 %s86, 1
      %s88 = scalar_select %p85, %s86, %s87
      %p91 = pneg %p85
      %p92 = scmp.eq.s32.totalorder %s10, 7
      %p93 = por %p91, %p92
      %p94 = scmp.ne.s32.totalorder %s86, %s89
      %p95 = scmp.eq.s32.totalorder %s10, 0
      %p96 = por %p94, %p95
      %p97 = scmp.ne.s32.totalorder %s86, %s89
      %p98 = scmp.eq.s32.totalorder %s15, 7
      %p99 = por %p97, %p98
      %p100 = scmp.ne.s32.totalorder %s89, %s90
      %p101 = scmp.eq.s32.totalorder %s15, 0
      %p102 = por %p100, %p101
      %p103 = scmp.ne.s32.totalorder %s89, %s90
      %p104 = scmp.eq.s32.totalorder %s16, 7
      %p105 = por %p103, %p104
      %p107 = scmp.ne.s32.totalorder %s90, %s106
      %p108 = scmp.eq.s32.totalorder %s16, 0
      %p109 = por %p107, %p108
      %s110 = ssub.s32 %s17, %s29
      %p111 = scmp.eq.s32.totalorder %s110, 0
      %s113 = sadd.s32 %s112, 1
      %s114 = scalar_select %p111, %s112, %s113
      %p117 = pneg %p111
      %p118 = scmp.eq.s32.totalorder %s10, 7
      %p119 = por %p117, %p118
      %p120 = scmp.ne.s32.totalorder %s112, %s115
      %p121 = scmp.eq.s32.totalorder %s10, 0
      %p122 = por %p120, %p121
      %p123 = scmp.ne.s32.totalorder %s112, %s115
      %p124 = scmp.eq.s32.totalorder %s15, 7
      %p125 = por %p123, %p124
      %p126 = scmp.ne.s32.totalorder %s115, %s116
      %p127 = scmp.eq.s32.totalorder %s15, 0
      %p128 = por %p126, %p127
      %p129 = scmp.ne.s32.totalorder %s115, %s116
      %p130 = scmp.eq.s32.totalorder %s16, 7
      %p131 = por %p129, %p130
      %p133 = scmp.ne.s32.totalorder %s116, %s132
      %p134 = scmp.eq.s32.totalorder %s16, 0
      %p135 = por %p133, %p134
      %p136 = scmp.le.s32.totalorder 1, %s10
      %p137 = scmp.lt.s32.totalorder %s10, 9
      %p138 = pnand %p136, %p137
      %p139 = pneg %p138
      // Predicated region
      $region9: #{patchgan_forward.13} parent=5 // pred_check
        _
      $region10: #{patchgan_forward.13} parent=5 // pred_check_branch
        %141 = sbr.rel (%p138) target = $region12
      $region11: #{patchgan_forward.13} parent=5 // pred_region
        %s142 = ssub.s32 %s10, 1
      $region12: #{patchgan_forward.13} parent=5 // pred_fallthru
        _
      %p143 = scmp.lt.s32.totalorder %s10, 8
      // Predicated region
      $region13: #{patchgan_forward.13} parent=5 // pred_check
        %p144 = pneg %p143
      $region14: #{patchgan_forward.13} parent=5 // pred_check_branch
        %146 = sbr.rel (%p144) target = $region16
      $region15: #{patchgan_forward.13} parent=5 // pred_region
        // Predicated region
        $region17: #{patchgan_forward.13} parent=15 // pred_check
          %p147 = pneg %p44
        $region18: #{patchgan_forward.13} parent=15 // pred_check_branch
          %149 = sbr.rel (%p147) target = $region20
        $region19: #{patchgan_forward.13} parent=15 // pred_region
          %s150 = sand.u32 %s34, 1
          %s151 = sand.u32 %s34, 1
          %s152 = smul.addr %s151, 32
          %s153 = scalar_lea.vmem [#allocation3], %s152
          %s154 = smul.u32 2, %s17
          %s155 = smul.u32 4, %s18
          %s156 = smul.addr %s154, 32
          %s157 = sadd.s32 %s155, %s156
          %s158 = smul.addr %s157, 4
          %s159 = scalar_lea.vmem %s0, %s158
          // Predicated region
          $region21: #{patchgan_forward.13} parent=19 // pred_check
            _
          $region22: #{patchgan_forward.13} parent=19 // pred_check_branch
            %161 = sbr.rel (0) target = $region24
          $region23: #{patchgan_forward.13} parent=19 // pred_region
            // Predicated region
            $region25: #{patchgan_forward.13} parent=23 // pred_check
              _
            $region26: #{patchgan_forward.13} parent=23 // pred_check_branch
              %163 = sbr.rel (0) target = $region28
            $region27: #{patchgan_forward.13} parent=23 // pred_region
              loop: start=0, step=1, limit=1
              $region29: #{patchgan_forward.13} parent=27 // loop_pre_header
                _
              $region30: #{patchgan_forward.13} parent=27 // loop_header
                %s165 = sphi 0, %s169
                %p166 = scmp.ge.s32.totalorder %s165, 1
                %s170 = sphi %s159, %s159
                %s171 = sphi %s153, %s153
              $region31: #{patchgan_forward.13} parent=27 // loop_header_branch
                %168 = sbr.rel (%p166) target = $region35
              $region32: #{patchgan_forward.13} parent=27 // loop_body
                %v172 = vld [vmem:[%s170] sm:$0xff]
                %173 = vst [vmem:[%s171] sm:$0xff] %v172
                %v174 = vld [vmem:[%s170 + $0x8] sm:$0xff]
                %175 = vst [vmem:[%s171 + $0x8] sm:$0xff] %v174
                %v176 = vld [vmem:[%s170 + $0x80] sm:$0xff]
                %177 = vst [vmem:[%s171 + $0x10] sm:$0xff] %v176
                %v178 = vld [vmem:[%s170 + $0x88] sm:$0xff]
                %179 = vst [vmem:[%s171 + $0x18] sm:$0xff] %v178
              $region33: #{patchgan_forward.13} parent=27 // loop_footer
                %s169 = sadd.s32 1, %s165
              $region34: #{patchgan_forward.13} parent=27 // loop_footer_branch
                %164 = sbr.rel target = $region30
              $region35: #{patchgan_forward.13} parent=27 // loop_exit
                _
            $region28: #{patchgan_forward.13} parent=23 // pred_fallthru
              _
            // Predicated region
            $region36: #{patchgan_forward.13} parent=23 // pred_check
              _
            $region37: #{patchgan_forward.13} parent=23 // pred_check_branch
              %181 = sbr.rel target = $region39
            $region38: #{patchgan_forward.13} parent=23 // pred_region
              _
            $region39: #{patchgan_forward.13} parent=23 // pred_fallthru
              _
          $region24: #{patchgan_forward.13} parent=19 // pred_fallthru
            _
          %182 = vnop
        $region20: #{patchgan_forward.13} parent=15 // pred_fallthru
          _
        // Predicated region
        $region40: #{patchgan_forward.13} parent=15 // pred_check
          %p183 = pneg %p70
        $region41: #{patchgan_forward.13} parent=15 // pred_check_branch
          %185 = sbr.rel (%p183) target = $region43
        $region42: #{patchgan_forward.13} parent=15 // pred_region
          %s186 = smul.u32 64, %s18
          %p187 = scmp.lt.s32.totalorder %s186, 511
          %s188 = scalar_select %p187, %s186, 511
          %s189 = smul.addr %s188, 4
          %s190 = smul.addr %s189, 4
          %s191 = scalar_lea.vmem %s1, %s190
          %s192 = smul.u32 64, %s18
        $region43: #{patchgan_forward.13} parent=15 // pred_fallthru
          _
      $region16: #{patchgan_forward.13} parent=5 // pred_fallthru
        _
      %p193 = scmp.le.s32.totalorder 1, %s10
      %p194 = scmp.lt.s32.totalorder %s10, 9
      %p195 = pnand %p193, %p194
      %p196 = pneg %p195
      // Predicated region
      $region44: #{patchgan_forward.13} parent=5 // pred_check
        _
      $region45: #{patchgan_forward.13} parent=5 // pred_check_branch
        %198 = sbr.rel (%p195) target = $region47
      $region46: #{patchgan_forward.13} parent=5 // pred_region
        %s199 = ssub.s32 %s10, 1
        %s200 = sand.u32 %s37, 1
        %s201 = sand.u32 %s37, 1
        %s202 = smul.addr %s201, 32
        %s203 = scalar_lea.vmem [#allocation3], %s202
        // Predicated region
        $region48: #{patchgan_forward.13} parent=46 // pred_check
          %p204 = pneg %p50
        $region49: #{patchgan_forward.13} parent=46 // pred_check_branch
          %206 = sbr.rel (%p204) target = $region51
        $region50: #{patchgan_forward.13} parent=46 // pred_region
          _
        $region51: #{patchgan_forward.13} parent=46 // pred_fallthru
          _
        %s207 = sand.u32 %s37, 1
        %s208 = sand.u32 %s37, 1
        %s209 = smul.addr %s208, 32
        %s210 = scalar_lea.vmem [#allocation3], %s209
        %p211 = pneg %p50
        %p212 = pneg %p47
        %s213 = smul.u32 64, %s20
        %p214 = scmp.lt.s32.totalorder %s213, 511
        %s215 = scalar_select %p214, %s213, 511
        %s216 = smul.addr %s215, 4
        %s217 = smul.addr %s216, 4
        %s218 = scalar_lea.vmem %s1, %s217
        %p219 = pneg %p76
        %p220 = pneg %p73
        %p221 = pneg %p102
        %p222 = pneg %p99
        %s223 = smul.u32 2, %s19
        %p224 = scmp.lt.s32.totalorder %s223, 1
        %s225 = scalar_select %p224, %s223, 1
        %s226 = smul.addr %s225, 4
        %s227 = smul.addr %s226, 8
        %s228 = scalar_lea.vmem %s2, %s227
        %p229 = pneg %p128
        %p230 = pneg %p125
        %p231 = scmp.lt.s32.totalorder %s19, 0
        %s232 = scalar_select %p231, %s19, 0
        %s233 = smul.addr %s232, 4
        %s234 = smul.addr %s233, 2
        %s235 = scalar_lea.vmem %s3, %s234
        %s236 = smul.u32 2, %s19
        %s237 = smul.u32 4, %s20
        %s238 = smul.u32 64, %s20
        %p239 = scmp.lt.s32.totalorder %s238, 511
        %s240 = scalar_select %p239, %s238, 511
        %s241 = smul.addr %s240, 4
        %s242 = smul.addr %s241, 4
        %s243 = scalar_lea.vmem %s1, %s242
        %s244 = smul.u32 64, %s20
        %s245 = smul.u32 2, %s19
        %p246 = scmp.lt.s32.totalorder %s245, 1
        %s247 = scalar_select %p246, %s245, 1
        %s248 = smul.addr %s247, 4
        %s249 = smul.addr %s248, 8
        %s250 = scalar_lea.vmem %s2, %s249
        %s251 = smul.u32 2, %s19
        %p252 = scmp.lt.s32.totalorder %s19, 0
        %s253 = scalar_select %p252, %s19, 0
        %s254 = smul.addr %s253, 4
        %s255 = smul.addr %s254, 2
        %s256 = scalar_lea.vmem %s3, %s255
        %p257 = scmp.eq.s32.totalorder %s20, 0
        // Predicated region
        $region52: #{patchgan_forward.13} parent=46 // pred_check
          %p258 = pneg %p257
        $region53: #{patchgan_forward.13} parent=46 // pred_check_branch
          %260 = sbr.rel (%p258) target = $region55
        $region54: #{patchgan_forward.13} parent=46 // pred_region
          %261 = vst [vmem:[#allocation2] sm:$0xff] 0.0
          %262 = vst [vmem:[#allocation2 + $0x8] sm:$0xff] 0.0
          %263 = vst [vmem:[#allocation2 + $0x10] sm:$0xff] 0.0
          %264 = vst [vmem:[#allocation2 + $0x18] sm:$0xff] 0.0
          %265 = vst [vmem:[#allocation2 + $0x20] sm:$0xff] 0.0
          %266 = vst [vmem:[#allocation2 + $0x28] sm:$0xff] 0.0
          %267 = vst [vmem:[#allocation2 + $0x30] sm:$0xff] 0.0
          %268 = vst [vmem:[#allocation2 + $0x38] sm:$0xff] 0.0
        $region55: #{patchgan_forward.13} parent=46 // pred_fallthru
          _
        %v269 = vld [vmem:[#allocation2] sm:$0xff]
        %v270 = vld [vmem:[#allocation2 + $0x8] sm:$0xff]
        %v271 = vld [vmem:[#allocation2 + $0x10] sm:$0xff]
        %v272 = vld [vmem:[#allocation2 + $0x18] sm:$0xff]
        %v273 = vld [vmem:[#allocation2 + $0x20] sm:$0xff]
        %v274 = vld [vmem:[#allocation2 + $0x28] sm:$0xff]
        %v275 = vld [vmem:[#allocation2 + $0x30] sm:$0xff]
        %v276 = vld [vmem:[#allocation2 + $0x38] sm:$0xff]
        %v277 = vld [vmem:[%s203] sm:$0xff]
        %v278 = vld [vmem:[%s203 + $0x8] sm:$0xff]
        %v279 = vld [vmem:[%s203 + $0x10] sm:$0xff]
        %v280 = vld [vmem:[%s203 + $0x18] sm:$0xff]
        %v281 = vld [vmem:[%s243] sm:$0xff]
        %v282 = vld [vmem:[%s243 + $0x8] sm:$0xff]
        %v283 = vld [vmem:[%s243 + $0x10] sm:$0xff]
        %v284 = vld [vmem:[%s243 + $0x18] sm:$0xff]
        %v285 = vld [vmem:[%s243 + $0x20] sm:$0xff]
        %v286 = vld [vmem:[%s243 + $0x28] sm:$0xff]
        %v287 = vld [vmem:[%s243 + $0x30] sm:$0xff]
        %v288 = vld [vmem:[%s243 + $0x38] sm:$0xff]
        %v289 = vld [vmem:[%s243 + $0x40] sm:$0xff]
        %v290 = vld [vmem:[%s243 + $0x48] sm:$0xff]
        %v291 = vld [vmem:[%s243 + $0x50] sm:$0xff]
        %v292 = vld [vmem:[%s243 + $0x58] sm:$0xff]
        %v293 = vld [vmem:[%s243 + $0x60] sm:$0xff]
        %v294 = vld [vmem:[%s243 + $0x68] sm:$0xff]
        %v295 = vld [vmem:[%s243 + $0x70] sm:$0xff]
        %v296 = vld [vmem:[%s243 + $0x78] sm:$0xff]
        %v297 = vld [vmem:[%s243 + $0x80] sm:$0xff]
        %v298 = vld [vmem:[%s243 + $0x88] sm:$0xff]
        %v299 = vld [vmem:[%s243 + $0x90] sm:$0xff]
        %v300 = vld [vmem:[%s243 + $0x98] sm:$0xff]
        %v301 = vld [vmem:[%s243 + $0xa0] sm:$0xff]
        %v302 = vld [vmem:[%s243 + $0xa8] sm:$0xff]
        %v303 = vld [vmem:[%s243 + $0xb0] sm:$0xff]
        %v304 = vld [vmem:[%s243 + $0xb8] sm:$0xff]
        %v305 = vld [vmem:[%s243 + $0xc0] sm:$0xff]
        %v306 = vld [vmem:[%s243 + $0xc8] sm:$0xff]
        %v307 = vld [vmem:[%s243 + $0xd0] sm:$0xff]
        %v308 = vld [vmem:[%s243 + $0xd8] sm:$0xff]
        %v309 = vld [vmem:[%s243 + $0xe0] sm:$0xff]
        %v310 = vld [vmem:[%s243 + $0xe8] sm:$0xff]
        %v311 = vld [vmem:[%s243 + $0xf0] sm:$0xff]
        %v312 = vld [vmem:[%s243 + $0xf8] sm:$0xff]
        %v313 = vld [vmem:[%s243 + $0x100] sm:$0xff]
        %v314 = vld [vmem:[%s243 + $0x108] sm:$0xff]
        %v315 = vld [vmem:[%s243 + $0x110] sm:$0xff]
        %v316 = vld [vmem:[%s243 + $0x118] sm:$0xff]
        %v317 = vld [vmem:[%s243 + $0x120] sm:$0xff]
        %v318 = vld [vmem:[%s243 + $0x128] sm:$0xff]
        %v319 = vld [vmem:[%s243 + $0x130] sm:$0xff]
        %v320 = vld [vmem:[%s243 + $0x138] sm:$0xff]
        %v321 = vld [vmem:[%s243 + $0x140] sm:$0xff]
        %v322 = vld [vmem:[%s243 + $0x148] sm:$0xff]
        %v323 = vld [vmem:[%s243 + $0x150] sm:$0xff]
        %v324 = vld [vmem:[%s243 + $0x158] sm:$0xff]
        %v325 = vld [vmem:[%s243 + $0x160] sm:$0xff]
        %v326 = vld [vmem:[%s243 + $0x168] sm:$0xff]
        %v327 = vld [vmem:[%s243 + $0x170] sm:$0xff]
        %v328 = vld [vmem:[%s243 + $0x178] sm:$0xff]
        %v329 = vld [vmem:[%s243 + $0x180] sm:$0xff]
        %v330 = vld [vmem:[%s243 + $0x188] sm:$0xff]
        %v331 = vld [vmem:[%s243 + $0x190] sm:$0xff]
        %v332 = vld [vmem:[%s243 + $0x198] sm:$0xff]
        %v333 = vld [vmem:[%s243 + $0x1a0] sm:$0xff]
        %v334 = vld [vmem:[%s243 + $0x1a8] sm:$0xff]
        %v335 = vld [vmem:[%s243 + $0x1b0] sm:$0xff]
        %v336 = vld [vmem:[%s243 + $0x1b8] sm:$0xff]
        %v337 = vld [vmem:[%s243 + $0x1c0] sm:$0xff]
        %v338 = vld [vmem:[%s243 + $0x1c8] sm:$0xff]
        %v339 = vld [vmem:[%s243 + $0x1d0] sm:$0xff]
        %v340 = vld [vmem:[%s243 + $0x1d8] sm:$0xff]
        %v341 = vld [vmem:[%s243 + $0x1e0] sm:$0xff]
        %v342 = vld [vmem:[%s243 + $0x1e8] sm:$0xff]
        %v343 = vld [vmem:[%s243 + $0x1f0] sm:$0xff]
        %v344 = vld [vmem:[%s243 + $0x1f8] sm:$0xff]
        %v345 = vld [vmem:[%s243 + $0x200] sm:$0xff]
        %v346 = vld [vmem:[%s243 + $0x208] sm:$0xff]
        %v347 = vld [vmem:[%s243 + $0x210] sm:$0xff]
        %v348 = vld [vmem:[%s243 + $0x218] sm:$0xff]
        %v349 = vld [vmem:[%s243 + $0x220] sm:$0xff]
        %v350 = vld [vmem:[%s243 + $0x228] sm:$0xff]
        %v351 = vld [vmem:[%s243 + $0x230] sm:$0xff]
        %v352 = vld [vmem:[%s243 + $0x238] sm:$0xff]
        %v353 = vld [vmem:[%s243 + $0x240] sm:$0xff]
        %v354 = vld [vmem:[%s243 + $0x248] sm:$0xff]
        %v355 = vld [vmem:[%s243 + $0x250] sm:$0xff]
        %v356 = vld [vmem:[%s243 + $0x258] sm:$0xff]
        %v357 = vld [vmem:[%s243 + $0x260] sm:$0xff]
        %v358 = vld [vmem:[%s243 + $0x268] sm:$0xff]
        %v359 = vld [vmem:[%s243 + $0x270] sm:$0xff]
        %v360 = vld [vmem:[%s243 + $0x278] sm:$0xff]
        %v361 = vld [vmem:[%s243 + $0x280] sm:$0xff]
        %v362 = vld [vmem:[%s243 + $0x288] sm:$0xff]
        %v363 = vld [vmem:[%s243 + $0x290] sm:$0xff]
        %v364 = vld [vmem:[%s243 + $0x298] sm:$0xff]
        %v365 = vld [vmem:[%s243 + $0x2a0] sm:$0xff]
        %v366 = vld [vmem:[%s243 + $0x2a8] sm:$0xff]
        %v367 = vld [vmem:[%s243 + $0x2b0] sm:$0xff]
        %v368 = vld [vmem:[%s243 + $0x2b8] sm:$0xff]
        %v369 = vld [vmem:[%s243 + $0x2c0] sm:$0xff]
        %v370 = vld [vmem:[%s243 + $0x2c8] sm:$0xff]
        %v371 = vld [vmem:[%s243 + $0x2d0] sm:$0xff]
        %v372 = vld [vmem:[%s243 + $0x2d8] sm:$0xff]
        %v373 = vld [vmem:[%s243 + $0x2e0] sm:$0xff]
        %v374 = vld [vmem:[%s243 + $0x2e8] sm:$0xff]
        %v375 = vld [vmem:[%s243 + $0x2f0] sm:$0xff]
        %v376 = vld [vmem:[%s243 + $0x2f8] sm:$0xff]
        %v377 = vld [vmem:[%s243 + $0x300] sm:$0xff]
        %v378 = vld [vmem:[%s243 + $0x308] sm:$0xff]
        %v379 = vld [vmem:[%s243 + $0x310] sm:$0xff]
        %v380 = vld [vmem:[%s243 + $0x318] sm:$0xff]
        %v381 = vld [vmem:[%s243 + $0x320] sm:$0xff]
        %v382 = vld [vmem:[%s243 + $0x328] sm:$0xff]
        %v383 = vld [vmem:[%s243 + $0x330] sm:$0xff]
        %v384 = vld [vmem:[%s243 + $0x338] sm:$0xff]
        %v385 = vld [vmem:[%s243 + $0x340] sm:$0xff]
        %v386 = vld [vmem:[%s243 + $0x348] sm:$0xff]
        %v387 = vld [vmem:[%s243 + $0x350] sm:$0xff]
        %v388 = vld [vmem:[%s243 + $0x358] sm:$0xff]
        %v389 = vld [vmem:[%s243 + $0x360] sm:$0xff]
        %v390 = vld [vmem:[%s243 + $0x368] sm:$0xff]
        %v391 = vld [vmem:[%s243 + $0x370] sm:$0xff]
        %v392 = vld [vmem:[%s243 + $0x378] sm:$0xff]
        %v393 = vld [vmem:[%s243 + $0x380] sm:$0xff]
        %v394 = vld [vmem:[%s243 + $0x388] sm:$0xff]
        %v395 = vld [vmem:[%s243 + $0x390] sm:$0xff]
        %v396 = vld [vmem:[%s243 + $0x398] sm:$0xff]
        %v397 = vld [vmem:[%s243 + $0x3a0] sm:$0xff]
        %v398 = vld [vmem:[%s243 + $0x3a8] sm:$0xff]
        %v399 = vld [vmem:[%s243 + $0x3b0] sm:$0xff]
        %v400 = vld [vmem:[%s243 + $0x3b8] sm:$0xff]
        %v401 = vld [vmem:[%s243 + $0x3c0] sm:$0xff]
        %v402 = vld [vmem:[%s243 + $0x3c8] sm:$0xff]
        %v403 = vld [vmem:[%s243 + $0x3d0] sm:$0xff]
        %v404 = vld [vmem:[%s243 + $0x3d8] sm:$0xff]
        %v405 = vld [vmem:[%s243 + $0x3e0] sm:$0xff]
        %v406 = vld [vmem:[%s243 + $0x3e8] sm:$0xff]
        %v407 = vld [vmem:[%s243 + $0x3f0] sm:$0xff]
        %v408 = vld [vmem:[%s243 + $0x3f8] sm:$0xff]
        %v413 = vunpack.c.l.b16 %v277
        %v414 = vunpack.c.h.b16 %v277
        %v415 = vunpack.c.l.b16 %v278
        %v416 = vunpack.c.h.b16 %v278
        %v417 = vunpack.c.l.b16 %v279
        %v418 = vunpack.c.h.b16 %v279
        %v419 = vunpack.c.l.b16 %v280
        %v420 = vunpack.c.h.b16 %v280
        %v421 = vpack.c.b16 %v417, %v413
        %v422 = vpack.c.b16 %v418, %v414
        %v423 = vpack.c.b16 %v419, %v415
        %v424 = vpack.c.b16 %v420, %v416
        %v557 = vunpack.c.l.b16 %v281
        %v558 = vunpack.c.h.b16 %v281
        %v559 = vunpack.c.l.b16 %v282
        %v560 = vunpack.c.h.b16 %v282
        %v561 = vunpack.c.l.b16 %v283
        %v562 = vunpack.c.h.b16 %v283
        %v563 = vunpack.c.l.b16 %v284
        %v564 = vunpack.c.h.b16 %v284
        %v565 = vunpack.c.l.b16 %v285
        %v566 = vunpack.c.h.b16 %v285
        %v567 = vunpack.c.l.b16 %v286
        %v568 = vunpack.c.h.b16 %v286
        %v569 = vunpack.c.l.b16 %v287
        %v570 = vunpack.c.h.b16 %v287
        %v571 = vunpack.c.l.b16 %v288
        %v572 = vunpack.c.h.b16 %v288
        %v573 = vunpack.c.l.b16 %v289
        %v574 = vunpack.c.h.b16 %v289
        %v575 = vunpack.c.l.b16 %v290
        %v576 = vunpack.c.h.b16 %v290
        %v577 = vunpack.c.l.b16 %v291
        %v578 = vunpack.c.h.b16 %v291
        %v579 = vunpack.c.l.b16 %v292
        %v580 = vunpack.c.h.b16 %v292
        %v581 = vunpack.c.l.b16 %v293
        %v582 = vunpack.c.h.b16 %v293
        %v583 = vunpack.c.l.b16 %v294
        %v584 = vunpack.c.h.b16 %v294
        %v585 = vunpack.c.l.b16 %v295
        %v586 = vunpack.c.h.b16 %v295
        %v587 = vunpack.c.l.b16 %v296
        %v588 = vunpack.c.h.b16 %v296
        %v589 = vunpack.c.l.b16 %v297
        %v590 = vunpack.c.h.b16 %v297
        %v591 = vunpack.c.l.b16 %v298
        %v592 = vunpack.c.h.b16 %v298
        %v593 = vunpack.c.l.b16 %v299
        %v594 = vunpack.c.h.b16 %v299
        %v595 = vunpack.c.l.b16 %v300
        %v596 = vunpack.c.h.b16 %v300
        %v597 = vunpack.c.l.b16 %v301
        %v598 = vunpack.c.h.b16 %v301
        %v599 = vunpack.c.l.b16 %v302
        %v600 = vunpack.c.h.b16 %v302
        %v601 = vunpack.c.l.b16 %v303
        %v602 = vunpack.c.h.b16 %v303
        %v603 = vunpack.c.l.b16 %v304
        %v604 = vunpack.c.h.b16 %v304
        %v605 = vunpack.c.l.b16 %v305
        %v606 = vunpack.c.h.b16 %v305
        %v607 = vunpack.c.l.b16 %v306
        %v608 = vunpack.c.h.b16 %v306
        %v609 = vunpack.c.l.b16 %v307
        %v610 = vunpack.c.h.b16 %v307
        %v611 = vunpack.c.l.b16 %v308
        %v612 = vunpack.c.h.b16 %v308
        %v613 = vunpack.c.l.b16 %v309
        %v614 = vunpack.c.h.b16 %v309
        %v615 = vunpack.c.l.b16 %v310
        %v616 = vunpack.c.h.b16 %v310
        %v617 = vunpack.c.l.b16 %v311
        %v618 = vunpack.c.h.b16 %v311
        %v619 = vunpack.c.l.b16 %v312
        %v620 = vunpack.c.h.b16 %v312
        %v621 = vunpack.c.l.b16 %v313
        %v622 = vunpack.c.h.b16 %v313
        %v623 = vunpack.c.l.b16 %v314
        %v624 = vunpack.c.h.b16 %v314
        %v625 = vunpack.c.l.b16 %v315
        %v626 = vunpack.c.h.b16 %v315
        %v627 = vunpack.c.l.b16 %v316
        %v628 = vunpack.c.h.b16 %v316
        %v629 = vunpack.c.l.b16 %v317
        %v630 = vunpack.c.h.b16 %v317
        %v631 = vunpack.c.l.b16 %v318
        %v632 = vunpack.c.h.b16 %v318
        %v633 = vunpack.c.l.b16 %v319
        %v634 = vunpack.c.h.b16 %v319
        %v635 = vunpack.c.l.b16 %v320
        %v636 = vunpack.c.h.b16 %v320
        %v637 = vunpack.c.l.b16 %v321
        %v638 = vunpack.c.h.b16 %v321
        %v639 = vunpack.c.l.b16 %v322
        %v640 = vunpack.c.h.b16 %v322
        %v641 = vunpack.c.l.b16 %v323
        %v642 = vunpack.c.h.b16 %v323
        %v643 = vunpack.c.l.b16 %v324
        %v644 = vunpack.c.h.b16 %v324
        %v645 = vunpack.c.l.b16 %v325
        %v646 = vunpack.c.h.b16 %v325
        %v647 = vunpack.c.l.b16 %v326
        %v648 = vunpack.c.h.b16 %v326
        %v649 = vunpack.c.l.b16 %v327
        %v650 = vunpack.c.h.b16 %v327
        %v651 = vunpack.c.l.b16 %v328
        %v652 = vunpack.c.h.b16 %v328
        %v653 = vunpack.c.l.b16 %v329
        %v654 = vunpack.c.h.b16 %v329
        %v655 = vunpack.c.l.b16 %v330
        %v656 = vunpack.c.h.b16 %v330
        %v657 = vunpack.c.l.b16 %v331
        %v658 = vunpack.c.h.b16 %v331
        %v659 = vunpack.c.l.b16 %v332
        %v660 = vunpack.c.h.b16 %v332
        %v661 = vunpack.c.l.b16 %v333
        %v662 = vunpack.c.h.b16 %v333
        %v663 = vunpack.c.l.b16 %v334
        %v664 = vunpack.c.h.b16 %v334
        %v665 = vunpack.c.l.b16 %v335
        %v666 = vunpack.c.h.b16 %v335
        %v667 = vunpack.c.l.b16 %v336
        %v668 = vunpack.c.h.b16 %v336
        %v669 = vunpack.c.l.b16 %v337
        %v670 = vunpack.c.h.b16 %v337
        %v671 = vunpack.c.l.b16 %v338
        %v672 = vunpack.c.h.b16 %v338
        %v673 = vunpack.c.l.b16 %v339
        %v674 = vunpack.c.h.b16 %v339
        %v675 = vunpack.c.l.b16 %v340
        %v676 = vunpack.c.h.b16 %v340
        %v677 = vunpack.c.l.b16 %v341
        %v678 = vunpack.c.h.b16 %v341
        %v679 = vunpack.c.l.b16 %v342
        %v680 = vunpack.c.h.b16 %v342
        %v681 = vunpack.c.l.b16 %v343
        %v682 = vunpack.c.h.b16 %v343
        %v683 = vunpack.c.l.b16 %v344
        %v684 = vunpack.c.h.b16 %v344
        %v685 = vunpack.c.l.b16 %v345
        %v686 = vunpack.c.h.b16 %v345
        %v687 = vunpack.c.l.b16 %v346
        %v688 = vunpack.c.h.b16 %v346
        %v689 = vunpack.c.l.b16 %v347
        %v690 = vunpack.c.h.b16 %v347
        %v691 = vunpack.c.l.b16 %v348
        %v692 = vunpack.c.h.b16 %v348
        %v693 = vunpack.c.l.b16 %v349
        %v694 = vunpack.c.h.b16 %v349
        %v695 = vunpack.c.l.b16 %v350
        %v696 = vunpack.c.h.b16 %v350
        %v697 = vunpack.c.l.b16 %v351
        %v698 = vunpack.c.h.b16 %v351
        %v699 = vunpack.c.l.b16 %v352
        %v700 = vunpack.c.h.b16 %v352
        %v701 = vunpack.c.l.b16 %v353
        %v702 = vunpack.c.h.b16 %v353
        %v703 = vunpack.c.l.b16 %v354
        %v704 = vunpack.c.h.b16 %v354
        %v705 = vunpack.c.l.b16 %v355
        %v706 = vunpack.c.h.b16 %v355
        %v707 = vunpack.c.l.b16 %v356
        %v708 = vunpack.c.h.b16 %v356
        %v709 = vunpack.c.l.b16 %v357
        %v710 = vunpack.c.h.b16 %v357
        %v711 = vunpack.c.l.b16 %v358
        %v712 = vunpack.c.h.b16 %v358
        %v713 = vunpack.c.l.b16 %v359
        %v714 = vunpack.c.h.b16 %v359
        %v715 = vunpack.c.l.b16 %v360
        %v716 = vunpack.c.h.b16 %v360
        %v717 = vunpack.c.l.b16 %v361
        %v718 = vunpack.c.h.b16 %v361
        %v719 = vunpack.c.l.b16 %v362
        %v720 = vunpack.c.h.b16 %v362
        %v721 = vunpack.c.l.b16 %v363
        %v722 = vunpack.c.h.b16 %v363
        %v723 = vunpack.c.l.b16 %v364
        %v724 = vunpack.c.h.b16 %v364
        %v725 = vunpack.c.l.b16 %v365
        %v726 = vunpack.c.h.b16 %v365
        %v727 = vunpack.c.l.b16 %v366
        %v728 = vunpack.c.h.b16 %v366
        %v729 = vunpack.c.l.b16 %v367
        %v730 = vunpack.c.h.b16 %v367
        %v731 = vunpack.c.l.b16 %v368
        %v732 = vunpack.c.h.b16 %v368
        %v733 = vunpack.c.l.b16 %v369
        %v734 = vunpack.c.h.b16 %v369
        %v735 = vunpack.c.l.b16 %v370
        %v736 = vunpack.c.h.b16 %v370
        %v737 = vunpack.c.l.b16 %v371
        %v738 = vunpack.c.h.b16 %v371
        %v739 = vunpack.c.l.b16 %v372
        %v740 = vunpack.c.h.b16 %v372
        %v741 = vunpack.c.l.b16 %v373
        %v742 = vunpack.c.h.b16 %v373
        %v743 = vunpack.c.l.b16 %v374
        %v744 = vunpack.c.h.b16 %v374
        %v745 = vunpack.c.l.b16 %v375
        %v746 = vunpack.c.h.b16 %v375
        %v747 = vunpack.c.l.b16 %v376
        %v748 = vunpack.c.h.b16 %v376
        %v749 = vunpack.c.l.b16 %v377
        %v750 = vunpack.c.h.b16 %v377
        %v751 = vunpack.c.l.b16 %v378
        %v752 = vunpack.c.h.b16 %v378
        %v753 = vunpack.c.l.b16 %v379
        %v754 = vunpack.c.h.b16 %v379
        %v755 = vunpack.c.l.b16 %v380
        %v756 = vunpack.c.h.b16 %v380
        %v757 = vunpack.c.l.b16 %v381
        %v758 = vunpack.c.h.b16 %v381
        %v759 = vunpack.c.l.b16 %v382
        %v760 = vunpack.c.h.b16 %v382
        %v761 = vunpack.c.l.b16 %v383
        %v762 = vunpack.c.h.b16 %v383
        %v763 = vunpack.c.l.b16 %v384
        %v764 = vunpack.c.h.b16 %v384
        %v765 = vunpack.c.l.b16 %v385
        %v766 = vunpack.c.h.b16 %v385
        %v767 = vunpack.c.l.b16 %v386
        %v768 = vunpack.c.h.b16 %v386
        %v769 = vunpack.c.l.b16 %v387
        %v770 = vunpack.c.h.b16 %v387
        %v771 = vunpack.c.l.b16 %v388
        %v772 = vunpack.c.h.b16 %v388
        %v773 = vunpack.c.l.b16 %v389
        %v774 = vunpack.c.h.b16 %v389
        %v775 = vunpack.c.l.b16 %v390
        %v776 = vunpack.c.h.b16 %v390
        %v777 = vunpack.c.l.b16 %v391
        %v778 = vunpack.c.h.b16 %v391
        %v779 = vunpack.c.l.b16 %v392
        %v780 = vunpack.c.h.b16 %v392
        %v781 = vunpack.c.l.b16 %v393
        %v782 = vunpack.c.h.b16 %v393
        %v783 = vunpack.c.l.b16 %v394
        %v784 = vunpack.c.h.b16 %v394
        %v785 = vunpack.c.l.b16 %v395
        %v786 = vunpack.c.h.b16 %v395
        %v787 = vunpack.c.l.b16 %v396
        %v788 = vunpack.c.h.b16 %v396
        %v789 = vunpack.c.l.b16 %v397
        %v790 = vunpack.c.h.b16 %v397
        %v791 = vunpack.c.l.b16 %v398
        %v792 = vunpack.c.h.b16 %v398
        %v793 = vunpack.c.l.b16 %v399
        %v794 = vunpack.c.h.b16 %v399
        %v795 = vunpack.c.l.b16 %v400
        %v796 = vunpack.c.h.b16 %v400
        %v797 = vunpack.c.l.b16 %v401
        %v798 = vunpack.c.h.b16 %v401
        %v799 = vunpack.c.l.b16 %v402
        %v800 = vunpack.c.h.b16 %v402
        %v801 = vunpack.c.l.b16 %v403
        %v802 = vunpack.c.h.b16 %v403
        %v803 = vunpack.c.l.b16 %v404
        %v804 = vunpack.c.h.b16 %v404
        %v805 = vunpack.c.l.b16 %v405
        %v806 = vunpack.c.h.b16 %v405
        %v807 = vunpack.c.l.b16 %v406
        %v808 = vunpack.c.h.b16 %v406
        %v809 = vunpack.c.l.b16 %v407
        %v810 = vunpack.c.h.b16 %v407
        %v811 = vunpack.c.l.b16 %v408
        %v812 = vunpack.c.h.b16 %v408
        %v813 = vpack.c.b16 %v561, %v557
        %v814 = vpack.c.b16 %v562, %v558
        %v815 = vpack.c.b16 %v563, %v559
        %v816 = vpack.c.b16 %v564, %v560
        %v817 = vpack.c.b16 %v569, %v565
        %v818 = vpack.c.b16 %v570, %v566
        %v819 = vpack.c.b16 %v571, %v567
        %v820 = vpack.c.b16 %v572, %v568
        %v821 = vpack.c.b16 %v577, %v573
        %v822 = vpack.c.b16 %v578, %v574
        %v823 = vpack.c.b16 %v579, %v575
        %v824 = vpack.c.b16 %v580, %v576
        %v825 = vpack.c.b16 %v585, %v581
        %v826 = vpack.c.b16 %v586, %v582
        %v827 = vpack.c.b16 %v587, %v583
        %v828 = vpack.c.b16 %v588, %v584
        %v829 = vpack.c.b16 %v593, %v589
        %v830 = vpack.c.b16 %v594, %v590
        %v831 = vpack.c.b16 %v595, %v591
        %v832 = vpack.c.b16 %v596, %v592
        %v833 = vpack.c.b16 %v601, %v597
        %v834 = vpack.c.b16 %v602, %v598
        %v835 = vpack.c.b16 %v603, %v599
        %v836 = vpack.c.b16 %v604, %v600
        %v837 = vpack.c.b16 %v609, %v605
        %v838 = vpack.c.b16 %v610, %v606
        %v839 = vpack.c.b16 %v611, %v607
        %v840 = vpack.c.b16 %v612, %v608
        %v841 = vpack.c.b16 %v617, %v613
        %v842 = vpack.c.b16 %v618, %v614
        %v843 = vpack.c.b16 %v619, %v615
        %v844 = vpack.c.b16 %v620, %v616
        %v845 = vpack.c.b16 %v625, %v621
        %v846 = vpack.c.b16 %v626, %v622
        %v847 = vpack.c.b16 %v627, %v623
        %v848 = vpack.c.b16 %v628, %v624
        %v849 = vpack.c.b16 %v633, %v629
        %v850 = vpack.c.b16 %v634, %v630
        %v851 = vpack.c.b16 %v635, %v631
        %v852 = vpack.c.b16 %v636, %v632
        %v853 = vpack.c.b16 %v641, %v637
        %v854 = vpack.c.b16 %v642, %v638
        %v855 = vpack.c.b16 %v643, %v639
        %v856 = vpack.c.b16 %v644, %v640
        %v857 = vpack.c.b16 %v649, %v645
        %v858 = vpack.c.b16 %v650, %v646
        %v859 = vpack.c.b16 %v651, %v647
        %v860 = vpack.c.b16 %v652, %v648
        %v861 = vpack.c.b16 %v657, %v653
        %v862 = vpack.c.b16 %v658, %v654
        %v863 = vpack.c.b16 %v659, %v655
        %v864 = vpack.c.b16 %v660, %v656
        %v865 = vpack.c.b16 %v665, %v661
        %v866 = vpack.c.b16 %v666, %v662
        %v867 = vpack.c.b16 %v667, %v663
        %v868 = vpack.c.b16 %v668, %v664
        %v869 = vpack.c.b16 %v673, %v669
        %v870 = vpack.c.b16 %v674, %v670
        %v871 = vpack.c.b16 %v675, %v671
        %v872 = vpack.c.b16 %v676, %v672
        %v873 = vpack.c.b16 %v681, %v677
        %v874 = vpack.c.b16 %v682, %v678
        %v875 = vpack.c.b16 %v683, %v679
        %v876 = vpack.c.b16 %v684, %v680
        %v877 = vpack.c.b16 %v689, %v685
        %v878 = vpack.c.b16 %v690, %v686
        %v879 = vpack.c.b16 %v691, %v687
        %v880 = vpack.c.b16 %v692, %v688
        %v881 = vpack.c.b16 %v697, %v693
        %v882 = vpack.c.b16 %v698, %v694
        %v883 = vpack.c.b16 %v699, %v695
        %v884 = vpack.c.b16 %v700, %v696
        %v885 = vpack.c.b16 %v705, %v701
        %v886 = vpack.c.b16 %v706, %v702
        %v887 = vpack.c.b16 %v707, %v703
        %v888 = vpack.c.b16 %v708, %v704
        %v889 = vpack.c.b16 %v713, %v709
        %v890 = vpack.c.b16 %v714, %v710
        %v891 = vpack.c.b16 %v715, %v711
        %v892 = vpack.c.b16 %v716, %v712
        %v893 = vpack.c.b16 %v721, %v717
        %v894 = vpack.c.b16 %v722, %v718
        %v895 = vpack.c.b16 %v723, %v719
        %v896 = vpack.c.b16 %v724, %v720
        %v897 = vpack.c.b16 %v729, %v725
        %v898 = vpack.c.b16 %v730, %v726
        %v899 = vpack.c.b16 %v731, %v727
        %v900 = vpack.c.b16 %v732, %v728
        %v901 = vpack.c.b16 %v737, %v733
        %v902 = vpack.c.b16 %v738, %v734
        %v903 = vpack.c.b16 %v739, %v735
        %v904 = vpack.c.b16 %v740, %v736
        %v905 = vpack.c.b16 %v745, %v741
        %v906 = vpack.c.b16 %v746, %v742
        %v907 = vpack.c.b16 %v747, %v743
        %v908 = vpack.c.b16 %v748, %v744
        %v909 = vpack.c.b16 %v753, %v749
        %v910 = vpack.c.b16 %v754, %v750
        %v911 = vpack.c.b16 %v755, %v751
        %v912 = vpack.c.b16 %v756, %v752
        %v913 = vpack.c.b16 %v761, %v757
        %v914 = vpack.c.b16 %v762, %v758
        %v915 = vpack.c.b16 %v763, %v759
        %v916 = vpack.c.b16 %v764, %v760
        %v917 = vpack.c.b16 %v769, %v765
        %v918 = vpack.c.b16 %v770, %v766
        %v919 = vpack.c.b16 %v771, %v767
        %v920 = vpack.c.b16 %v772, %v768
        %v921 = vpack.c.b16 %v777, %v773
        %v922 = vpack.c.b16 %v778, %v774
        %v923 = vpack.c.b16 %v779, %v775
        %v924 = vpack.c.b16 %v780, %v776
        %v925 = vpack.c.b16 %v785, %v781
        %v926 = vpack.c.b16 %v786, %v782
        %v927 = vpack.c.b16 %v787, %v783
        %v928 = vpack.c.b16 %v788, %v784
        %v929 = vpack.c.b16 %v793, %v789
        %v930 = vpack.c.b16 %v794, %v790
        %v931 = vpack.c.b16 %v795, %v791
        %v932 = vpack.c.b16 %v796, %v792
        %v933 = vpack.c.b16 %v801, %v797
        %v934 = vpack.c.b16 %v802, %v798
        %v935 = vpack.c.b16 %v803, %v799
        %v936 = vpack.c.b16 %v804, %v800
        %v937 = vpack.c.b16 %v809, %v805
        %v938 = vpack.c.b16 %v810, %v806
        %v939 = vpack.c.b16 %v811, %v807
        %v940 = vpack.c.b16 %v812, %v808
        %1069 = vmatprep.subr.bf16.mxu0 %v814
        %1070 = vmatpush1.bf16.msra.mxu0 %v813
        %1071 = vmatprep.subr.bf16.mxu0 %v818
        %1072 = vmatpush1.bf16.msra.mxu0 %v817
        %1073 = vmatprep.subr.bf16.mxu0 %v822
        %1074 = vmatpush1.bf16.msra.mxu0 %v821
        %1075 = vmatprep.subr.bf16.mxu0 %v826
        %1076 = vmatpush1.bf16.msra.mxu0 %v825
        %1077 = vmatprep.subr.bf16.mxu0 %v830
        %1078 = vmatpush1.bf16.msra.mxu0 %v829
        %1079 = vmatprep.subr.bf16.mxu0 %v834
        %1080 = vmatpush1.bf16.msra.mxu0 %v833
        %1081 = vmatprep.subr.bf16.mxu0 %v838
        %1082 = vmatpush1.bf16.msra.mxu0 %v837
        %1083 = vmatprep.subr.bf16.mxu0 %v842
        %1084 = vmatpush1.bf16.msra.mxu0 %v841
        %1085 = vmatprep.subr.bf16.mxu0 %v846
        %1086 = vmatpush1.bf16.msra.mxu0 %v845
        %1087 = vmatprep.subr.bf16.mxu0 %v850
        %1088 = vmatpush1.bf16.msra.mxu0 %v849
        %1089 = vmatprep.subr.bf16.mxu0 %v854
        %1090 = vmatpush1.bf16.msra.mxu0 %v853
        %1091 = vmatprep.subr.bf16.mxu0 %v858
        %1092 = vmatpush1.bf16.msra.mxu0 %v857
        %1093 = vmatprep.subr.bf16.mxu0 %v862
        %1094 = vmatpush1.bf16.msra.mxu0 %v861
        %1095 = vmatprep.subr.bf16.mxu0 %v866
        %1096 = vmatpush1.bf16.msra.mxu0 %v865
        %1097 = vmatprep.subr.bf16.mxu0 %v870
        %1098 = vmatpush1.bf16.msra.mxu0 %v869
        %1099 = vmatprep.subr.bf16.mxu0 %v874
        %1100 = vmatpush1.bf16.msra.mxu0 %v873
        %1101 = vmatprep.mubr.bf16.mxu0 %v422
        %1102 = vmatmul.mubr.bf16.gmra.mrb[0].mxu0 %v421
        %v1103 = vpop.f32.mrb[0].mxu0
        %v1104 = vadd.f32 0.0, %v1103
        %v1105 = vpop.f32.mrb[0].mxu0
        %v1106 = vadd.f32 0.0, %v1105
        %v1107 = vpop.f32.mrb[0].mxu0
        %v1108 = vadd.f32 0.0, %v1107
        %v1109 = vpop.f32.mrb[0].mxu0
        %v1110 = vadd.f32 0.0, %v1109
        %1111 = vdwg.mxu0
        %1112 = vmatprep.subr.bf16.mxu0 %v878
        %1113 = vmatpush1.bf16.msra.mxu0 %v877
        %1114 = vmatprep.subr.bf16.mxu0 %v882
        %1115 = vmatpush1.bf16.msra.mxu0 %v881
        %1116 = vmatprep.subr.bf16.mxu0 %v886
        %1117 = vmatpush1.bf16.msra.mxu0 %v885
        %1118 = vmatprep.subr.bf16.mxu0 %v890
        %1119 = vmatpush1.bf16.msra.mxu0 %v889
        %1120 = vmatprep.subr.bf16.mxu0 %v894
        %1121 = vmatpush1.bf16.msra.mxu0 %v893
        %1122 = vmatprep.subr.bf16.mxu0 %v898
        %1123 = vmatpush1.bf16.msra.mxu0 %v897
        %1124 = vmatprep.subr.bf16.mxu0 %v902
        %1125 = vmatpush1.bf16.msra.mxu0 %v901
        %1126 = vmatprep.subr.bf16.mxu0 %v906
        %1127 = vmatpush1.bf16.msra.mxu0 %v905
        %1128 = vmatprep.subr.bf16.mxu0 %v910
        %1129 = vmatpush1.bf16.msra.mxu0 %v909
        %1130 = vmatprep.subr.bf16.mxu0 %v914
        %1131 = vmatpush1.bf16.msra.mxu0 %v913
        %1132 = vmatprep.subr.bf16.mxu0 %v918
        %1133 = vmatpush1.bf16.msra.mxu0 %v917
        %1134 = vmatprep.subr.bf16.mxu0 %v922
        %1135 = vmatpush1.bf16.msra.mxu0 %v921
        %1136 = vmatprep.subr.bf16.mxu0 %v926
        %1137 = vmatpush1.bf16.msra.mxu0 %v925
        %1138 = vmatprep.subr.bf16.mxu0 %v930
        %1139 = vmatpush1.bf16.msra.mxu0 %v929
        %1140 = vmatprep.subr.bf16.mxu0 %v934
        %1141 = vmatpush1.bf16.msra.mxu0 %v933
        %1142 = vmatprep.subr.bf16.mxu0 %v938
        %1143 = vmatpush1.bf16.msra.mxu0 %v937
        %1144 = vmatprep.mubr.bf16.mxu0 %v424
        %1145 = vmatmul.mubr.bf16.gmra.mrb[0].mxu0 %v423
        %v1146 = vpop.f32.mrb[0].mxu0
        %v1147 = vadd.f32 %v1104, %v1146
        %v1148 = vpop.f32.mrb[0].mxu0
        %v1149 = vadd.f32 %v1106, %v1148
        %v1150 = vpop.f32.mrb[0].mxu0
        %v1151 = vadd.f32 %v1108, %v1150
        %v1152 = vpop.f32.mrb[0].mxu0
        %v1153 = vadd.f32 %v1110, %v1152
        %1154 = vdwg.mxu0
        %1155 = vmatprep.subr.bf16.mxu0 %v816
        %1156 = vmatpush1.bf16.msra.mxu0 %v815
        %1157 = vmatprep.subr.bf16.mxu0 %v820
        %1158 = vmatpush1.bf16.msra.mxu0 %v819
        %1159 = vmatprep.subr.bf16.mxu0 %v824
        %1160 = vmatpush1.bf16.msra.mxu0 %v823
        %1161 = vmatprep.subr.bf16.mxu0 %v828
        %1162 = vmatpush1.bf16.msra.mxu0 %v827
        %1163 = vmatprep.subr.bf16.mxu0 %v832
        %1164 = vmatpush1.bf16.msra.mxu0 %v831
        %1165 = vmatprep.subr.bf16.mxu0 %v836
        %1166 = vmatpush1.bf16.msra.mxu0 %v835
        %1167 = vmatprep.subr.bf16.mxu0 %v840
        %1168 = vmatpush1.bf16.msra.mxu0 %v839
        %1169 = vmatprep.subr.bf16.mxu0 %v844
        %1170 = vmatpush1.bf16.msra.mxu0 %v843
        %1171 = vmatprep.subr.bf16.mxu0 %v848
        %1172 = vmatpush1.bf16.msra.mxu0 %v847
        %1173 = vmatprep.subr.bf16.mxu0 %v852
        %1174 = vmatpush1.bf16.msra.mxu0 %v851
        %1175 = vmatprep.subr.bf16.mxu0 %v856
        %1176 = vmatpush1.bf16.msra.mxu0 %v855
        %1177 = vmatprep.subr.bf16.mxu0 %v860
        %1178 = vmatpush1.bf16.msra.mxu0 %v859
        %1179 = vmatprep.subr.bf16.mxu0 %v864
        %1180 = vmatpush1.bf16.msra.mxu0 %v863
        %1181 = vmatprep.subr.bf16.mxu0 %v868
        %1182 = vmatpush1.bf16.msra.mxu0 %v867
        %1183 = vmatprep.subr.bf16.mxu0 %v872
        %1184 = vmatpush1.bf16.msra.mxu0 %v871
        %1185 = vmatprep.subr.bf16.mxu0 %v876
        %1186 = vmatpush1.bf16.msra.mxu0 %v875
        %1187 = vmatprep.mubr.bf16.mxu0 %v422
        %1188 = vmatmul.mubr.bf16.gmra.mrb[0].mxu0 %v421
        %v1189 = vpop.f32.mrb[0].mxu0
        %v1190 = vadd.f32 0.0, %v1189
        %v1191 = vpop.f32.mrb[0].mxu0
        %v1192 = vadd.f32 0.0, %v1191
        %v1193 = vpop.f32.mrb[0].mxu0
        %v1194 = vadd.f32 0.0, %v1193
        %v1195 = vpop.f32.mrb[0].mxu0
        %v1196 = vadd.f32 0.0, %v1195
        %1197 = vdwg.mxu0
        %1198 = vmatprep.subr.bf16.mxu0 %v880
        %1199 = vmatpush1.bf16.msra.mxu0 %v879
        %1200 = vmatprep.subr.bf16.mxu0 %v884
        %1201 = vmatpush1.bf16.msra.mxu0 %v883
        %1202 = vmatprep.subr.bf16.mxu0 %v888
        %1203 = vmatpush1.bf16.msra.mxu0 %v887
        %1204 = vmatprep.subr.bf16.mxu0 %v892
        %1205 = vmatpush1.bf16.msra.mxu0 %v891
        %1206 = vmatprep.subr.bf16.mxu0 %v896
        %1207 = vmatpush1.bf16.msra.mxu0 %v895
        %1208 = vmatprep.subr.bf16.mxu0 %v900
        %1209 = vmatpush1.bf16.msra.mxu0 %v899
        %1210 = vmatprep.subr.bf16.mxu0 %v904
        %1211 = vmatpush1.bf16.msra.mxu0 %v903
        %1212 = vmatprep.subr.bf16.mxu0 %v908
        %1213 = vmatpush1.bf16.msra.mxu0 %v907
        %1214 = vmatprep.subr.bf16.mxu0 %v912
        %1215 = vmatpush1.bf16.msra.mxu0 %v911
        %1216 = vmatprep.subr.bf16.mxu0 %v916
        %1217 = vmatpush1.bf16.msra.mxu0 %v915
        %1218 = vmatprep.subr.bf16.mxu0 %v920
        %1219 = vmatpush1.bf16.msra.mxu0 %v919
        %1220 = vmatprep.subr.bf16.mxu0 %v924
        %1221 = vmatpush1.bf16.msra.mxu0 %v923
        %1222 = vmatprep.subr.bf16.mxu0 %v928
        %1223 = vmatpush1.bf16.msra.mxu0 %v927
        %1224 = vmatprep.subr.bf16.mxu0 %v932
        %1225 = vmatpush1.bf16.msra.mxu0 %v931
        %1226 = vmatprep.subr.bf16.mxu0 %v936
        %1227 = vmatpush1.bf16.msra.mxu0 %v935
        %1228 = vmatprep.subr.bf16.mxu0 %v940
        %1229 = vmatpush1.bf16.msra.mxu0 %v939
        %1230 = vmatprep.mubr.bf16.mxu0 %v424
        %1231 = vmatmul.mubr.bf16.gmra.mrb[0].mxu0 %v423
        %v1232 = vpop.f32.mrb[0].mxu0
        %v1233 = vadd.f32 %v1190, %v1232
        %v1234 = vpop.f32.mrb[0].mxu0
        %v1235 = vadd.f32 %v1192, %v1234
        %v1236 = vpop.f32.mrb[0].mxu0
        %v1237 = vadd.f32 %v1194, %v1236
        %v1238 = vpop.f32.mrb[0].mxu0
        %v1239 = vadd.f32 %v1196, %v1238
        %1240 = vdwg.mxu0
        %v1241 = vadd.f32 %v269, %v1147
        %v1242 = vadd.f32 %v270, %v1149
        %v1243 = vadd.f32 %v271, %v1233
        %v1244 = vadd.f32 %v272, %v1235
        %v1245 = vadd.f32 %v273, %v1151
        %v1246 = vadd.f32 %v274, %v1153
        %v1247 = vadd.f32 %v275, %v1237
        %v1248 = vadd.f32 %v276, %v1239
        %1249 = vst [vmem:[#allocation2] sm:$0xff] %v1241
        %1250 = vst [vmem:[#allocation2 + $0x8] sm:$0xff] %v1242
        %1251 = vst [vmem:[#allocation2 + $0x10] sm:$0xff] %v1243
        %1252 = vst [vmem:[#allocation2 + $0x18] sm:$0xff] %v1244
        %1253 = vst [vmem:[#allocation2 + $0x20] sm:$0xff] %v1245
        %1254 = vst [vmem:[#allocation2 + $0x28] sm:$0xff] %v1246
        %1255 = vst [vmem:[#allocation2 + $0x30] sm:$0xff] %v1247
        %1256 = vst [vmem:[#allocation2 + $0x38] sm:$0xff] %v1248
        %p1257 = scmp.eq.s32.totalorder %s20, 7
        // Predicated region
        $region56: #{patchgan_forward.13} parent=46 // pred_check
          %p1258 = pneg %p1257
        $region57: #{patchgan_forward.13} parent=46 // pred_check_branch
          %1260 = sbr.rel (%p1258) target = $region59
        $region58: #{patchgan_forward.13} parent=46 // pred_region
          %v1261 = vld [vmem:[#allocation2] sm:$0xff]
          %v1262 = vld [vmem:[#allocation2 + $0x8] sm:$0xff]
          %v1263 = vld [vmem:[#allocation2 + $0x10] sm:$0xff]
          %v1264 = vld [vmem:[#allocation2 + $0x18] sm:$0xff]
          %v1265 = vld [vmem:[#allocation2 + $0x20] sm:$0xff]
          %v1266 = vld [vmem:[#allocation2 + $0x28] sm:$0xff]
          %v1267 = vld [vmem:[#allocation2 + $0x30] sm:$0xff]
          %v1268 = vld [vmem:[#allocation2 + $0x38] sm:$0xff]
          %1269 = vst [vmem:[%s250] sm:$0xff] %v1261
          %1270 = vst [vmem:[%s250 + $0x8] sm:$0xff] %v1262
          %1271 = vst [vmem:[%s250 + $0x10] sm:$0xff] %v1263
          %1272 = vst [vmem:[%s250 + $0x18] sm:$0xff] %v1264
          %1273 = vst [vmem:[%s250 + $0x20] sm:$0xff] %v1265
          %1274 = vst [vmem:[%s250 + $0x28] sm:$0xff] %v1266
          %1275 = vst [vmem:[%s250 + $0x30] sm:$0xff] %v1267
          %1276 = vst [vmem:[%s250 + $0x38] sm:$0xff] %v1268
          %v1277 = vadd.f32 %v1261, %v1265
          %v1278 = vrot.slane %v1277, 4
          %v1279 = vadd.f32 %v1277, %v1278
          %v1280 = vrot.slane %v1279, 2
          %v1281 = vadd.f32 %v1279, %v1280
          %v1282 = vrot.slane %v1281, 1
          %v1283 = vadd.f32 %v1281, %v1282
          %v1284 = vadd.f32 %v1262, %v1266
          %v1285 = vrot.slane %v1284, 4
          %v1286 = vadd.f32 %v1284, %v1285
          %v1287 = vrot.slane %v1286, 2
          %v1288 = vadd.f32 %v1286, %v1287
          %v1289 = vrot.slane %v1288, 1
          %v1290 = vadd.f32 %v1288, %v1289
          %v1291 = vadd.f32 %v1263, %v1267
          %v1292 = vrot.slane %v1291, 4
          %v1293 = vadd.f32 %v1291, %v1292
          %v1294 = vrot.slane %v1293, 2
          %v1295 = vadd.f32 %v1293, %v1294
          %v1296 = vrot.slane %v1295, 1
          %v1297 = vadd.f32 %v1295, %v1296
          %v1298 = vadd.f32 %v1264, %v1268
          %v1299 = vrot.slane %v1298, 4
          %v1300 = vadd.f32 %v1298, %v1299
          %v1301 = vrot.slane %v1300, 2
          %v1302 = vadd.f32 %v1300, %v1301
          %v1303 = vrot.slane %v1302, 1
          %v1304 = vadd.f32 %v1302, %v1303
          %v1309 = vcombine.low %v1283, %v1290
          %v1310 = vcombine.low %v1297, %v1304
          %v1312 = vunpack.c.l.s4 1966171168
          %v1313 = vunpack.c.0.s8 %v1312
          %v1314 = vlaneseq
          %v1315 = vshrl.u32 %v1314, 7
          %v1316 = vsub.s32 %v1313, %v1315
          %v1317 = vrot.slane %v1309, %v1316
          %v1319 = vunpack.c.l.s4 1966171168
          %v1320 = vunpack.c.0.s8 %v1319
          %v1321 = vlaneseq
          %v1322 = vshrl.u32 %v1321, 7
          %v1323 = vsub.s32 %v1320, %v1322
          %v1324 = vrot.slane %v1310, %v1323
          %v1325 = vcombine.low %v1317, %v1324
          %v1327 = vunpack.c.l.s4 1966171168
          %v1328 = vunpack.c.0.s8 %v1327
          %v1329 = vlaneseq
          %v1330 = vshrl.u32 %v1329, 7
          %v1331 = vsub.s32 %v1328, %v1330
          %v1332 = vrot.slane %v1325, %v1331
          %v1334 = vlaneseq
          %vm1335 = vcmp.ge.s32.totalorder %v1334, 0
          %vm1336 = vcmp.lt.s32.totalorder %v1334, 512
          %vm1337 = vmand %vm1335, %vm1336
          %1338 = vst.msk [vmem:[%s256] ss:$2 sm:$0xf] %vm1337, %v1332
          %v1339 = vmul.f32 %v1261, %v1261
          %v1340 = vmul.f32 %v1262, %v1262
          %v1341 = vmul.f32 %v1263, %v1263
          %v1342 = vmul.f32 %v1264, %v1264
          %v1343 = vmul.f32 %v1265, %v1265
          %v1344 = vmul.f32 %v1266, %v1266
          %v1345 = vmul.f32 %v1267, %v1267
          %v1346 = vmul.f32 %v1268, %v1268
          %v1347 = vadd.f32 %v1339, %v1343
          %v1348 = vrot.slane %v1347, 4
          %v1349 = vadd.f32 %v1347, %v1348
          %v1350 = vrot.slane %v1349, 2
          %v1351 = vadd.f32 %v1349, %v1350
          %v1352 = vrot.slane %v1351, 1
          %v1353 = vadd.f32 %v1351, %v1352
          %v1354 = vadd.f32 %v1340, %v1344
          %v1355 = vrot.slane %v1354, 4
          %v1356 = vadd.f32 %v1354, %v1355
          %v1357 = vrot.slane %v1356, 2
          %v1358 = vadd.f32 %v1356, %v1357
          %v1359 = vrot.slane %v1358, 1
          %v1360 = vadd.f32 %v1358, %v1359
          %v1361 = vadd.f32 %v1341, %v1345
          %v1362 = vrot.slane %v1361, 4
          %v1363 = vadd.f32 %v1361, %v1362
          %v1364 = vrot.slane %v1363, 2
          %v1365 = vadd.f32 %v1363, %v1364
          %v1366 = vrot.slane %v1365, 1
          %v1367 = vadd.f32 %v1365, %v1366
          %v1368 = vadd.f32 %v1342, %v1346
          %v1369 = vrot.slane %v1368, 4
          %v1370 = vadd.f32 %v1368, %v1369
          %v1371 = vrot.slane %v1370, 2
          %v1372 = vadd.f32 %v1370, %v1371
          %v1373 = vrot.slane %v1372, 1
          %v1374 = vadd.f32 %v1372, %v1373
          %v1379 = vcombine.low %v1353, %v1360
          %v1380 = vcombine.low %v1367, %v1374
          %v1382 = vunpack.c.l.s4 1966171168
          %v1383 = vunpack.c.0.s8 %v1382
          %v1384 = vlaneseq
          %v1385 = vshrl.u32 %v1384, 7
          %v1386 = vsub.s32 %v1383, %v1385
          %v1387 = vrot.slane %v1379, %v1386
          %v1389 = vunpack.c.l.s4 1966171168
          %v1390 = vunpack.c.0.s8 %v1389
          %v1391 = vlaneseq
          %v1392 = vshrl.u32 %v1391, 7
          %v1393 = vsub.s32 %v1390, %v1392
          %v1394 = vrot.slane %v1380, %v1393
          %v1395 = vcombine.low %v1387, %v1394
          %v1397 = vunpack.c.l.s4 1966171168
          %v1398 = vunpack.c.0.s8 %v1397
          %v1399 = vlaneseq
          %v1400 = vshrl.u32 %v1399, 7
          %v1401 = vsub.s32 %v1398, %v1400
          %v1402 = vrot.slane %v1395, %v1401
          %s1404 = scalar_lea.vmem %s256, 1
          %1405 = vst.msk [vmem:[%s1404] ss:$2 sm:$0xf] %vm1337, %v1402
        $region59: #{patchgan_forward.13} parent=46 // pred_fallthru
          _
        %s1406 = smul.u32 2, %s19
        %p1407 = scmp.lt.s32.totalorder %s1406, 1
        %s1408 = scalar_select %p1407, %s1406, 1
        %s1409 = smul.addr %s1408, 4
        %s1410 = smul.addr %s1409, 8
        %s1411 = scalar_lea.vmem %s2, %s1410
        %p1412 = scmp.lt.s32.totalorder %s19, 0
        %s1413 = scalar_select %p1412, %s19, 0
        %s1414 = smul.addr %s1413, 4
        %s1415 = smul.addr %s1414, 2
        %s1416 = scalar_lea.vmem %s3, %s1415
        // Predicated region
        $region60: #{patchgan_forward.13} parent=46 // pred_check
          %p1417 = pneg %p99
        $region61: #{patchgan_forward.13} parent=46 // pred_check_branch
          %1419 = sbr.rel (%p1417) target = $region63
        $region62: #{patchgan_forward.13} parent=46 // pred_region
          %s1420 = smul.u32 2, %s19
        $region63: #{patchgan_forward.13} parent=46 // pred_fallthru
          _
        // Predicated region
        $region64: #{patchgan_forward.13} parent=46 // pred_check
          %p1421 = pneg %p125
        $region65: #{patchgan_forward.13} parent=46 // pred_check_branch
          %1423 = sbr.rel (%p1421) target = $region67
        $region66: #{patchgan_forward.13} parent=46 // pred_region
          _
        $region67: #{patchgan_forward.13} parent=46 // pred_fallthru
          _
        // Predicated region
        $region68: #{patchgan_forward.13} parent=46 // pred_check
          %p1424 = pneg %p99
        $region69: #{patchgan_forward.13} parent=46 // pred_check_branch
          %1426 = sbr.rel (%p1424) target = $region71
        $region70: #{patchgan_forward.13} parent=46 // pred_region
          %s1427 = smul.u32 2, %s19
          %p1428 = scmp.lt.s32.totalorder %s1427, 1
          %s1429 = scalar_select %p1428, %s1427, 1
          %s1430 = smul.addr %s1429, 4
          %s1431 = smul.addr %s1430, 8
          %s1432 = scalar_lea.vmem %s2, %s1431
        $region71: #{patchgan_forward.13} parent=46 // pred_fallthru
          _
        // Predicated region
        $region72: #{patchgan_forward.13} parent=46 // pred_check
          %p1433 = pneg %p125
        $region73: #{patchgan_forward.13} parent=46 // pred_check_branch
          %1435 = sbr.rel (%p1433) target = $region75
        $region74: #{patchgan_forward.13} parent=46 // pred_region
          %p1436 = scmp.lt.s32.totalorder %s19, 0
          %s1437 = scalar_select %p1436, %s19, 0
          %s1438 = smul.addr %s1437, 4
          %s1439 = smul.addr %s1438, 2
          %s1440 = scalar_lea.vmem %s3, %s1439
        $region75: #{patchgan_forward.13} parent=46 // pred_fallthru
          _
      $region47: #{patchgan_forward.13} parent=5 // pred_fallthru
        _
      %p1441 = scmp.le.s32.totalorder 2, %s10
      // Predicated region
      $region76: #{patchgan_forward.13} parent=5 // pred_check
        %p1442 = pneg %p1441
      $region77: #{patchgan_forward.13} parent=5 // pred_check_branch
        %1444 = sbr.rel (%p1442) target = $region79
      $region78: #{patchgan_forward.13} parent=5 // pred_region
        %s1445 = ssub.s32 %s10, 2
      $region79: #{patchgan_forward.13} parent=5 // pred_fallthru
        _
    $region6: #{patchgan_forward.13} parent=1 // loop_footer
      %s14 = sadd.s32 1, %s10
    $region7: #{patchgan_forward.13} parent=1 // loop_footer_branch
      %9 = sbr.rel target = $region3
    $region8: #{patchgan_forward.13} parent=1 // loop_exit
      _

// kernel: patchgan_forward.14
$region0: #{patchgan_forward.14}
  #allocation0 [shape = 'u32[]', space=smem, size = 0x4, offset = 0x4, fixed_abs, tag = 'smem constant byte address 0x4 - core index']
  #allocation1 [shape = 'u32[144,128]{1,0:T(1,128)}', space=vmem, size = 0x12000, scoped, tag = 'internal scratch']
  %s0 = inlined_call_operand.vmem [shape: f32[16,512], index: 0, kind: input, shape index: {}]
  %s1 = inlined_call_operand.vmem [shape: f32[1,512], index: 1, kind: input, shape index: {}]
  %s2 = inlined_call_operand.vmem [shape: f32[1,512], index: 2, kind: input, shape index: {}]
  %s3 = inlined_call_operand.vmem [shape: bf16[16,512], index: 3, kind: output, shape index: {}]
  %s4 = sld [smem:[#allocation0]]
  $region22: #{patchgan_forward.14} parent=0
    _
  %s6 = ssub.s32 1, %s4
  %s7 = scalar_select 0, %s6, %s4
  // Predicated region
  $region2: #{patchgan_forward.14} parent=0 // pred_check
    _
  $region3: #{patchgan_forward.14} parent=0 // pred_check_branch
    %9 = sbr.rel (0) target = $region5
  $region4: #{patchgan_forward.14} parent=0 // pred_region
    _
  $region5: #{patchgan_forward.14} parent=0 // pred_fallthru
    _
  // Predicated region
  $region6: #{patchgan_forward.14} parent=0 // pred_check
    _
  $region7: #{patchgan_forward.14} parent=0 // pred_check_branch
    %11 = sbr.rel (0) target = $region9
  $region8: #{patchgan_forward.14} parent=0 // pred_region
    _
  $region9: #{patchgan_forward.14} parent=0 // pred_fallthru
    _
  // Predicated region
  $region10: #{patchgan_forward.14} parent=0 // pred_check
    _
  $region11: #{patchgan_forward.14} parent=0 // pred_check_branch
    %13 = sbr.rel (0) target = $region13
  $region12: #{patchgan_forward.14} parent=0 // pred_region
    _
  $region13: #{patchgan_forward.14} parent=0 // pred_fallthru
    _
  %v14 = vld [vmem:[%s0] sm:$0xff]
  %v15 = vld [vmem:[%s0 + $0x8] sm:$0xff]
  %v16 = vld [vmem:[%s0 + $0x10] sm:$0xff]
  %v17 = vld [vmem:[%s0 + $0x18] sm:$0xff]
  %v18 = vld [vmem:[%s0 + $0x20] sm:$0xff]
  %v19 = vld [vmem:[%s0 + $0x28] sm:$0xff]
  %v20 = vld [vmem:[%s0 + $0x30] sm:$0xff]
  %v21 = vld [vmem:[%s0 + $0x38] sm:$0xff]
  %v22 = vld [vmem:[%s1] sm:$0xf]
  %v24 = vlaneseq
  %v25 = vshrl.u32 %v24, 7
  %v26 = vsub.s32 0, %v25
  %v27 = vrot.slane %v22, %v26
  %v28 = vlaneseq
  %v29 = vshrl.u32 %v28, 7
  %v30 = vsub.s32 1, %v29
  %v31 = vrot.slane %v22, %v30
  %v32 = vlaneseq
  %v33 = vshrl.u32 %v32, 7
  %v34 = vsub.s32 2, %v33
  %v35 = vrot.slane %v22, %v34
  %v36 = vlaneseq
  %v37 = vshrl.u32 %v36, 7
  %v38 = vsub.s32 3, %v37
  %v39 = vrot.slane %v22, %v38
  %v44 = vmul.f32 %v14, %v27
  %v45 = vmul.f32 %v15, %v31
  %v46 = vmul.f32 %v16, %v35
  %v47 = vmul.f32 %v17, %v39
  %v48 = vmul.f32 %v18, %v27
  %v49 = vmul.f32 %v19, %v31
  %v50 = vmul.f32 %v20, %v35
  %v51 = vmul.f32 %v21, %v39
  %v52 = vld [vmem:[%s2] sm:$0xf]
  %v54 = vlaneseq
  %v55 = vshrl.u32 %v54, 7
  %v56 = vsub.s32 0, %v55
  %v57 = vrot.slane %v52, %v56
  %v58 = vlaneseq
  %v59 = vshrl.u32 %v58, 7
  %v60 = vsub.s32 1, %v59
  %v61 = vrot.slane %v52, %v60
  %v62 = vlaneseq
  %v63 = vshrl.u32 %v62, 7
  %v64 = vsub.s32 2, %v63
  %v65 = vrot.slane %v52, %v64
  %v66 = vlaneseq
  %v67 = vshrl.u32 %v66, 7
  %v68 = vsub.s32 3, %v67
  %v69 = vrot.slane %v52, %v68
  %v74 = vadd.f32 %v44, %v57
  %v75 = vadd.f32 %v45, %v61
  %v76 = vadd.f32 %v46, %v65
  %v77 = vadd.f32 %v47, %v69
  %v78 = vadd.f32 %v48, %v57
  %v79 = vadd.f32 %v49, %v61
  %v80 = vadd.f32 %v50, %v65
  %v81 = vadd.f32 %v51, %v69
  %vm82 = vcmp.gt.f32.partialorder %v74, 0.0
  %vm83 = vcmp.gt.f32.partialorder %v75, 0.0
  %vm84 = vcmp.gt.f32.partialorder %v76, 0.0
  %vm85 = vcmp.gt.f32.partialorder %v77, 0.0
  %vm86 = vcmp.gt.f32.partialorder %v78, 0.0
  %vm87 = vcmp.gt.f32.partialorder %v79, 0.0
  %vm88 = vcmp.gt.f32.partialorder %v80, 0.0
  %vm89 = vcmp.gt.f32.partialorder %v81, 0.0
  %v90 = vmul.f32 %v74, 0.2
  %v91 = vmul.f32 %v75, 0.2
  %v92 = vmul.f32 %v76, 0.2
  %v93 = vmul.f32 %v77, 0.2
  %v94 = vmul.f32 %v78, 0.2
  %v95 = vmul.f32 %v79, 0.2
  %v96 = vmul.f32 %v80, 0.2
  %v97 = vmul.f32 %v81, 0.2
  %v98 = vsel %vm82, %v74, %v90
  %v99 = vsel %vm83, %v75, %v91
  %v100 = vsel %vm84, %v76, %v92
  %v101 = vsel %vm85, %v77, %v93
  %v102 = vsel %vm86, %v78, %v94
  %v103 = vsel %vm87, %v79, %v95
  %v104 = vsel %vm88, %v80, %v96
  %v105 = vsel %vm89, %v81, %v97
  %v106 = vpack.c.bf16 %v102, %v98
  %v107 = vpack.c.bf16 %v103, %v99
  %v108 = vpack.c.bf16 %v104, %v100
  %v109 = vpack.c.bf16 %v105, %v101
  %v114 = vunpack.c.l.b16 %v106
  %v115 = vunpack.c.l.b16 %v107
  %v116 = vunpack.c.l.b16 %v108
  %v117 = vunpack.c.l.b16 %v109
  %v118 = vunpack.c.h.b16 %v106
  %v119 = vunpack.c.h.b16 %v107
  %v120 = vunpack.c.h.b16 %v108
  %v121 = vunpack.c.h.b16 %v109
  %v122 = vpack.c.b16 %v115, %v114
  %v123 = vpack.c.b16 %v117, %v116
  %v124 = vpack.c.b16 %v119, %v118
  %v125 = vpack.c.b16 %v121, %v120
  %130 = vst [vmem:[%s3] sm:$0xff] %v122
  %131 = vst [vmem:[%s3 + $0x8] sm:$0xff] %v123
  %132 = vst [vmem:[%s3 + $0x10] sm:$0xff] %v124
  %133 = vst [vmem:[%s3 + $0x18] sm:$0xff] %v125
  // Predicated region
  $region14: #{patchgan_forward.14} parent=0 // pred_check
    _
  $region15: #{patchgan_forward.14} parent=0 // pred_check_branch
    %135 = sbr.rel (0) target = $region17
  $region16: #{patchgan_forward.14} parent=0 // pred_region
    _
  $region17: #{patchgan_forward.14} parent=0 // pred_fallthru
    _
  // Predicated region
  $region18: #{patchgan_forward.14} parent=0 // pred_check
    _
  $region19: #{patchgan_forward.14} parent=0 // pred_check_branch
    %137 = sbr.rel (0) target = $region21
  $region20: #{patchgan_forward.14} parent=0 // pred_region
    _
  $region21: #{patchgan_forward.14} parent=0 // pred_fallthru
    _

// kernel: patchgan_forward.15
$region0: #{patchgan_forward.15}
  #allocation0 [shape = 'u32[]', space=smem, size = 0x4, offset = 0x4, fixed_abs, tag = 'smem constant byte address 0x4 - core index']
  #allocation1 [shape = 'u32[144,128]{1,0:T(1,128)}', space=vmem, size = 0x12000, scoped, tag = 'internal scratch']
  #allocation2 [shape = 'f32[1,1]{1,0:T(1,128)S(1)}', space=vmem, size = 0x200, scoped, tag = 'scoped memory for patchgan_forward.15']
  %s0 = inlined_call_operand.vmem [shape: bf16[1,512], index: 0, kind: input, shape index: {}]
  %s1 = inlined_call_operand.vmem [shape: bf16[512,128], index: 1, kind: input, shape index: {}]
  %s2 = inlined_call_operand.<no memory space> [shape: f32[1,1], index: 2, kind: input, shape index: {}]
  %s3 = inlined_call_operand.vmem [shape: f32[1,128], index: 3, kind: output, shape index: {}]
  %s4 = sld [smem:[#allocation0]]
  $region22: #{patchgan_forward.15} parent=0
    _
  %s6 = ssub.s32 1, %s4
  %s7 = scalar_select 0, %s6, %s4
  %v8 = vstv %s2
  %9 = vst [vmem:[#allocation2] sm:$0x1] %v8
  // Predicated region
  $region2: #{patchgan_forward.15} parent=0 // pred_check
    _
  $region3: #{patchgan_forward.15} parent=0 // pred_check_branch
    %11 = sbr.rel (0) target = $region5
  $region4: #{patchgan_forward.15} parent=0 // pred_region
    _
  $region5: #{patchgan_forward.15} parent=0 // pred_fallthru
    _
  // Predicated region
  $region6: #{patchgan_forward.15} parent=0 // pred_check
    _
  $region7: #{patchgan_forward.15} parent=0 // pred_check_branch
    %13 = sbr.rel (0) target = $region9
  $region8: #{patchgan_forward.15} parent=0 // pred_region
    _
  $region9: #{patchgan_forward.15} parent=0 // pred_fallthru
    _
  // Predicated region
  $region10: #{patchgan_forward.15} parent=0 // pred_check
    _
  $region11: #{patchgan_forward.15} parent=0 // pred_check_branch
    %15 = sbr.rel (0) target = $region13
  $region12: #{patchgan_forward.15} parent=0 // pred_region
    _
  $region13: #{patchgan_forward.15} parent=0 // pred_fallthru
    _
  %v17 = vld [vmem:[%s0] sm:$0xf]
  %v18 = vld [vmem:[%s1] sm:$0xf]
  %v19 = vld [vmem:[%s1 + $0x4] sm:$0xf]
  %v20 = vld [vmem:[%s1 + $0x8] sm:$0xf]
  %v21 = vld [vmem:[%s1 + $0xc] sm:$0xf]
  %v22 = vld [vmem:[%s1 + $0x10] sm:$0xf]
  %v23 = vld [vmem:[%s1 + $0x14] sm:$0xf]
  %v24 = vld [vmem:[%s1 + $0x18] sm:$0xf]
  %v25 = vld [vmem:[%s1 + $0x1c] sm:$0xf]
  %v26 = vld [vmem:[%s1 + $0x20] sm:$0xf]
  %v27 = vld [vmem:[%s1 + $0x24] sm:$0xf]
  %v28 = vld [vmem:[%s1 + $0x28] sm:$0xf]
  %v29 = vld [vmem:[%s1 + $0x2c] sm:$0xf]
  %v30 = vld [vmem:[%s1 + $0x30] sm:$0xf]
  %v31 = vld [vmem:[%s1 + $0x34] sm:$0xf]
  %v32 = vld [vmem:[%s1 + $0x38] sm:$0xf]
  %v33 = vld [vmem:[%s1 + $0x3c] sm:$0xf]
  %v34 = vld [vmem:[%s1 + $0x40] sm:$0xf]
  %v35 = vld [vmem:[%s1 + $0x44] sm:$0xf]
  %v36 = vld [vmem:[%s1 + $0x48] sm:$0xf]
  %v37 = vld [vmem:[%s1 + $0x4c] sm:$0xf]
  %v38 = vld [vmem:[%s1 + $0x50] sm:$0xf]
  %v39 = vld [vmem:[%s1 + $0x54] sm:$0xf]
  %v40 = vld [vmem:[%s1 + $0x58] sm:$0xf]
  %v41 = vld [vmem:[%s1 + $0x5c] sm:$0xf]
  %v42 = vld [vmem:[%s1 + $0x60] sm:$0xf]
  %v43 = vld [vmem:[%s1 + $0x64] sm:$0xf]
  %v44 = vld [vmem:[%s1 + $0x68] sm:$0xf]
  %v45 = vld [vmem:[%s1 + $0x6c] sm:$0xf]
  %v46 = vld [vmem:[%s1 + $0x70] sm:$0xf]
  %v47 = vld [vmem:[%s1 + $0x74] sm:$0xf]
  %v48 = vld [vmem:[%s1 + $0x78] sm:$0xf]
  %v49 = vld [vmem:[%s1 + $0x7c] sm:$0xf]
  %v50 = vld [vmem:[%s1 + $0x80] sm:$0xf]
  %v51 = vld [vmem:[%s1 + $0x84] sm:$0xf]
  %v52 = vld [vmem:[%s1 + $0x88] sm:$0xf]
  %v53 = vld [vmem:[%s1 + $0x8c] sm:$0xf]
  %v54 = vld [vmem:[%s1 + $0x90] sm:$0xf]
  %v55 = vld [vmem:[%s1 + $0x94] sm:$0xf]
  %v56 = vld [vmem:[%s1 + $0x98] sm:$0xf]
  %v57 = vld [vmem:[%s1 + $0x9c] sm:$0xf]
  %v58 = vld [vmem:[%s1 + $0xa0] sm:$0xf]
  %v59 = vld [vmem:[%s1 + $0xa4] sm:$0xf]
  %v60 = vld [vmem:[%s1 + $0xa8] sm:$0xf]
  %v61 = vld [vmem:[%s1 + $0xac] sm:$0xf]
  %v62 = vld [vmem:[%s1 + $0xb0] sm:$0xf]
  %v63 = vld [vmem:[%s1 + $0xb4] sm:$0xf]
  %v64 = vld [vmem:[%s1 + $0xb8] sm:$0xf]
  %v65 = vld [vmem:[%s1 + $0xbc] sm:$0xf]
  %v66 = vld [vmem:[%s1 + $0xc0] sm:$0xf]
  %v67 = vld [vmem:[%s1 + $0xc4] sm:$0xf]
  %v68 = vld [vmem:[%s1 + $0xc8] sm:$0xf]
  %v69 = vld [vmem:[%s1 + $0xcc] sm:$0xf]
  %v70 = vld [vmem:[%s1 + $0xd0] sm:$0xf]
  %v71 = vld [vmem:[%s1 + $0xd4] sm:$0xf]
  %v72 = vld [vmem:[%s1 + $0xd8] sm:$0xf]
  %v73 = vld [vmem:[%s1 + $0xdc] sm:$0xf]
  %v74 = vld [vmem:[%s1 + $0xe0] sm:$0xf]
  %v75 = vld [vmem:[%s1 + $0xe4] sm:$0xf]
  %v76 = vld [vmem:[%s1 + $0xe8] sm:$0xf]
  %v77 = vld [vmem:[%s1 + $0xec] sm:$0xf]
  %v78 = vld [vmem:[%s1 + $0xf0] sm:$0xf]
  %v79 = vld [vmem:[%s1 + $0xf4] sm:$0xf]
  %v80 = vld [vmem:[%s1 + $0xf8] sm:$0xf]
  %v81 = vld [vmem:[%s1 + $0xfc] sm:$0xf]
  %v82 = vld [vmem:[#allocation2] sm:$0x1]
  %84 = vset.pattern.permute.xlu0 0
  %85 = vperm.xlu0 %84, %v82
  %v86 = vpop.permute.xlu0 %85
  %v88 = vlaneseq
  %v89 = vshrl.u32 %v88, 7
  %v90 = vsub.s32 0, %v89
  %v91 = vrot.slane %v86, %v90
  %v94 = vunpack.c.l.s4 1966171168
  %v95 = vunpack.c.0.s8 %v94
  %v96 = vlaneseq
  %v97 = vshrl.u32 %v96, 7
  %v98 = vsub.s32 %v95, %v97
  %v99 = vrot.slane %v17, %v98
  %v100 = vcombine.high %v99, %v99
  %v102 = vunpack.c.l.s4 1966171168
  %v103 = vunpack.c.0.s8 %v102
  %v104 = vlaneseq
  %v105 = vshrl.u32 %v104, 7
  %v106 = vsub.s32 %v103, %v105
  %v107 = vrot.slane %v99, %v106
  %v109 = vunpack.c.l.s4 1966171168
  %v110 = vunpack.c.0.s8 %v109
  %v111 = vlaneseq
  %v112 = vshrl.u32 %v111, 7
  %v113 = vsub.s32 %v110, %v112
  %v114 = vrot.slane %v100, %v113
  %v115 = vcombine.high %v107, %v107
  %v116 = vcombine.high %v114, %v114
  %v185 = vunpack.c.l.b16 %v18
  %v186 = vunpack.c.l.b16 %v19
  %v187 = vunpack.c.l.b16 %v20
  %v188 = vunpack.c.l.b16 %v21
  %v189 = vunpack.c.l.b16 %v22
  %v190 = vunpack.c.l.b16 %v23
  %v191 = vunpack.c.l.b16 %v24
  %v192 = vunpack.c.l.b16 %v25
  %v193 = vunpack.c.l.b16 %v26
  %v194 = vunpack.c.l.b16 %v27
  %v195 = vunpack.c.l.b16 %v28
  %v196 = vunpack.c.l.b16 %v29
  %v197 = vunpack.c.l.b16 %v30
  %v198 = vunpack.c.l.b16 %v31
  %v199 = vunpack.c.l.b16 %v32
  %v200 = vunpack.c.l.b16 %v33
  %v201 = vunpack.c.l.b16 %v34
  %v202 = vunpack.c.l.b16 %v35
  %v203 = vunpack.c.l.b16 %v36
  %v204 = vunpack.c.l.b16 %v37
  %v205 = vunpack.c.l.b16 %v38
  %v206 = vunpack.c.l.b16 %v39
  %v207 = vunpack.c.l.b16 %v40
  %v208 = vunpack.c.l.b16 %v41
  %v209 = vunpack.c.l.b16 %v42
  %v210 = vunpack.c.l.b16 %v43
  %v211 = vunpack.c.l.b16 %v44
  %v212 = vunpack.c.l.b16 %v45
  %v213 = vunpack.c.l.b16 %v46
  %v214 = vunpack.c.l.b16 %v47
  %v215 = vunpack.c.l.b16 %v48
  %v216 = vunpack.c.l.b16 %v49
  %v217 = vunpack.c.l.b16 %v50
  %v218 = vunpack.c.l.b16 %v51
  %v219 = vunpack.c.l.b16 %v52
  %v220 = vunpack.c.l.b16 %v53
  %v221 = vunpack.c.l.b16 %v54
  %v222 = vunpack.c.l.b16 %v55
  %v223 = vunpack.c.l.b16 %v56
  %v224 = vunpack.c.l.b16 %v57
  %v225 = vunpack.c.l.b16 %v58
  %v226 = vunpack.c.l.b16 %v59
  %v227 = vunpack.c.l.b16 %v60
  %v228 = vunpack.c.l.b16 %v61
  %v229 = vunpack.c.l.b16 %v62
  %v230 = vunpack.c.l.b16 %v63
  %v231 = vunpack.c.l.b16 %v64
  %v232 = vunpack.c.l.b16 %v65
  %v233 = vunpack.c.l.b16 %v66
  %v234 = vunpack.c.l.b16 %v67
  %v235 = vunpack.c.l.b16 %v68
  %v236 = vunpack.c.l.b16 %v69
  %v237 = vunpack.c.l.b16 %v70
  %v238 = vunpack.c.l.b16 %v71
  %v239 = vunpack.c.l.b16 %v72
  %v240 = vunpack.c.l.b16 %v73
  %v241 = vunpack.c.l.b16 %v74
  %v242 = vunpack.c.l.b16 %v75
  %v243 = vunpack.c.l.b16 %v76
  %v244 = vunpack.c.l.b16 %v77
  %v245 = vunpack.c.l.b16 %v78
  %v246 = vunpack.c.l.b16 %v79
  %v247 = vunpack.c.l.b16 %v80
  %v248 = vunpack.c.l.b16 %v81
  %v249 = vpack.c.b16 %v186, %v185
  %v250 = vpack.c.b16 %v188, %v187
  %v251 = vpack.c.b16 %v190, %v189
  %v252 = vpack.c.b16 %v192, %v191
  %v253 = vpack.c.b16 %v194, %v193
  %v254 = vpack.c.b16 %v196, %v195
  %v255 = vpack.c.b16 %v198, %v197
  %v256 = vpack.c.b16 %v200, %v199
  %v257 = vpack.c.b16 %v202, %v201
  %v258 = vpack.c.b16 %v204, %v203
  %v259 = vpack.c.b16 %v206, %v205
  %v260 = vpack.c.b16 %v208, %v207
  %v261 = vpack.c.b16 %v210, %v209
  %v262 = vpack.c.b16 %v212, %v211
  %v263 = vpack.c.b16 %v214, %v213
  %v264 = vpack.c.b16 %v216, %v215
  %v265 = vpack.c.b16 %v218, %v217
  %v266 = vpack.c.b16 %v220, %v219
  %v267 = vpack.c.b16 %v222, %v221
  %v268 = vpack.c.b16 %v224, %v223
  %v269 = vpack.c.b16 %v226, %v225
  %v270 = vpack.c.b16 %v228, %v227
  %v271 = vpack.c.b16 %v230, %v229
  %v272 = vpack.c.b16 %v232, %v231
  %v273 = vpack.c.b16 %v234, %v233
  %v274 = vpack.c.b16 %v236, %v235
  %v275 = vpack.c.b16 %v238, %v237
  %v276 = vpack.c.b16 %v240, %v239
  %v277 = vpack.c.b16 %v242, %v241
  %v278 = vpack.c.b16 %v244, %v243
  %v279 = vpack.c.b16 %v246, %v245
  %v280 = vpack.c.b16 %v248, %v247
  %313 = vmatprep.subr.bf16.mxu0 0
  %314 = vmatpush1.bf16.msra.mxu0 %v249
  %315 = vmatprep.subr.bf16.mxu0 0
  %316 = vmatpush1.bf16.msra.mxu0 %v250
  %317 = vmatprep.subr.bf16.mxu0 0
  %318 = vmatpush1.bf16.msra.mxu0 %v251
  %319 = vmatprep.subr.bf16.mxu0 0
  %320 = vmatpush1.bf16.msra.mxu0 %v252
  %321 = vmatprep.subr.bf16.mxu0 0
  %322 = vmatpush1.bf16.msra.mxu0 %v253
  %323 = vmatprep.subr.bf16.mxu0 0
  %324 = vmatpush1.bf16.msra.mxu0 %v254
  %325 = vmatprep.subr.bf16.mxu0 0
  %326 = vmatpush1.bf16.msra.mxu0 %v255
  %327 = vmatprep.subr.bf16.mxu0 0
  %328 = vmatpush1.bf16.msra.mxu0 %v256
  %329 = vmatprep.subr.bf16.mxu0 0
  %330 = vmatpush1.bf16.msra.mxu0 %v257
  %331 = vmatprep.subr.bf16.mxu0 0
  %332 = vmatpush1.bf16.msra.mxu0 %v258
  %333 = vmatprep.subr.bf16.mxu0 0
  %334 = vmatpush1.bf16.msra.mxu0 %v259
  %335 = vmatprep.subr.bf16.mxu0 0
  %336 = vmatpush1.bf16.msra.mxu0 %v260
  %337 = vmatprep.subr.bf16.mxu0 0
  %338 = vmatpush1.bf16.msra.mxu0 %v261
  %339 = vmatprep.subr.bf16.mxu0 0
  %340 = vmatpush1.bf16.msra.mxu0 %v262
  %341 = vmatprep.subr.bf16.mxu0 0
  %342 = vmatpush1.bf16.msra.mxu0 %v263
  %343 = vmatprep.subr.bf16.mxu0 0
  %344 = vmatpush1.bf16.msra.mxu0 %v264
  %345 = vmatprep.mubr.bf16.mxu0 %v114
  %346 = vmatmul.mubr.bf16.gmra.mrb[0].mxu0 %v107
  %v347 = vpop.f32.mrb[0].mxu0
  %v348 = vadd.f32 %v91, %v347
  %v349 = vpop.f32.mrb[0].mxu0
  %v350 = vpop.f32.mrb[0].mxu0
  %v351 = vpop.f32.mrb[0].mxu0
  %352 = vdwg.mxu0
  %353 = vmatprep.subr.bf16.mxu0 0
  %354 = vmatpush1.bf16.msra.mxu0 %v265
  %355 = vmatprep.subr.bf16.mxu0 0
  %356 = vmatpush1.bf16.msra.mxu0 %v266
  %357 = vmatprep.subr.bf16.mxu0 0
  %358 = vmatpush1.bf16.msra.mxu0 %v267
  %359 = vmatprep.subr.bf16.mxu0 0
  %360 = vmatpush1.bf16.msra.mxu0 %v268
  %361 = vmatprep.subr.bf16.mxu0 0
  %362 = vmatpush1.bf16.msra.mxu0 %v269
  %363 = vmatprep.subr.bf16.mxu0 0
  %364 = vmatpush1.bf16.msra.mxu0 %v270
  %365 = vmatprep.subr.bf16.mxu0 0
  %366 = vmatpush1.bf16.msra.mxu0 %v271
  %367 = vmatprep.subr.bf16.mxu0 0
  %368 = vmatpush1.bf16.msra.mxu0 %v272
  %369 = vmatprep.subr.bf16.mxu0 0
  %370 = vmatpush1.bf16.msra.mxu0 %v273
  %371 = vmatprep.subr.bf16.mxu0 0
  %372 = vmatpush1.bf16.msra.mxu0 %v274
  %373 = vmatprep.subr.bf16.mxu0 0
  %374 = vmatpush1.bf16.msra.mxu0 %v275
  %375 = vmatprep.subr.bf16.mxu0 0
  %376 = vmatpush1.bf16.msra.mxu0 %v276
  %377 = vmatprep.subr.bf16.mxu0 0
  %378 = vmatpush1.bf16.msra.mxu0 %v277
  %379 = vmatprep.subr.bf16.mxu0 0
  %380 = vmatpush1.bf16.msra.mxu0 %v278
  %381 = vmatprep.subr.bf16.mxu0 0
  %382 = vmatpush1.bf16.msra.mxu0 %v279
  %383 = vmatprep.subr.bf16.mxu0 0
  %384 = vmatpush1.bf16.msra.mxu0 %v280
  %385 = vmatprep.mubr.bf16.mxu0 %v116
  %386 = vmatmul.mubr.bf16.gmra.mrb[0].mxu0 %v115
  %v387 = vpop.f32.mrb[0].mxu0
  %v388 = vadd.f32 %v348, %v387
  %v389 = vpop.f32.mrb[0].mxu0
  %v390 = vpop.f32.mrb[0].mxu0
  %v391 = vpop.f32.mrb[0].mxu0
  %392 = vdwg.mxu0
  %393 = vst [vmem:[%s3] sm:$0x1] %v388
  // Predicated region
  $region14: #{patchgan_forward.15} parent=0 // pred_check
    _
  $region15: #{patchgan_forward.15} parent=0 // pred_check_branch
    %395 = sbr.rel (0) target = $region17
  $region16: #{patchgan_forward.15} parent=0 // pred_region
    _
  $region17: #{patchgan_forward.15} parent=0 // pred_fallthru
    _
  // Predicated region
  $region18: #{patchgan_forward.15} parent=0 // pred_check
    _
  $region19: #{patchgan_forward.15} parent=0 // pred_check_branch
    %397 = sbr.rel (0) target = $region21
  $region20: #{patchgan_forward.15} parent=0 // pred_region
    _
  $region21: #{patchgan_forward.15} parent=0 // pred_fallthru
    _

</llo_original>
